<compile_context>
chip_gen: v7x
topology: tpu7x:2x2x1
jax: 0.10.0
libtpu: 0.0.40
codegen_flags: <defaults>
</compile_context>

<pallas_src>
import functools

import jax
import jax.numpy as jnp
from jax.experimental import pallas as pl
from jax.experimental.pallas import tpu as pltpu

LAYER_DIMS = [(12, 30), (30, 20), (20, 15), (15, 10), (10, 5), (5, 1)]
NUM_LAYERS = len(LAYER_DIMS)
PAD = 128            # lane width: all activations / weight tiles padded to 128
DEFAULT_TILE_B = 512


# ----------------------------- Pallas kernel --------------------------------

def mlp_kernel(x_ref, w_ref, b_ref, o_ref):
    # x_ref: (TILE_B, 128)  real features in columns [0, 12), rest zero
    # w_ref: (6*128, 128)   layer l weights in rows [l*128, (l+1)*128), zero-padded
    # b_ref: (8, 128)       layer l bias in row l, zero-padded
    # o_ref: (TILE_B, 128)  lane-dense output; real result lives in column 0
    h = x_ref[...]
    for l in range(NUM_LAYERS):                      # static unroll (6 layers)
        w = w_ref[l * PAD:(l + 1) * PAD, :]          # static ref slice: zero cost
        b = b_ref[l:l + 1, :]                        # (1, 128) bias row
        h = jnp.dot(h, w, preferred_element_type=jnp.float32) + b
        if l < NUM_LAYERS - 1:
            h = jnp.maximum(h, 0.0)
    # sigmoid: exp -> EUP; one f32 divide per tile (exact, matches reference)
    o_ref[...] = 1.0 / (1.0 + jnp.exp(-h))


# ----------------------------- parameters -----------------------------------

def init_params(key):
    """Deterministic PyTorch-style init: U(-1/sqrt(fan_in), 1/sqrt(fan_in))."""
    params = []
    for (fan_in, fan_out) in LAYER_DIMS:
        key, kw, kb = jax.random.split(key, 3)
        bound = 1.0 / jnp.sqrt(jnp.float32(fan_in))
        w = jax.random.uniform(kw, (fan_in, fan_out), jnp.float32, -bound, bound)
        b = jax.random.uniform(kb, (1, fan_out), jnp.float32, -bound, bound)
        params.append((w, b))
    return params


def pack_params(params):
    """Pack weights/biases into two zero-padded VMEM-friendly slabs."""
    w_slab = jnp.zeros((NUM_LAYERS * PAD, PAD), jnp.float32)
    b_slab = jnp.zeros((8, PAD), jnp.float32)
    for l, (w, b) in enumerate(params):
        fan_in, fan_out = w.shape
        w_slab = w_slab.at[l * PAD:l * PAD + fan_in, :fan_out].set(w)
        b_slab = b_slab.at[l, :fan_out].set(b.reshape(-1))
    return w_slab, b_slab


# ----------------------------- wrapper ---------------------------------------

@functools.partial(jax.jit, static_argnames=("tile_b",))
def bank_marketing_forward(x, w_slab, b_slab, tile_b=DEFAULT_TILE_B):
    B, F = x.shape
    b_pad = pl.cdiv(B, tile_b) * tile_b

    # Lane-dense, batch-padded input slab (zeros beyond real features/rows).
    x_p = jnp.zeros((b_pad, PAD), jnp.float32).at[:B, :F].set(x)

    out = pl.pallas_call(
        mlp_kernel,
        out_shape=jax.ShapeDtypeStruct((b_pad, PAD), jnp.float32),
        grid_spec=pl.GridSpec(
            grid=(b_pad // tile_b,),
            in_specs=[
                pl.BlockSpec((tile_b, PAD), lambda i: (i, 0)),            # x tile
                pl.BlockSpec((NUM_LAYERS * PAD, PAD), lambda i: (0, 0)),  # weights (resident)
                pl.BlockSpec((8, PAD), lambda i: (0, 0)),                 # biases  (resident)
            ],
            out_specs=pl.BlockSpec((tile_b, PAD), lambda i: (i, 0)),
        ),
        compiler_params=pltpu.CompilerParams(
            dimension_semantics=("parallel",)),   # batch tiles are independent
    )(x_p, w_slab, b_slab)

    return out[:B, :1]


# ----------------------------- reference (plain JAX) -------------------------

def reference_forward(x, params):
    h = x
    for idx, (w, b) in enumerate(params):
        h = jnp.dot(h, w, precision=jax.lax.Precision.HIGHEST) + b
        if idx < len(params) - 1:
            h = jnp.maximum(h, 0.0)
    return jax.nn.sigmoid(h)


# ----------------------------- main -------------------------------------------

if __name__ == "__main__":
    key = jax.random.PRNGKey(0)
    key, kx = jax.random.split(key)

    # Small but non-trivial batch: exercises two batch tiles + padding path.
    B = 1000
    x = jax.random.normal(kx, (B, 12), dtype=jnp.float32)

    params = init_params(key)
    w_slab, b_slab = pack_params(params)

    out = bank_marketing_forward(x, w_slab, b_slab)
    out = jax.block_until_ready(out)

    ref = reference_forward(x, params)
    assert out.shape == (B, 1), out.shape
    assert jnp.allclose(out, ref, atol=1e-5, rtol=1e-5), float(
        jnp.max(jnp.abs(out - ref)))

    print("KERNEL_OK")
</pallas_src>

<mosaic_0001>
module attributes {stable_mosaic.version = 11 : i64} {
  func.func @mlp_kernel(%arg0: i32, %arg1: memref<512x128xf32, #tpu.memory_space<vmem>>, %arg2: memref<768x128xf32, #tpu.memory_space<vmem>>, %arg3: memref<8x128xf32, #tpu.memory_space<vmem>>, %arg4: memref<512x128xf32, #tpu.memory_space<vmem>>) attributes {dimension_semantics = [#tpu.dimension_semantics<parallel>], iteration_bounds = array<i64: 2>, scalar_prefetch = 0 : i64, scratch_operands = 0 : i64, tpu.core_type = #tpu.core_type<tc>, window_params = [{transform_indices = @transform_0, window_bounds = array<i64: 512, 128>}, {pipeline_mode = #tpu.pipeline_mode<synchronous>, transform_indices = @transform_1, window_bounds = array<i64: 768, 128>}, {pipeline_mode = #tpu.pipeline_mode<synchronous>, transform_indices = @transform_2, window_bounds = array<i64: 8, 128>}, {transform_indices = @transform_3, window_bounds = array<i64: 512, 128>}]} {
    %c0 = arith.constant 0 : index
    %c0_0 = arith.constant 0 : index
    %0 = vector.load %arg1[%c0, %c0_0] : memref<512x128xf32, #tpu.memory_space<vmem>>, vector<512x128xf32>
    %c0_1 = arith.constant 0 : index
    %c0_2 = arith.constant 0 : index
    %1 = vector.load %arg2[%c0_1, %c0_2] : memref<768x128xf32, #tpu.memory_space<vmem>>, vector<128x128xf32>
    %c0_3 = arith.constant 0 : index
    %c0_4 = arith.constant 0 : index
    %2 = vector.load %arg3[%c0_3, %c0_4] : memref<8x128xf32, #tpu.memory_space<vmem>>, vector<1x128xf32>
    %cst = arith.constant dense<0.000000e+00> : vector<512x128xf32>
    %3 = tpu.matmul %0, %1, %cst {dimension_numbers = #tpu.dot_dimension_numbers<[1], [0], [0], [1], [0, 0, 1, 1], [], []>} : vector<512x128xf32>, vector<128x128xf32>, vector<512x128xf32> -> vector<512x128xf32>
    %4 = vector.broadcast %2 : vector<1x128xf32> to vector<512x128xf32>
    %5 = arith.addf %3, %4 : vector<512x128xf32>
    %cst_5 = arith.constant 0.000000e+00 : f32
    %6 = vector.broadcast %cst_5 : f32 to vector<512x128xf32>
    %7 = arith.maximumf %5, %6 : vector<512x128xf32>
    %c128 = arith.constant 128 : index
    %c0_6 = arith.constant 0 : index
    %8 = vector.load %arg2[%c128, %c0_6] : memref<768x128xf32, #tpu.memory_space<vmem>>, vector<128x128xf32>
    %c1 = arith.constant 1 : index
    %c0_7 = arith.constant 0 : index
    %9 = vector.load %arg3[%c1, %c0_7] : memref<8x128xf32, #tpu.memory_space<vmem>>, vector<1x128xf32>
    %cst_8 = arith.constant dense<0.000000e+00> : vector<512x128xf32>
    %10 = tpu.matmul %7, %8, %cst_8 {dimension_numbers = #tpu.dot_dimension_numbers<[1], [0], [0], [1], [0, 0, 1, 1], [], []>} : vector<512x128xf32>, vector<128x128xf32>, vector<512x128xf32> -> vector<512x128xf32>
    %11 = vector.broadcast %9 : vector<1x128xf32> to vector<512x128xf32>
    %12 = arith.addf %10, %11 : vector<512x128xf32>
    %cst_9 = arith.constant 0.000000e+00 : f32
    %13 = vector.broadcast %cst_9 : f32 to vector<512x128xf32>
    %14 = arith.maximumf %12, %13 : vector<512x128xf32>
    %c256 = arith.constant 256 : index
    %c0_10 = arith.constant 0 : index
    %15 = vector.load %arg2[%c256, %c0_10] : memref<768x128xf32, #tpu.memory_space<vmem>>, vector<128x128xf32>
    %c2 = arith.constant 2 : index
    %c0_11 = arith.constant 0 : index
    %16 = vector.load %arg3[%c2, %c0_11] : memref<8x128xf32, #tpu.memory_space<vmem>>, vector<1x128xf32>
    %cst_12 = arith.constant dense<0.000000e+00> : vector<512x128xf32>
    %17 = tpu.matmul %14, %15, %cst_12 {dimension_numbers = #tpu.dot_dimension_numbers<[1], [0], [0], [1], [0, 0, 1, 1], [], []>} : vector<512x128xf32>, vector<128x128xf32>, vector<512x128xf32> -> vector<512x128xf32>
    %18 = vector.broadcast %16 : vector<1x128xf32> to vector<512x128xf32>
    %19 = arith.addf %17, %18 : vector<512x128xf32>
    %cst_13 = arith.constant 0.000000e+00 : f32
    %20 = vector.broadcast %cst_13 : f32 to vector<512x128xf32>
    %21 = arith.maximumf %19, %20 : vector<512x128xf32>
    %c384 = arith.constant 384 : index
    %c0_14 = arith.constant 0 : index
    %22 = vector.load %arg2[%c384, %c0_14] : memref<768x128xf32, #tpu.memory_space<vmem>>, vector<128x128xf32>
    %c3 = arith.constant 3 : index
    %c0_15 = arith.constant 0 : index
    %23 = vector.load %arg3[%c3, %c0_15] : memref<8x128xf32, #tpu.memory_space<vmem>>, vector<1x128xf32>
    %cst_16 = arith.constant dense<0.000000e+00> : vector<512x128xf32>
    %24 = tpu.matmul %21, %22, %cst_16 {dimension_numbers = #tpu.dot_dimension_numbers<[1], [0], [0], [1], [0, 0, 1, 1], [], []>} : vector<512x128xf32>, vector<128x128xf32>, vector<512x128xf32> -> vector<512x128xf32>
    %25 = vector.broadcast %23 : vector<1x128xf32> to vector<512x128xf32>
    %26 = arith.addf %24, %25 : vector<512x128xf32>
    %cst_17 = arith.constant 0.000000e+00 : f32
    %27 = vector.broadcast %cst_17 : f32 to vector<512x128xf32>
    %28 = arith.maximumf %26, %27 : vector<512x128xf32>
    %c512 = arith.constant 512 : index
    %c0_18 = arith.constant 0 : index
    %29 = vector.load %arg2[%c512, %c0_18] : memref<768x128xf32, #tpu.memory_space<vmem>>, vector<128x128xf32>
    %c4 = arith.constant 4 : index
    %c0_19 = arith.constant 0 : index
    %30 = vector.load %arg3[%c4, %c0_19] : memref<8x128xf32, #tpu.memory_space<vmem>>, vector<1x128xf32>
    %cst_20 = arith.constant dense<0.000000e+00> : vector<512x128xf32>
    %31 = tpu.matmul %28, %29, %cst_20 {dimension_numbers = #tpu.dot_dimension_numbers<[1], [0], [0], [1], [0, 0, 1, 1], [], []>} : vector<512x128xf32>, vector<128x128xf32>, vector<512x128xf32> -> vector<512x128xf32>
    %32 = vector.broadcast %30 : vector<1x128xf32> to vector<512x128xf32>
    %33 = arith.addf %31, %32 : vector<512x128xf32>
    %cst_21 = arith.constant 0.000000e+00 : f32
    %34 = vector.broadcast %cst_21 : f32 to vector<512x128xf32>
    %35 = arith.maximumf %33, %34 : vector<512x128xf32>
    %c640 = arith.constant 640 : index
    %c0_22 = arith.constant 0 : index
    %36 = vector.load %arg2[%c640, %c0_22] : memref<768x128xf32, #tpu.memory_space<vmem>>, vector<128x128xf32>
    %c5 = arith.constant 5 : index
    %c0_23 = arith.constant 0 : index
    %37 = vector.load %arg3[%c5, %c0_23] : memref<8x128xf32, #tpu.memory_space<vmem>>, vector<1x128xf32>
    %cst_24 = arith.constant dense<0.000000e+00> : vector<512x128xf32>
    %38 = tpu.matmul %35, %36, %cst_24 {dimension_numbers = #tpu.dot_dimension_numbers<[1], [0], [0], [1], [0, 0, 1, 1], [], []>} : vector<512x128xf32>, vector<128x128xf32>, vector<512x128xf32> -> vector<512x128xf32>
    %39 = vector.broadcast %37 : vector<1x128xf32> to vector<512x128xf32>
    %40 = arith.addf %38, %39 : vector<512x128xf32>
    %cst_25 = arith.constant 0.000000e+00 : f32
    %41 = vector.broadcast %cst_25 : f32 to vector<512x128xf32>
    %42 = arith.subf %41, %40 : vector<512x128xf32>
    %43 = math.exp %42 : vector<512x128xf32>
    %cst_26 = arith.constant 1.000000e+00 : f32
    %44 = vector.broadcast %cst_26 : f32 to vector<512x128xf32>
    %45 = arith.addf %44, %43 : vector<512x128xf32>
    %cst_27 = arith.constant 1.000000e+00 : f32
    %46 = vector.broadcast %cst_27 : f32 to vector<512x128xf32>
    %47 = arith.divf %46, %45 : vector<512x128xf32>
    %c0_28 = arith.constant 0 : index
    %c0_29 = arith.constant 0 : index
    %48 = vector.load %arg4[%c0_28, %c0_29] : memref<512x128xf32, #tpu.memory_space<vmem>>, vector<512x128xf32>
    tpu.vector_store %arg4[%c0_28, %c0_29], %47 {strides = array<i32>} : memref<512x128xf32, #tpu.memory_space<vmem>>, vector<512x128xf32>,
    return
  }
  func.func @transform_0(%arg0: i32) -> (i32, i32) {
    %c0_i32 = arith.constant 0 : i32
    %c0_i32_0 = arith.constant 0 : i32
    return %arg0, %c0_i32 : i32, i32
  }
  func.func @transform_1(%arg0: i32) -> (i32, i32) {
    %c0_i32 = arith.constant 0 : i32
    %c0_i32_0 = arith.constant 0 : i32
    %c0_i32_1 = arith.constant 0 : i32
    return %c0_i32, %c0_i32_0 : i32, i32
  }
  func.func @transform_2(%arg0: i32) -> (i32, i32) {
    %c0_i32 = arith.constant 0 : i32
    %c0_i32_0 = arith.constant 0 : i32
    %c0_i32_1 = arith.constant 0 : i32
    return %c0_i32, %c0_i32_0 : i32, i32
  }
  func.func @transform_3(%arg0: i32) -> (i32, i32) {
    %c0_i32 = arith.constant 0 : i32
    %c0_i32_0 = arith.constant 0 : i32
    return %arg0, %c0_i32 : i32, i32
  }
}

</mosaic_0001>

<llo_original>
// kernel: bank_marketing_forward.1
$region0: #{bank_marketing_forward.1}
  #allocation0 [shape = 'u32[]', space=smem, size = 0x4, offset = 0x4, fixed_abs, tag = 'smem constant byte address 0x4 - core index']
  #allocation1 [shape = 'u32[144,128]{1,0:T(1,128)}', space=vmem, size = 0x12000, scoped, tag = 'internal scratch']
  %s0 = inlined_call_operand.vmem [shape: f32[1024,128], index: 0, kind: input, shape index: {}]
  %s1 = inlined_call_operand.vmem [shape: f32[768,128], index: 1, kind: input, shape index: {}]
  %s2 = inlined_call_operand.vmem [shape: f32[8,128], index: 2, kind: input, shape index: {}]
  %s3 = inlined_call_operand.vmem [shape: f32[1024,128], index: 3, kind: output, shape index: {}]
  %s4 = sld [smem:[#allocation0]]
  $region45: #{bank_marketing_forward.1} parent=0
    _
  %s6 = ssub.s32 1, %s4
  %s7 = scalar_select 0, %s6, %s4
  loop: start=0, step=1, limit=4
  $region2: #{bank_marketing_forward.1} parent=0 // loop_pre_header
    _
  $region3: #{bank_marketing_forward.1} parent=0 // loop_header
    %s9 = sphi 0, %s13
    %p10 = scmp.ge.s32.totalorder %s9, 4
    %s19 = sphi 0, %s21
    %s22 = sphi 0, %s19
    %s23 = sphi 0, %s22
    %s39 = sphi 0, %s23
    %s43 = sphi 0, %s43
    %s45 = sphi 0, %s43
    %s46 = sphi 0, %s45
    %s60 = sphi 0, %s46
    %s64 = sphi 0, %s64
    %s66 = sphi 0, %s64
    %s67 = sphi 0, %s66
    %s81 = sphi 0, %s67
    %s87 = sphi 0, %s89
    %s90 = sphi 0, %s87
    %s91 = sphi 0, %s90
    %s107 = sphi 0, %s91
  $region4: #{bank_marketing_forward.1} parent=0 // loop_header_branch
    %12 = sbr.rel (%p10) target = $region8
  $region5: #{bank_marketing_forward.1} parent=0 // loop_body
    %s14 = ssub.s32 %s9, 1
    %s15 = ssub.s32 %s9, 2
    %s16 = sadd.s32 %s9, 1
    %s17 = ssub.s32 %s9, %s16
    %p18 = scmp.eq.s32.totalorder %s17, 0
    %s20 = sadd.s32 %s19, 1
    %s21 = scalar_select %p18, %s19, %s20
    %p24 = pneg %p18
    %p25 = scmp.eq.s32.totalorder %s9, 1
    %p26 = por %p24, %p25
    %p27 = scmp.ne.s32.totalorder %s19, %s22
    %p28 = scmp.eq.s32.totalorder %s9, 0
    %p29 = por %p27, %p28
    %p30 = scmp.ne.s32.totalorder %s19, %s22
    %p31 = scmp.eq.s32.totalorder %s14, 1
    %p32 = por %p30, %p31
    %p33 = scmp.ne.s32.totalorder %s22, %s23
    %p34 = scmp.eq.s32.totalorder %s14, 0
    %p35 = por %p33, %p34
    %p36 = scmp.ne.s32.totalorder %s22, %s23
    %p37 = scmp.eq.s32.totalorder %s15, 1
    %p38 = por %p36, %p37
    %p40 = scmp.ne.s32.totalorder %s23, %s39
    %p41 = scmp.eq.s32.totalorder %s15, 0
    %p42 = por %p40, %p41
    %s44 = sadd.s32 %s43, 1
    %p47 = scmp.eq.s32.totalorder %s9, 1
    %p48 = scmp.ne.s32.totalorder %s43, %s45
    %p49 = scmp.eq.s32.totalorder %s9, 0
    %p50 = por %p48, %p49
    %p51 = scmp.ne.s32.totalorder %s43, %s45
    %p52 = scmp.eq.s32.totalorder %s14, 1
    %p53 = por %p51, %p52
    %p54 = scmp.ne.s32.totalorder %s45, %s46
    %p55 = scmp.eq.s32.totalorder %s14, 0
    %p56 = por %p54, %p55
    %p57 = scmp.ne.s32.totalorder %s45, %s46
    %p58 = scmp.eq.s32.totalorder %s15, 1
    %p59 = por %p57, %p58
    %p61 = scmp.ne.s32.totalorder %s46, %s60
    %p62 = scmp.eq.s32.totalorder %s15, 0
    %p63 = por %p61, %p62
    %s65 = sadd.s32 %s64, 1
    %p68 = scmp.eq.s32.totalorder %s9, 1
    %p69 = scmp.ne.s32.totalorder %s64, %s66
    %p70 = scmp.eq.s32.totalorder %s9, 0
    %p71 = por %p69, %p70
    %p72 = scmp.ne.s32.totalorder %s64, %s66
    %p73 = scmp.eq.s32.totalorder %s14, 1
    %p74 = por %p72, %p73
    %p75 = scmp.ne.s32.totalorder %s66, %s67
    %p76 = scmp.eq.s32.totalorder %s14, 0
    %p77 = por %p75, %p76
    %p78 = scmp.ne.s32.totalorder %s66, %s67
    %p79 = scmp.eq.s32.totalorder %s15, 1
    %p80 = por %p78, %p79
    %p82 = scmp.ne.s32.totalorder %s67, %s81
    %p83 = scmp.eq.s32.totalorder %s15, 0
    %p84 = por %p82, %p83
    %s85 = ssub.s32 %s9, %s16
    %p86 = scmp.eq.s32.totalorder %s85, 0
    %s88 = sadd.s32 %s87, 1
    %s89 = scalar_select %p86, %s87, %s88
    %p92 = pneg %p86
    %p93 = scmp.eq.s32.totalorder %s9, 1
    %p94 = por %p92, %p93
    %p95 = scmp.ne.s32.totalorder %s87, %s90
    %p96 = scmp.eq.s32.totalorder %s9, 0
    %p97 = por %p95, %p96
    %p98 = scmp.ne.s32.totalorder %s87, %s90
    %p99 = scmp.eq.s32.totalorder %s14, 1
    %p100 = por %p98, %p99
    %p101 = scmp.ne.s32.totalorder %s90, %s91
    %p102 = scmp.eq.s32.totalorder %s14, 0
    %p103 = por %p101, %p102
    %p104 = scmp.ne.s32.totalorder %s90, %s91
    %p105 = scmp.eq.s32.totalorder %s15, 1
    %p106 = por %p104, %p105
    %p108 = scmp.ne.s32.totalorder %s91, %s107
    %p109 = scmp.eq.s32.totalorder %s15, 0
    %p110 = por %p108, %p109
    %p111 = scmp.le.s32.totalorder 1, %s9
    %p112 = scmp.lt.s32.totalorder %s9, 3
    %p113 = pnand %p111, %p112
    %p114 = pneg %p113
    // Predicated region
    $region9: #{bank_marketing_forward.1} parent=5 // pred_check
      _
    $region10: #{bank_marketing_forward.1} parent=5 // pred_check_branch
      %116 = sbr.rel (%p113) target = $region12
    $region11: #{bank_marketing_forward.1} parent=5 // pred_region
      %s117 = ssub.s32 %s9, 1
      // Predicated region
      $region13: #{bank_marketing_forward.1} parent=11 // pred_check
        %p118 = pneg %p56
      $region14: #{bank_marketing_forward.1} parent=11 // pred_check_branch
        %120 = sbr.rel (%p118) target = $region16
      $region15: #{bank_marketing_forward.1} parent=11 // pred_region
        _
      $region16: #{bank_marketing_forward.1} parent=11 // pred_fallthru
        _
      // Predicated region
      $region17: #{bank_marketing_forward.1} parent=11 // pred_check
        %p121 = pneg %p77
      $region18: #{bank_marketing_forward.1} parent=11 // pred_check_branch
        %123 = sbr.rel (%p121) target = $region20
      $region19: #{bank_marketing_forward.1} parent=11 // pred_region
        _
      $region20: #{bank_marketing_forward.1} parent=11 // pred_fallthru
        _
    $region12: #{bank_marketing_forward.1} parent=5 // pred_fallthru
      _
    %p124 = scmp.lt.s32.totalorder %s9, 2
    // Predicated region
    $region21: #{bank_marketing_forward.1} parent=5 // pred_check
      %p125 = pneg %p124
    $region22: #{bank_marketing_forward.1} parent=5 // pred_check_branch
      %127 = sbr.rel (%p125) target = $region24
    $region23: #{bank_marketing_forward.1} parent=5 // pred_region
      // Predicated region
      $region25: #{bank_marketing_forward.1} parent=23 // pred_check
        %p128 = pneg %p29
      $region26: #{bank_marketing_forward.1} parent=23 // pred_check_branch
        %130 = sbr.rel (%p128) target = $region28
      $region27: #{bank_marketing_forward.1} parent=23 // pred_region
        %s131 = smul.u32 64, %s9
        %p132 = scmp.lt.s32.totalorder %s131, 127
        %s133 = scalar_select %p132, %s131, 127
        %s134 = smul.addr %s133, 8
        %s135 = scalar_lea.vmem %s0, %s134
        %s136 = smul.u32 64, %s9
      $region28: #{bank_marketing_forward.1} parent=23 // pred_fallthru
        _
    $region24: #{bank_marketing_forward.1} parent=5 // pred_fallthru
      _
    %p137 = scmp.le.s32.totalorder 1, %s9
    %p138 = scmp.lt.s32.totalorder %s9, 3
    %p139 = pnand %p137, %p138
    %p140 = pneg %p139
    // Predicated region
    $region29: #{bank_marketing_forward.1} parent=5 // pred_check
      _
    $region30: #{bank_marketing_forward.1} parent=5 // pred_check_branch
      %142 = sbr.rel (%p139) target = $region32
    $region31: #{bank_marketing_forward.1} parent=5 // pred_region
      %s143 = ssub.s32 %s9, 1
      %s144 = smul.u32 64, %s14
      %p145 = scmp.lt.s32.totalorder %s144, 127
      %s146 = scalar_select %p145, %s144, 127
      %s147 = smul.addr %s146, 8
      %s148 = scalar_lea.vmem %s0, %s147
      %p149 = pneg %p35
      %p150 = pneg %p32
      %p151 = pneg %p56
      %p152 = pneg %p53
      %p153 = pneg %p77
      %p154 = pneg %p74
      %p155 = pneg %p103
      %p156 = pneg %p100
      %s157 = smul.u32 64, %s14
      %p158 = scmp.lt.s32.totalorder %s157, 127
      %s159 = scalar_select %p158, %s157, 127
      %s160 = smul.addr %s159, 8
      %s161 = scalar_lea.vmem %s3, %s160
      %s162 = smul.u32 64, %s14
      %p163 = scmp.lt.s32.totalorder %s162, 127
      %s164 = scalar_select %p163, %s162, 127
      %s165 = smul.addr %s164, 8
      %s166 = scalar_lea.vmem %s0, %s165
      %s167 = smul.u32 64, %s14
      %s168 = smul.u32 64, %s14
      %p169 = scmp.lt.s32.totalorder %s168, 127
      %s170 = scalar_select %p169, %s168, 127
      %s171 = smul.addr %s170, 8
      %s172 = scalar_lea.vmem %s3, %s171
      %s173 = smul.u32 64, %s14
      %v174 = vld [vmem:[%s166] sm:$0xff]
      %v175 = vld [vmem:[%s166 + $0x8] sm:$0xff]
      %v176 = vld [vmem:[%s166 + $0x10] sm:$0xff]
      %v177 = vld [vmem:[%s166 + $0x18] sm:$0xff]
      %v178 = vld [vmem:[%s166 + $0x20] sm:$0xff]
      %v179 = vld [vmem:[%s166 + $0x28] sm:$0xff]
      %v180 = vld [vmem:[%s166 + $0x30] sm:$0xff]
      %v181 = vld [vmem:[%s166 + $0x38] sm:$0xff]
      %v182 = vld [vmem:[%s166 + $0x40] sm:$0xff]
      %v183 = vld [vmem:[%s166 + $0x48] sm:$0xff]
      %v184 = vld [vmem:[%s166 + $0x50] sm:$0xff]
      %v185 = vld [vmem:[%s166 + $0x58] sm:$0xff]
      %v186 = vld [vmem:[%s166 + $0x60] sm:$0xff]
      %v187 = vld [vmem:[%s166 + $0x68] sm:$0xff]
      %v188 = vld [vmem:[%s166 + $0x70] sm:$0xff]
      %v189 = vld [vmem:[%s166 + $0x78] sm:$0xff]
      %v190 = vld [vmem:[%s166 + $0x80] sm:$0xff]
      %v191 = vld [vmem:[%s166 + $0x88] sm:$0xff]
      %v192 = vld [vmem:[%s166 + $0x90] sm:$0xff]
      %v193 = vld [vmem:[%s166 + $0x98] sm:$0xff]
      %v194 = vld [vmem:[%s166 + $0xa0] sm:$0xff]
      %v195 = vld [vmem:[%s166 + $0xa8] sm:$0xff]
      %v196 = vld [vmem:[%s166 + $0xb0] sm:$0xff]
      %v197 = vld [vmem:[%s166 + $0xb8] sm:$0xff]
      %v198 = vld [vmem:[%s166 + $0xc0] sm:$0xff]
      %v199 = vld [vmem:[%s166 + $0xc8] sm:$0xff]
      %v200 = vld [vmem:[%s166 + $0xd0] sm:$0xff]
      %v201 = vld [vmem:[%s166 + $0xd8] sm:$0xff]
      %v202 = vld [vmem:[%s166 + $0xe0] sm:$0xff]
      %v203 = vld [vmem:[%s166 + $0xe8] sm:$0xff]
      %v204 = vld [vmem:[%s166 + $0xf0] sm:$0xff]
      %v205 = vld [vmem:[%s166 + $0xf8] sm:$0xff]
      %v206 = vld [vmem:[%s166 + $0x100] sm:$0xff]
      %v207 = vld [vmem:[%s166 + $0x108] sm:$0xff]
      %v208 = vld [vmem:[%s166 + $0x110] sm:$0xff]
      %v209 = vld [vmem:[%s166 + $0x118] sm:$0xff]
      %v210 = vld [vmem:[%s166 + $0x120] sm:$0xff]
      %v211 = vld [vmem:[%s166 + $0x128] sm:$0xff]
      %v212 = vld [vmem:[%s166 + $0x130] sm:$0xff]
      %v213 = vld [vmem:[%s166 + $0x138] sm:$0xff]
      %v214 = vld [vmem:[%s166 + $0x140] sm:$0xff]
      %v215 = vld [vmem:[%s166 + $0x148] sm:$0xff]
      %v216 = vld [vmem:[%s166 + $0x150] sm:$0xff]
      %v217 = vld [vmem:[%s166 + $0x158] sm:$0xff]
      %v218 = vld [vmem:[%s166 + $0x160] sm:$0xff]
      %v219 = vld [vmem:[%s166 + $0x168] sm:$0xff]
      %v220 = vld [vmem:[%s166 + $0x170] sm:$0xff]
      %v221 = vld [vmem:[%s166 + $0x178] sm:$0xff]
      %v222 = vld [vmem:[%s166 + $0x180] sm:$0xff]
      %v223 = vld [vmem:[%s166 + $0x188] sm:$0xff]
      %v224 = vld [vmem:[%s166 + $0x190] sm:$0xff]
      %v225 = vld [vmem:[%s166 + $0x198] sm:$0xff]
      %v226 = vld [vmem:[%s166 + $0x1a0] sm:$0xff]
      %v227 = vld [vmem:[%s166 + $0x1a8] sm:$0xff]
      %v228 = vld [vmem:[%s166 + $0x1b0] sm:$0xff]
      %v229 = vld [vmem:[%s166 + $0x1b8] sm:$0xff]
      %v230 = vld [vmem:[%s166 + $0x1c0] sm:$0xff]
      %v231 = vld [vmem:[%s166 + $0x1c8] sm:$0xff]
      %v232 = vld [vmem:[%s166 + $0x1d0] sm:$0xff]
      %v233 = vld [vmem:[%s166 + $0x1d8] sm:$0xff]
      %v234 = vld [vmem:[%s166 + $0x1e0] sm:$0xff]
      %v235 = vld [vmem:[%s166 + $0x1e8] sm:$0xff]
      %v236 = vld [vmem:[%s166 + $0x1f0] sm:$0xff]
      %v237 = vld [vmem:[%s166 + $0x1f8] sm:$0xff]
      %v238 = vld [vmem:[%s1] sm:$0xff]
      %v239 = vld [vmem:[%s1 + $0x8] sm:$0xff]
      %v240 = vld [vmem:[%s1 + $0x10] sm:$0xff]
      %v241 = vld [vmem:[%s1 + $0x18] sm:$0xff]
      %v242 = vld [vmem:[%s1 + $0x20] sm:$0xff]
      %v243 = vld [vmem:[%s1 + $0x28] sm:$0xff]
      %v244 = vld [vmem:[%s1 + $0x30] sm:$0xff]
      %v245 = vld [vmem:[%s1 + $0x38] sm:$0xff]
      %v246 = vld [vmem:[%s1 + $0x40] sm:$0xff]
      %v247 = vld [vmem:[%s1 + $0x48] sm:$0xff]
      %v248 = vld [vmem:[%s1 + $0x50] sm:$0xff]
      %v249 = vld [vmem:[%s1 + $0x58] sm:$0xff]
      %v250 = vld [vmem:[%s1 + $0x60] sm:$0xff]
      %v251 = vld [vmem:[%s1 + $0x68] sm:$0xff]
      %v252 = vld [vmem:[%s1 + $0x70] sm:$0xff]
      %v253 = vld [vmem:[%s1 + $0x78] sm:$0xff]
      %v254 = vld [vmem:[%s2] sm:$0x1]
      %v255 = vlaneseq
      %v256 = vshrl.u32 %v255, 7
      %v257 = vsub.s32 0, %v256
      %v258 = vrot.slane %v254, %v257
      %259 = vmatprep.subr.mxu0 0.0
      %260 = vmatpush1.msra.mxu0 %v238
      %261 = vmatprep.subr.mxu0 0.0
      %262 = vmatpush1.msra.mxu0 %v239
      %263 = vmatprep.subr.mxu0 0.0
      %264 = vmatpush1.msra.mxu0 %v240
      %265 = vmatprep.subr.mxu0 0.0
      %266 = vmatpush1.msra.mxu0 %v241
      %267 = vmatprep.subr.mxu0 0.0
      %268 = vmatpush1.msra.mxu0 %v242
      %269 = vmatprep.subr.mxu0 0.0
      %270 = vmatpush1.msra.mxu0 %v243
      %271 = vmatprep.subr.mxu0 0.0
      %272 = vmatpush1.msra.mxu0 %v244
      %273 = vmatprep.subr.mxu0 0.0
      %274 = vmatpush1.msra.mxu0 %v245
      %275 = vmatprep.subr.mxu0 0.0
      %276 = vmatpush1.msra.mxu0 %v246
      %277 = vmatprep.subr.mxu0 0.0
      %278 = vmatpush1.msra.mxu0 %v247
      %279 = vmatprep.subr.mxu0 0.0
      %280 = vmatpush1.msra.mxu0 %v248
      %281 = vmatprep.subr.mxu0 0.0
      %282 = vmatpush1.msra.mxu0 %v249
      %283 = vmatprep.subr.mxu0 0.0
      %284 = vmatpush1.msra.mxu0 %v250
      %285 = vmatprep.subr.mxu0 0.0
      %286 = vmatpush1.msra.mxu0 %v251
      %287 = vmatprep.subr.mxu0 0.0
      %288 = vmatpush1.msra.mxu0 %v252
      %289 = vmatprep.subr.mxu0 0.0
      %290 = vmatpush1.msra.mxu0 %v253
      %291 = vmatprep.subr.mxu0 0.0
      %292 = vmatpush1.msra.mxu0 0.0
      %293 = vmatprep.subr.mxu0 0.0
      %294 = vmatpush1.msra.mxu0 0.0
      %295 = vmatprep.subr.mxu0 0.0
      %296 = vmatpush1.msra.mxu0 0.0
      %297 = vmatprep.subr.mxu0 0.0
      %298 = vmatpush1.msra.mxu0 0.0
      %299 = vmatprep.subr.mxu0 0.0
      %300 = vmatpush1.msra.mxu0 0.0
      %301 = vmatprep.subr.mxu0 0.0
      %302 = vmatpush1.msra.mxu0 0.0
      %303 = vmatprep.subr.mxu0 0.0
      %304 = vmatpush1.msra.mxu0 0.0
      %305 = vmatprep.subr.mxu0 0.0
      %306 = vmatpush1.msra.mxu0 0.0
      %307 = vmatprep.subr.mxu0 0.0
      %308 = vmatpush1.msra.mxu0 0.0
      %309 = vmatprep.subr.mxu0 0.0
      %310 = vmatpush1.msra.mxu0 0.0
      %311 = vmatprep.subr.mxu0 0.0
      %312 = vmatpush1.msra.mxu0 0.0
      %313 = vmatprep.subr.mxu0 0.0
      %314 = vmatpush1.msra.mxu0 0.0
      %315 = vmatprep.subr.mxu0 0.0
      %316 = vmatpush1.msra.mxu0 0.0
      %317 = vmatprep.subr.mxu0 0.0
      %318 = vmatpush1.msra.mxu0 0.0
      %319 = vmatprep.subr.mxu0 0.0
      %320 = vmatpush1.msra.mxu0 0.0
      %321 = vmatprep.subr.mxu0 0.0
      %322 = vmatpush1.msra.mxu0 0.0
      %323 = vmatprep.mubr.f32.mxu0 0.0
      %324 = vmatmul.mubr.f32.gmra.mrb[0].mxu0 %v174
      %v325 = vpop.f32.mrb[0].mxu0
      %v326 = vadd.f32 %v258, %v325
      %v327 = vpop.f32.mrb[0].mxu0
      %328 = vmatprep.mubr.f32.mxu0 0.0
      %329 = vmatmul.mubr.f32.gmra.mrb[0].mxu0 %v175
      %v330 = vpop.f32.mrb[0].mxu0
      %v331 = vadd.f32 %v258, %v330
      %v332 = vpop.f32.mrb[0].mxu0
      %333 = vmatprep.mubr.f32.mxu0 0.0
      %334 = vmatmul.mubr.f32.gmra.mrb[0].mxu0 %v176
      %v335 = vpop.f32.mrb[0].mxu0
      %v336 = vadd.f32 %v258, %v335
      %v337 = vpop.f32.mrb[0].mxu0
      %338 = vmatprep.mubr.f32.mxu0 0.0
      %339 = vmatmul.mubr.f32.gmra.mrb[0].mxu0 %v177
      %v340 = vpop.f32.mrb[0].mxu0
      %v341 = vadd.f32 %v258, %v340
      %v342 = vpop.f32.mrb[0].mxu0
      %343 = vmatprep.mubr.f32.mxu0 0.0
      %344 = vmatmul.mubr.f32.gmra.mrb[0].mxu0 %v178
      %v345 = vpop.f32.mrb[0].mxu0
      %v346 = vadd.f32 %v258, %v345
      %v347 = vpop.f32.mrb[0].mxu0
      %348 = vmatprep.mubr.f32.mxu0 0.0
      %349 = vmatmul.mubr.f32.gmra.mrb[0].mxu0 %v179
      %v350 = vpop.f32.mrb[0].mxu0
      %v351 = vadd.f32 %v258, %v350
      %v352 = vpop.f32.mrb[0].mxu0
      %353 = vmatprep.mubr.f32.mxu0 0.0
      %354 = vmatmul.mubr.f32.gmra.mrb[0].mxu0 %v180
      %v355 = vpop.f32.mrb[0].mxu0
      %v356 = vadd.f32 %v258, %v355
      %v357 = vpop.f32.mrb[0].mxu0
      %358 = vmatprep.mubr.f32.mxu0 0.0
      %359 = vmatmul.mubr.f32.gmra.mrb[0].mxu0 %v181
      %v360 = vpop.f32.mrb[0].mxu0
      %v361 = vadd.f32 %v258, %v360
      %v362 = vpop.f32.mrb[0].mxu0
      %363 = vmatprep.mubr.f32.mxu0 0.0
      %364 = vmatmul.mubr.f32.gmra.mrb[0].mxu0 %v182
      %v365 = vpop.f32.mrb[0].mxu0
      %v366 = vadd.f32 %v258, %v365
      %v367 = vpop.f32.mrb[0].mxu0
      %368 = vmatprep.mubr.f32.mxu0 0.0
      %369 = vmatmul.mubr.f32.gmra.mrb[0].mxu0 %v183
      %v370 = vpop.f32.mrb[0].mxu0
      %v371 = vadd.f32 %v258, %v370
      %v372 = vpop.f32.mrb[0].mxu0
      %373 = vmatprep.mubr.f32.mxu0 0.0
      %374 = vmatmul.mubr.f32.gmra.mrb[0].mxu0 %v184
      %v375 = vpop.f32.mrb[0].mxu0
      %v376 = vadd.f32 %v258, %v375
      %v377 = vpop.f32.mrb[0].mxu0
      %378 = vmatprep.mubr.f32.mxu0 0.0
      %379 = vmatmul.mubr.f32.gmra.mrb[0].mxu0 %v185
      %v380 = vpop.f32.mrb[0].mxu0
      %v381 = vadd.f32 %v258, %v380
      %v382 = vpop.f32.mrb[0].mxu0
      %383 = vmatprep.mubr.f32.mxu0 0.0
      %384 = vmatmul.mubr.f32.gmra.mrb[0].mxu0 %v186
      %v385 = vpop.f32.mrb[0].mxu0
      %v386 = vadd.f32 %v258, %v385
      %v387 = vpop.f32.mrb[0].mxu0
      %388 = vmatprep.mubr.f32.mxu0 0.0
      %389 = vmatmul.mubr.f32.gmra.mrb[0].mxu0 %v187
      %v390 = vpop.f32.mrb[0].mxu0
      %v391 = vadd.f32 %v258, %v390
      %v392 = vpop.f32.mrb[0].mxu0
      %393 = vmatprep.mubr.f32.mxu0 0.0
      %394 = vmatmul.mubr.f32.gmra.mrb[0].mxu0 %v188
      %v395 = vpop.f32.mrb[0].mxu0
      %v396 = vadd.f32 %v258, %v395
      %v397 = vpop.f32.mrb[0].mxu0
      %398 = vmatprep.mubr.f32.mxu0 0.0
      %399 = vmatmul.mubr.f32.gmra.mrb[0].mxu0 %v189
      %v400 = vpop.f32.mrb[0].mxu0
      %v401 = vadd.f32 %v258, %v400
      %v402 = vpop.f32.mrb[0].mxu0
      %403 = vmatprep.mubr.f32.mxu0 0.0
      %404 = vmatmul.mubr.f32.gmra.mrb[0].mxu0 %v190
      %v405 = vpop.f32.mrb[0].mxu0
      %v406 = vadd.f32 %v258, %v405
      %v407 = vpop.f32.mrb[0].mxu0
      %408 = vmatprep.mubr.f32.mxu0 0.0
      %409 = vmatmul.mubr.f32.gmra.mrb[0].mxu0 %v191
      %v410 = vpop.f32.mrb[0].mxu0
      %v411 = vadd.f32 %v258, %v410
      %v412 = vpop.f32.mrb[0].mxu0
      %413 = vmatprep.mubr.f32.mxu0 0.0
      %414 = vmatmul.mubr.f32.gmra.mrb[0].mxu0 %v192
      %v415 = vpop.f32.mrb[0].mxu0
      %v416 = vadd.f32 %v258, %v415
      %v417 = vpop.f32.mrb[0].mxu0
      %418 = vmatprep.mubr.f32.mxu0 0.0
      %419 = vmatmul.mubr.f32.gmra.mrb[0].mxu0 %v193
      %v420 = vpop.f32.mrb[0].mxu0
      %v421 = vadd.f32 %v258, %v420
      %v422 = vpop.f32.mrb[0].mxu0
      %423 = vmatprep.mubr.f32.mxu0 0.0
      %424 = vmatmul.mubr.f32.gmra.mrb[0].mxu0 %v194
      %v425 = vpop.f32.mrb[0].mxu0
      %v426 = vadd.f32 %v258, %v425
      %v427 = vpop.f32.mrb[0].mxu0
      %428 = vmatprep.mubr.f32.mxu0 0.0
      %429 = vmatmul.mubr.f32.gmra.mrb[0].mxu0 %v195
      %v430 = vpop.f32.mrb[0].mxu0
      %v431 = vadd.f32 %v258, %v430
      %v432 = vpop.f32.mrb[0].mxu0
      %433 = vmatprep.mubr.f32.mxu0 0.0
      %434 = vmatmul.mubr.f32.gmra.mrb[0].mxu0 %v196
      %v435 = vpop.f32.mrb[0].mxu0
      %v436 = vadd.f32 %v258, %v435
      %v437 = vpop.f32.mrb[0].mxu0
      %438 = vmatprep.mubr.f32.mxu0 0.0
      %439 = vmatmul.mubr.f32.gmra.mrb[0].mxu0 %v197
      %v440 = vpop.f32.mrb[0].mxu0
      %v441 = vadd.f32 %v258, %v440
      %v442 = vpop.f32.mrb[0].mxu0
      %443 = vmatprep.mubr.f32.mxu0 0.0
      %444 = vmatmul.mubr.f32.gmra.mrb[0].mxu0 %v198
      %v445 = vpop.f32.mrb[0].mxu0
      %v446 = vadd.f32 %v258, %v445
      %v447 = vpop.f32.mrb[0].mxu0
      %448 = vmatprep.mubr.f32.mxu0 0.0
      %449 = vmatmul.mubr.f32.gmra.mrb[0].mxu0 %v199
      %v450 = vpop.f32.mrb[0].mxu0
      %v451 = vadd.f32 %v258, %v450
      %v452 = vpop.f32.mrb[0].mxu0
      %453 = vmatprep.mubr.f32.mxu0 0.0
      %454 = vmatmul.mubr.f32.gmra.mrb[0].mxu0 %v200
      %v455 = vpop.f32.mrb[0].mxu0
      %v456 = vadd.f32 %v258, %v455
      %v457 = vpop.f32.mrb[0].mxu0
      %458 = vmatprep.mubr.f32.mxu0 0.0
      %459 = vmatmul.mubr.f32.gmra.mrb[0].mxu0 %v201
      %v460 = vpop.f32.mrb[0].mxu0
      %v461 = vadd.f32 %v258, %v460
      %v462 = vpop.f32.mrb[0].mxu0
      %463 = vmatprep.mubr.f32.mxu0 0.0
      %464 = vmatmul.mubr.f32.gmra.mrb[0].mxu0 %v202
      %v465 = vpop.f32.mrb[0].mxu0
      %v466 = vadd.f32 %v258, %v465
      %v467 = vpop.f32.mrb[0].mxu0
      %468 = vmatprep.mubr.f32.mxu0 0.0
      %469 = vmatmul.mubr.f32.gmra.mrb[0].mxu0 %v203
      %v470 = vpop.f32.mrb[0].mxu0
      %v471 = vadd.f32 %v258, %v470
      %v472 = vpop.f32.mrb[0].mxu0
      %473 = vmatprep.mubr.f32.mxu0 0.0
      %474 = vmatmul.mubr.f32.gmra.mrb[0].mxu0 %v204
      %v475 = vpop.f32.mrb[0].mxu0
      %v476 = vadd.f32 %v258, %v475
      %v477 = vpop.f32.mrb[0].mxu0
      %478 = vmatprep.mubr.f32.mxu0 0.0
      %479 = vmatmul.mubr.f32.gmra.mrb[0].mxu0 %v205
      %v480 = vpop.f32.mrb[0].mxu0
      %v481 = vadd.f32 %v258, %v480
      %v482 = vpop.f32.mrb[0].mxu0
      %483 = vmatprep.mubr.f32.mxu0 0.0
      %484 = vmatmul.mubr.f32.gmra.mrb[0].mxu0 %v206
      %v485 = vpop.f32.mrb[0].mxu0
      %v486 = vadd.f32 %v258, %v485
      %v487 = vpop.f32.mrb[0].mxu0
      %488 = vmatprep.mubr.f32.mxu0 0.0
      %489 = vmatmul.mubr.f32.gmra.mrb[0].mxu0 %v207
      %v490 = vpop.f32.mrb[0].mxu0
      %v491 = vadd.f32 %v258, %v490
      %v492 = vpop.f32.mrb[0].mxu0
      %493 = vmatprep.mubr.f32.mxu0 0.0
      %494 = vmatmul.mubr.f32.gmra.mrb[0].mxu0 %v208
      %v495 = vpop.f32.mrb[0].mxu0
      %v496 = vadd.f32 %v258, %v495
      %v497 = vpop.f32.mrb[0].mxu0
      %498 = vmatprep.mubr.f32.mxu0 0.0
      %499 = vmatmul.mubr.f32.gmra.mrb[0].mxu0 %v209
      %v500 = vpop.f32.mrb[0].mxu0
      %v501 = vadd.f32 %v258, %v500
      %v502 = vpop.f32.mrb[0].mxu0
      %503 = vmatprep.mubr.f32.mxu0 0.0
      %504 = vmatmul.mubr.f32.gmra.mrb[0].mxu0 %v210
      %v505 = vpop.f32.mrb[0].mxu0
      %v506 = vadd.f32 %v258, %v505
      %v507 = vpop.f32.mrb[0].mxu0
      %508 = vmatprep.mubr.f32.mxu0 0.0
      %509 = vmatmul.mubr.f32.gmra.mrb[0].mxu0 %v211
      %v510 = vpop.f32.mrb[0].mxu0
      %v511 = vadd.f32 %v258, %v510
      %v512 = vpop.f32.mrb[0].mxu0
      %513 = vmatprep.mubr.f32.mxu0 0.0
      %514 = vmatmul.mubr.f32.gmra.mrb[0].mxu0 %v212
      %v515 = vpop.f32.mrb[0].mxu0
      %v516 = vadd.f32 %v258, %v515
      %v517 = vpop.f32.mrb[0].mxu0
      %518 = vmatprep.mubr.f32.mxu0 0.0
      %519 = vmatmul.mubr.f32.gmra.mrb[0].mxu0 %v213
      %v520 = vpop.f32.mrb[0].mxu0
      %v521 = vadd.f32 %v258, %v520
      %v522 = vpop.f32.mrb[0].mxu0
      %523 = vmatprep.mubr.f32.mxu0 0.0
      %524 = vmatmul.mubr.f32.gmra.mrb[0].mxu0 %v214
      %v525 = vpop.f32.mrb[0].mxu0
      %v526 = vadd.f32 %v258, %v525
      %v527 = vpop.f32.mrb[0].mxu0
      %528 = vmatprep.mubr.f32.mxu0 0.0
      %529 = vmatmul.mubr.f32.gmra.mrb[0].mxu0 %v215
      %v530 = vpop.f32.mrb[0].mxu0
      %v531 = vadd.f32 %v258, %v530
      %v532 = vpop.f32.mrb[0].mxu0
      %533 = vmatprep.mubr.f32.mxu0 0.0
      %534 = vmatmul.mubr.f32.gmra.mrb[0].mxu0 %v216
      %v535 = vpop.f32.mrb[0].mxu0
      %v536 = vadd.f32 %v258, %v535
      %v537 = vpop.f32.mrb[0].mxu0
      %538 = vmatprep.mubr.f32.mxu0 0.0
      %539 = vmatmul.mubr.f32.gmra.mrb[0].mxu0 %v217
      %v540 = vpop.f32.mrb[0].mxu0
      %v541 = vadd.f32 %v258, %v540
      %v542 = vpop.f32.mrb[0].mxu0
      %543 = vmatprep.mubr.f32.mxu0 0.0
      %544 = vmatmul.mubr.f32.gmra.mrb[0].mxu0 %v218
      %v545 = vpop.f32.mrb[0].mxu0
      %v546 = vadd.f32 %v258, %v545
      %v547 = vpop.f32.mrb[0].mxu0
      %548 = vmatprep.mubr.f32.mxu0 0.0
      %549 = vmatmul.mubr.f32.gmra.mrb[0].mxu0 %v219
      %v550 = vpop.f32.mrb[0].mxu0
      %v551 = vadd.f32 %v258, %v550
      %v552 = vpop.f32.mrb[0].mxu0
      %553 = vmatprep.mubr.f32.mxu0 0.0
      %554 = vmatmul.mubr.f32.gmra.mrb[0].mxu0 %v220
      %v555 = vpop.f32.mrb[0].mxu0
      %v556 = vadd.f32 %v258, %v555
      %v557 = vpop.f32.mrb[0].mxu0
      %558 = vmatprep.mubr.f32.mxu0 0.0
      %559 = vmatmul.mubr.f32.gmra.mrb[0].mxu0 %v221
      %v560 = vpop.f32.mrb[0].mxu0
      %v561 = vadd.f32 %v258, %v560
      %v562 = vpop.f32.mrb[0].mxu0
      %563 = vmatprep.mubr.f32.mxu0 0.0
      %564 = vmatmul.mubr.f32.gmra.mrb[0].mxu0 %v222
      %v565 = vpop.f32.mrb[0].mxu0
      %v566 = vadd.f32 %v258, %v565
      %v567 = vpop.f32.mrb[0].mxu0
      %568 = vmatprep.mubr.f32.mxu0 0.0
      %569 = vmatmul.mubr.f32.gmra.mrb[0].mxu0 %v223
      %v570 = vpop.f32.mrb[0].mxu0
      %v571 = vadd.f32 %v258, %v570
      %v572 = vpop.f32.mrb[0].mxu0
      %573 = vmatprep.mubr.f32.mxu0 0.0
      %574 = vmatmul.mubr.f32.gmra.mrb[0].mxu0 %v224
      %v575 = vpop.f32.mrb[0].mxu0
      %v576 = vadd.f32 %v258, %v575
      %v577 = vpop.f32.mrb[0].mxu0
      %578 = vmatprep.mubr.f32.mxu0 0.0
      %579 = vmatmul.mubr.f32.gmra.mrb[0].mxu0 %v225
      %v580 = vpop.f32.mrb[0].mxu0
      %v581 = vadd.f32 %v258, %v580
      %v582 = vpop.f32.mrb[0].mxu0
      %583 = vmatprep.mubr.f32.mxu0 0.0
      %584 = vmatmul.mubr.f32.gmra.mrb[0].mxu0 %v226
      %v585 = vpop.f32.mrb[0].mxu0
      %v586 = vadd.f32 %v258, %v585
      %v587 = vpop.f32.mrb[0].mxu0
      %588 = vmatprep.mubr.f32.mxu0 0.0
      %589 = vmatmul.mubr.f32.gmra.mrb[0].mxu0 %v227
      %v590 = vpop.f32.mrb[0].mxu0
      %v591 = vadd.f32 %v258, %v590
      %v592 = vpop.f32.mrb[0].mxu0
      %593 = vmatprep.mubr.f32.mxu0 0.0
      %594 = vmatmul.mubr.f32.gmra.mrb[0].mxu0 %v228
      %v595 = vpop.f32.mrb[0].mxu0
      %v596 = vadd.f32 %v258, %v595
      %v597 = vpop.f32.mrb[0].mxu0
      %598 = vmatprep.mubr.f32.mxu0 0.0
      %599 = vmatmul.mubr.f32.gmra.mrb[0].mxu0 %v229
      %v600 = vpop.f32.mrb[0].mxu0
      %v601 = vadd.f32 %v258, %v600
      %v602 = vpop.f32.mrb[0].mxu0
      %603 = vmatprep.mubr.f32.mxu0 0.0
      %604 = vmatmul.mubr.f32.gmra.mrb[0].mxu0 %v230
      %v605 = vpop.f32.mrb[0].mxu0
      %v606 = vadd.f32 %v258, %v605
      %v607 = vpop.f32.mrb[0].mxu0
      %608 = vmatprep.mubr.f32.mxu0 0.0
      %609 = vmatmul.mubr.f32.gmra.mrb[0].mxu0 %v231
      %v610 = vpop.f32.mrb[0].mxu0
      %v611 = vadd.f32 %v258, %v610
      %v612 = vpop.f32.mrb[0].mxu0
      %613 = vmatprep.mubr.f32.mxu0 0.0
      %614 = vmatmul.mubr.f32.gmra.mrb[0].mxu0 %v232
      %v615 = vpop.f32.mrb[0].mxu0
      %v616 = vadd.f32 %v258, %v615
      %v617 = vpop.f32.mrb[0].mxu0
      %618 = vmatprep.mubr.f32.mxu0 0.0
      %619 = vmatmul.mubr.f32.gmra.mrb[0].mxu0 %v233
      %v620 = vpop.f32.mrb[0].mxu0
      %v621 = vadd.f32 %v258, %v620
      %v622 = vpop.f32.mrb[0].mxu0
      %623 = vmatprep.mubr.f32.mxu0 0.0
      %624 = vmatmul.mubr.f32.gmra.mrb[0].mxu0 %v234
      %v625 = vpop.f32.mrb[0].mxu0
      %v626 = vadd.f32 %v258, %v625
      %v627 = vpop.f32.mrb[0].mxu0
      %628 = vmatprep.mubr.f32.mxu0 0.0
      %629 = vmatmul.mubr.f32.gmra.mrb[0].mxu0 %v235
      %v630 = vpop.f32.mrb[0].mxu0
      %v631 = vadd.f32 %v258, %v630
      %v632 = vpop.f32.mrb[0].mxu0
      %633 = vmatprep.mubr.f32.mxu0 0.0
      %634 = vmatmul.mubr.f32.gmra.mrb[0].mxu0 %v236
      %v635 = vpop.f32.mrb[0].mxu0
      %v636 = vadd.f32 %v258, %v635
      %v637 = vpop.f32.mrb[0].mxu0
      %638 = vmatprep.mubr.f32.mxu0 0.0
      %639 = vmatmul.mubr.f32.gmra.mrb[0].mxu0 %v237
      %v640 = vpop.f32.mrb[0].mxu0
      %v641 = vadd.f32 %v258, %v640
      %v642 = vpop.f32.mrb[0].mxu0
      %643 = vdwg.mxu0
      %v644 = vmax.f32 %v326, 0.0
      %v645 = vmax.f32 %v331, 0.0
      %v646 = vmax.f32 %v336, 0.0
      %v647 = vmax.f32 %v341, 0.0
      %v648 = vmax.f32 %v346, 0.0
      %v649 = vmax.f32 %v351, 0.0
      %v650 = vmax.f32 %v356, 0.0
      %v651 = vmax.f32 %v361, 0.0
      %v652 = vmax.f32 %v366, 0.0
      %v653 = vmax.f32 %v371, 0.0
      %v654 = vmax.f32 %v376, 0.0
      %v655 = vmax.f32 %v381, 0.0
      %v656 = vmax.f32 %v386, 0.0
      %v657 = vmax.f32 %v391, 0.0
      %v658 = vmax.f32 %v396, 0.0
      %v659 = vmax.f32 %v401, 0.0
      %v660 = vmax.f32 %v406, 0.0
      %v661 = vmax.f32 %v411, 0.0
      %v662 = vmax.f32 %v416, 0.0
      %v663 = vmax.f32 %v421, 0.0
      %v664 = vmax.f32 %v426, 0.0
      %v665 = vmax.f32 %v431, 0.0
      %v666 = vmax.f32 %v436, 0.0
      %v667 = vmax.f32 %v441, 0.0
      %v668 = vmax.f32 %v446, 0.0
      %v669 = vmax.f32 %v451, 0.0
      %v670 = vmax.f32 %v456, 0.0
      %v671 = vmax.f32 %v461, 0.0
      %v672 = vmax.f32 %v466, 0.0
      %v673 = vmax.f32 %v471, 0.0
      %v674 = vmax.f32 %v476, 0.0
      %v675 = vmax.f32 %v481, 0.0
      %v676 = vmax.f32 %v486, 0.0
      %v677 = vmax.f32 %v491, 0.0
      %v678 = vmax.f32 %v496, 0.0
      %v679 = vmax.f32 %v501, 0.0
      %v680 = vmax.f32 %v506, 0.0
      %v681 = vmax.f32 %v511, 0.0
      %v682 = vmax.f32 %v516, 0.0
      %v683 = vmax.f32 %v521, 0.0
      %v684 = vmax.f32 %v526, 0.0
      %v685 = vmax.f32 %v531, 0.0
      %v686 = vmax.f32 %v536, 0.0
      %v687 = vmax.f32 %v541, 0.0
      %v688 = vmax.f32 %v546, 0.0
      %v689 = vmax.f32 %v551, 0.0
      %v690 = vmax.f32 %v556, 0.0
      %v691 = vmax.f32 %v561, 0.0
      %v692 = vmax.f32 %v566, 0.0
      %v693 = vmax.f32 %v571, 0.0
      %v694 = vmax.f32 %v576, 0.0
      %v695 = vmax.f32 %v581, 0.0
      %v696 = vmax.f32 %v586, 0.0
      %v697 = vmax.f32 %v591, 0.0
      %v698 = vmax.f32 %v596, 0.0
      %v699 = vmax.f32 %v601, 0.0
      %v700 = vmax.f32 %v606, 0.0
      %v701 = vmax.f32 %v611, 0.0
      %v702 = vmax.f32 %v616, 0.0
      %v703 = vmax.f32 %v621, 0.0
      %v704 = vmax.f32 %v626, 0.0
      %v705 = vmax.f32 %v631, 0.0
      %v706 = vmax.f32 %v636, 0.0
      %v707 = vmax.f32 %v641, 0.0
      %v708 = vld [vmem:[%s1 + $0x80] sm:$0xff]
      %v709 = vld [vmem:[%s1 + $0x88] sm:$0xff]
      %v710 = vld [vmem:[%s1 + $0x90] sm:$0xff]
      %v711 = vld [vmem:[%s1 + $0x98] sm:$0xff]
      %v712 = vld [vmem:[%s1 + $0xa0] sm:$0xff]
      %v713 = vld [vmem:[%s1 + $0xa8] sm:$0xff]
      %v714 = vld [vmem:[%s1 + $0xb0] sm:$0xff]
      %v715 = vld [vmem:[%s1 + $0xb8] sm:$0xff]
      %v716 = vld [vmem:[%s1 + $0xc0] sm:$0xff]
      %v717 = vld [vmem:[%s1 + $0xc8] sm:$0xff]
      %v718 = vld [vmem:[%s1 + $0xd0] sm:$0xff]
      %v719 = vld [vmem:[%s1 + $0xd8] sm:$0xff]
      %v720 = vld [vmem:[%s1 + $0xe0] sm:$0xff]
      %v721 = vld [vmem:[%s1 + $0xe8] sm:$0xff]
      %v722 = vld [vmem:[%s1 + $0xf0] sm:$0xff]
      %v723 = vld [vmem:[%s1 + $0xf8] sm:$0xff]
      %v724 = vld [vmem:[%s2 + $0x1] sm:$0x1]
      %v725 = vlaneseq
      %v726 = vshrl.u32 %v725, 7
      %v727 = vsub.s32 0, %v726
      %v728 = vrot.slane %v724, %v727
      %729 = vmatprep.subr.mxu0 0.0
      %730 = vmatpush1.msra.mxu0 %v708
      %731 = vmatprep.subr.mxu0 0.0
      %732 = vmatpush1.msra.mxu0 %v709
      %733 = vmatprep.subr.mxu0 0.0
      %734 = vmatpush1.msra.mxu0 %v710
      %735 = vmatprep.subr.mxu0 0.0
      %736 = vmatpush1.msra.mxu0 %v711
      %737 = vmatprep.subr.mxu0 0.0
      %738 = vmatpush1.msra.mxu0 %v712
      %739 = vmatprep.subr.mxu0 0.0
      %740 = vmatpush1.msra.mxu0 %v713
      %741 = vmatprep.subr.mxu0 0.0
      %742 = vmatpush1.msra.mxu0 %v714
      %743 = vmatprep.subr.mxu0 0.0
      %744 = vmatpush1.msra.mxu0 %v715
      %745 = vmatprep.subr.mxu0 0.0
      %746 = vmatpush1.msra.mxu0 %v716
      %747 = vmatprep.subr.mxu0 0.0
      %748 = vmatpush1.msra.mxu0 %v717
      %749 = vmatprep.subr.mxu0 0.0
      %750 = vmatpush1.msra.mxu0 %v718
      %751 = vmatprep.subr.mxu0 0.0
      %752 = vmatpush1.msra.mxu0 %v719
      %753 = vmatprep.subr.mxu0 0.0
      %754 = vmatpush1.msra.mxu0 %v720
      %755 = vmatprep.subr.mxu0 0.0
      %756 = vmatpush1.msra.mxu0 %v721
      %757 = vmatprep.subr.mxu0 0.0
      %758 = vmatpush1.msra.mxu0 %v722
      %759 = vmatprep.subr.mxu0 0.0
      %760 = vmatpush1.msra.mxu0 %v723
      %761 = vmatprep.subr.mxu0 0.0
      %762 = vmatpush1.msra.mxu0 0.0
      %763 = vmatprep.subr.mxu0 0.0
      %764 = vmatpush1.msra.mxu0 0.0
      %765 = vmatprep.subr.mxu0 0.0
      %766 = vmatpush1.msra.mxu0 0.0
      %767 = vmatprep.subr.mxu0 0.0
      %768 = vmatpush1.msra.mxu0 0.0
      %769 = vmatprep.subr.mxu0 0.0
      %770 = vmatpush1.msra.mxu0 0.0
      %771 = vmatprep.subr.mxu0 0.0
      %772 = vmatpush1.msra.mxu0 0.0
      %773 = vmatprep.subr.mxu0 0.0
      %774 = vmatpush1.msra.mxu0 0.0
      %775 = vmatprep.subr.mxu0 0.0
      %776 = vmatpush1.msra.mxu0 0.0
      %777 = vmatprep.subr.mxu0 0.0
      %778 = vmatpush1.msra.mxu0 0.0
      %779 = vmatprep.subr.mxu0 0.0
      %780 = vmatpush1.msra.mxu0 0.0
      %781 = vmatprep.subr.mxu0 0.0
      %782 = vmatpush1.msra.mxu0 0.0
      %783 = vmatprep.subr.mxu0 0.0
      %784 = vmatpush1.msra.mxu0 0.0
      %785 = vmatprep.subr.mxu0 0.0
      %786 = vmatpush1.msra.mxu0 0.0
      %787 = vmatprep.subr.mxu0 0.0
      %788 = vmatpush1.msra.mxu0 0.0
      %789 = vmatprep.subr.mxu0 0.0
      %790 = vmatpush1.msra.mxu0 0.0
      %791 = vmatprep.subr.mxu0 0.0
      %792 = vmatpush1.msra.mxu0 0.0
      %793 = vmatprep.mubr.f32.mxu0 0.0
      %794 = vmatmul.mubr.f32.gmra.mrb[0].mxu0 %v644
      %v795 = vpop.f32.mrb[0].mxu0
      %v796 = vadd.f32 %v728, %v795
      %v797 = vpop.f32.mrb[0].mxu0
      %798 = vmatprep.mubr.f32.mxu0 0.0
      %799 = vmatmul.mubr.f32.gmra.mrb[0].mxu0 %v645
      %v800 = vpop.f32.mrb[0].mxu0
      %v801 = vadd.f32 %v728, %v800
      %v802 = vpop.f32.mrb[0].mxu0
      %803 = vmatprep.mubr.f32.mxu0 0.0
      %804 = vmatmul.mubr.f32.gmra.mrb[0].mxu0 %v646
      %v805 = vpop.f32.mrb[0].mxu0
      %v806 = vadd.f32 %v728, %v805
      %v807 = vpop.f32.mrb[0].mxu0
      %808 = vmatprep.mubr.f32.mxu0 0.0
      %809 = vmatmul.mubr.f32.gmra.mrb[0].mxu0 %v647
      %v810 = vpop.f32.mrb[0].mxu0
      %v811 = vadd.f32 %v728, %v810
      %v812 = vpop.f32.mrb[0].mxu0
      %813 = vmatprep.mubr.f32.mxu0 0.0
      %814 = vmatmul.mubr.f32.gmra.mrb[0].mxu0 %v648
      %v815 = vpop.f32.mrb[0].mxu0
      %v816 = vadd.f32 %v728, %v815
      %v817 = vpop.f32.mrb[0].mxu0
      %818 = vmatprep.mubr.f32.mxu0 0.0
      %819 = vmatmul.mubr.f32.gmra.mrb[0].mxu0 %v649
      %v820 = vpop.f32.mrb[0].mxu0
      %v821 = vadd.f32 %v728, %v820
      %v822 = vpop.f32.mrb[0].mxu0
      %823 = vmatprep.mubr.f32.mxu0 0.0
      %824 = vmatmul.mubr.f32.gmra.mrb[0].mxu0 %v650
      %v825 = vpop.f32.mrb[0].mxu0
      %v826 = vadd.f32 %v728, %v825
      %v827 = vpop.f32.mrb[0].mxu0
      %828 = vmatprep.mubr.f32.mxu0 0.0
      %829 = vmatmul.mubr.f32.gmra.mrb[0].mxu0 %v651
      %v830 = vpop.f32.mrb[0].mxu0
      %v831 = vadd.f32 %v728, %v830
      %v832 = vpop.f32.mrb[0].mxu0
      %833 = vmatprep.mubr.f32.mxu0 0.0
      %834 = vmatmul.mubr.f32.gmra.mrb[0].mxu0 %v652
      %v835 = vpop.f32.mrb[0].mxu0
      %v836 = vadd.f32 %v728, %v835
      %v837 = vpop.f32.mrb[0].mxu0
      %838 = vmatprep.mubr.f32.mxu0 0.0
      %839 = vmatmul.mubr.f32.gmra.mrb[0].mxu0 %v653
      %v840 = vpop.f32.mrb[0].mxu0
      %v841 = vadd.f32 %v728, %v840
      %v842 = vpop.f32.mrb[0].mxu0
      %843 = vmatprep.mubr.f32.mxu0 0.0
      %844 = vmatmul.mubr.f32.gmra.mrb[0].mxu0 %v654
      %v845 = vpop.f32.mrb[0].mxu0
      %v846 = vadd.f32 %v728, %v845
      %v847 = vpop.f32.mrb[0].mxu0
      %848 = vmatprep.mubr.f32.mxu0 0.0
      %849 = vmatmul.mubr.f32.gmra.mrb[0].mxu0 %v655
      %v850 = vpop.f32.mrb[0].mxu0
      %v851 = vadd.f32 %v728, %v850
      %v852 = vpop.f32.mrb[0].mxu0
      %853 = vmatprep.mubr.f32.mxu0 0.0
      %854 = vmatmul.mubr.f32.gmra.mrb[0].mxu0 %v656
      %v855 = vpop.f32.mrb[0].mxu0
      %v856 = vadd.f32 %v728, %v855
      %v857 = vpop.f32.mrb[0].mxu0
      %858 = vmatprep.mubr.f32.mxu0 0.0
      %859 = vmatmul.mubr.f32.gmra.mrb[0].mxu0 %v657
      %v860 = vpop.f32.mrb[0].mxu0
      %v861 = vadd.f32 %v728, %v860
      %v862 = vpop.f32.mrb[0].mxu0
      %863 = vmatprep.mubr.f32.mxu0 0.0
      %864 = vmatmul.mubr.f32.gmra.mrb[0].mxu0 %v658
      %v865 = vpop.f32.mrb[0].mxu0
      %v866 = vadd.f32 %v728, %v865
      %v867 = vpop.f32.mrb[0].mxu0
      %868 = vmatprep.mubr.f32.mxu0 0.0
      %869 = vmatmul.mubr.f32.gmra.mrb[0].mxu0 %v659
      %v870 = vpop.f32.mrb[0].mxu0
      %v871 = vadd.f32 %v728, %v870
      %v872 = vpop.f32.mrb[0].mxu0
      %873 = vmatprep.mubr.f32.mxu0 0.0
      %874 = vmatmul.mubr.f32.gmra.mrb[0].mxu0 %v660
      %v875 = vpop.f32.mrb[0].mxu0
      %v876 = vadd.f32 %v728, %v875
      %v877 = vpop.f32.mrb[0].mxu0
      %878 = vmatprep.mubr.f32.mxu0 0.0
      %879 = vmatmul.mubr.f32.gmra.mrb[0].mxu0 %v661
      %v880 = vpop.f32.mrb[0].mxu0
      %v881 = vadd.f32 %v728, %v880
      %v882 = vpop.f32.mrb[0].mxu0
      %883 = vmatprep.mubr.f32.mxu0 0.0
      %884 = vmatmul.mubr.f32.gmra.mrb[0].mxu0 %v662
      %v885 = vpop.f32.mrb[0].mxu0
      %v886 = vadd.f32 %v728, %v885
      %v887 = vpop.f32.mrb[0].mxu0
      %888 = vmatprep.mubr.f32.mxu0 0.0
      %889 = vmatmul.mubr.f32.gmra.mrb[0].mxu0 %v663
      %v890 = vpop.f32.mrb[0].mxu0
      %v891 = vadd.f32 %v728, %v890
      %v892 = vpop.f32.mrb[0].mxu0
      %893 = vmatprep.mubr.f32.mxu0 0.0
      %894 = vmatmul.mubr.f32.gmra.mrb[0].mxu0 %v664
      %v895 = vpop.f32.mrb[0].mxu0
      %v896 = vadd.f32 %v728, %v895
      %v897 = vpop.f32.mrb[0].mxu0
      %898 = vmatprep.mubr.f32.mxu0 0.0
      %899 = vmatmul.mubr.f32.gmra.mrb[0].mxu0 %v665
      %v900 = vpop.f32.mrb[0].mxu0
      %v901 = vadd.f32 %v728, %v900
      %v902 = vpop.f32.mrb[0].mxu0
      %903 = vmatprep.mubr.f32.mxu0 0.0
      %904 = vmatmul.mubr.f32.gmra.mrb[0].mxu0 %v666
      %v905 = vpop.f32.mrb[0].mxu0
      %v906 = vadd.f32 %v728, %v905
      %v907 = vpop.f32.mrb[0].mxu0
      %908 = vmatprep.mubr.f32.mxu0 0.0
      %909 = vmatmul.mubr.f32.gmra.mrb[0].mxu0 %v667
      %v910 = vpop.f32.mrb[0].mxu0
      %v911 = vadd.f32 %v728, %v910
      %v912 = vpop.f32.mrb[0].mxu0
      %913 = vmatprep.mubr.f32.mxu0 0.0
      %914 = vmatmul.mubr.f32.gmra.mrb[0].mxu0 %v668
      %v915 = vpop.f32.mrb[0].mxu0
      %v916 = vadd.f32 %v728, %v915
      %v917 = vpop.f32.mrb[0].mxu0
      %918 = vmatprep.mubr.f32.mxu0 0.0
      %919 = vmatmul.mubr.f32.gmra.mrb[0].mxu0 %v669
      %v920 = vpop.f32.mrb[0].mxu0
      %v921 = vadd.f32 %v728, %v920
      %v922 = vpop.f32.mrb[0].mxu0
      %923 = vmatprep.mubr.f32.mxu0 0.0
      %924 = vmatmul.mubr.f32.gmra.mrb[0].mxu0 %v670
      %v925 = vpop.f32.mrb[0].mxu0
      %v926 = vadd.f32 %v728, %v925
      %v927 = vpop.f32.mrb[0].mxu0
      %928 = vmatprep.mubr.f32.mxu0 0.0
      %929 = vmatmul.mubr.f32.gmra.mrb[0].mxu0 %v671
      %v930 = vpop.f32.mrb[0].mxu0
      %v931 = vadd.f32 %v728, %v930
      %v932 = vpop.f32.mrb[0].mxu0
      %933 = vmatprep.mubr.f32.mxu0 0.0
      %934 = vmatmul.mubr.f32.gmra.mrb[0].mxu0 %v672
      %v935 = vpop.f32.mrb[0].mxu0
      %v936 = vadd.f32 %v728, %v935
      %v937 = vpop.f32.mrb[0].mxu0
      %938 = vmatprep.mubr.f32.mxu0 0.0
      %939 = vmatmul.mubr.f32.gmra.mrb[0].mxu0 %v673
      %v940 = vpop.f32.mrb[0].mxu0
      %v941 = vadd.f32 %v728, %v940
      %v942 = vpop.f32.mrb[0].mxu0
      %943 = vmatprep.mubr.f32.mxu0 0.0
      %944 = vmatmul.mubr.f32.gmra.mrb[0].mxu0 %v674
      %v945 = vpop.f32.mrb[0].mxu0
      %v946 = vadd.f32 %v728, %v945
      %v947 = vpop.f32.mrb[0].mxu0
      %948 = vmatprep.mubr.f32.mxu0 0.0
      %949 = vmatmul.mubr.f32.gmra.mrb[0].mxu0 %v675
      %v950 = vpop.f32.mrb[0].mxu0
      %v951 = vadd.f32 %v728, %v950
      %v952 = vpop.f32.mrb[0].mxu0
      %953 = vmatprep.mubr.f32.mxu0 0.0
      %954 = vmatmul.mubr.f32.gmra.mrb[0].mxu0 %v676
      %v955 = vpop.f32.mrb[0].mxu0
      %v956 = vadd.f32 %v728, %v955
      %v957 = vpop.f32.mrb[0].mxu0
      %958 = vmatprep.mubr.f32.mxu0 0.0
      %959 = vmatmul.mubr.f32.gmra.mrb[0].mxu0 %v677
      %v960 = vpop.f32.mrb[0].mxu0
      %v961 = vadd.f32 %v728, %v960
      %v962 = vpop.f32.mrb[0].mxu0
      %963 = vmatprep.mubr.f32.mxu0 0.0
      %964 = vmatmul.mubr.f32.gmra.mrb[0].mxu0 %v678
      %v965 = vpop.f32.mrb[0].mxu0
      %v966 = vadd.f32 %v728, %v965
      %v967 = vpop.f32.mrb[0].mxu0
      %968 = vmatprep.mubr.f32.mxu0 0.0
      %969 = vmatmul.mubr.f32.gmra.mrb[0].mxu0 %v679
      %v970 = vpop.f32.mrb[0].mxu0
      %v971 = vadd.f32 %v728, %v970
      %v972 = vpop.f32.mrb[0].mxu0
      %973 = vmatprep.mubr.f32.mxu0 0.0
      %974 = vmatmul.mubr.f32.gmra.mrb[0].mxu0 %v680
      %v975 = vpop.f32.mrb[0].mxu0
      %v976 = vadd.f32 %v728, %v975
      %v977 = vpop.f32.mrb[0].mxu0
      %978 = vmatprep.mubr.f32.mxu0 0.0
      %979 = vmatmul.mubr.f32.gmra.mrb[0].mxu0 %v681
      %v980 = vpop.f32.mrb[0].mxu0
      %v981 = vadd.f32 %v728, %v980
      %v982 = vpop.f32.mrb[0].mxu0
      %983 = vmatprep.mubr.f32.mxu0 0.0
      %984 = vmatmul.mubr.f32.gmra.mrb[0].mxu0 %v682
      %v985 = vpop.f32.mrb[0].mxu0
      %v986 = vadd.f32 %v728, %v985
      %v987 = vpop.f32.mrb[0].mxu0
      %988 = vmatprep.mubr.f32.mxu0 0.0
      %989 = vmatmul.mubr.f32.gmra.mrb[0].mxu0 %v683
      %v990 = vpop.f32.mrb[0].mxu0
      %v991 = vadd.f32 %v728, %v990
      %v992 = vpop.f32.mrb[0].mxu0
      %993 = vmatprep.mubr.f32.mxu0 0.0
      %994 = vmatmul.mubr.f32.gmra.mrb[0].mxu0 %v684
      %v995 = vpop.f32.mrb[0].mxu0
      %v996 = vadd.f32 %v728, %v995
      %v997 = vpop.f32.mrb[0].mxu0
      %998 = vmatprep.mubr.f32.mxu0 0.0
      %999 = vmatmul.mubr.f32.gmra.mrb[0].mxu0 %v685
      %v1000 = vpop.f32.mrb[0].mxu0
      %v1001 = vadd.f32 %v728, %v1000
      %v1002 = vpop.f32.mrb[0].mxu0
      %1003 = vmatprep.mubr.f32.mxu0 0.0
      %1004 = vmatmul.mubr.f32.gmra.mrb[0].mxu0 %v686
      %v1005 = vpop.f32.mrb[0].mxu0
      %v1006 = vadd.f32 %v728, %v1005
      %v1007 = vpop.f32.mrb[0].mxu0
      %1008 = vmatprep.mubr.f32.mxu0 0.0
      %1009 = vmatmul.mubr.f32.gmra.mrb[0].mxu0 %v687
      %v1010 = vpop.f32.mrb[0].mxu0
      %v1011 = vadd.f32 %v728, %v1010
      %v1012 = vpop.f32.mrb[0].mxu0
      %1013 = vmatprep.mubr.f32.mxu0 0.0
      %1014 = vmatmul.mubr.f32.gmra.mrb[0].mxu0 %v688
      %v1015 = vpop.f32.mrb[0].mxu0
      %v1016 = vadd.f32 %v728, %v1015
      %v1017 = vpop.f32.mrb[0].mxu0
      %1018 = vmatprep.mubr.f32.mxu0 0.0
      %1019 = vmatmul.mubr.f32.gmra.mrb[0].mxu0 %v689
      %v1020 = vpop.f32.mrb[0].mxu0
      %v1021 = vadd.f32 %v728, %v1020
      %v1022 = vpop.f32.mrb[0].mxu0
      %1023 = vmatprep.mubr.f32.mxu0 0.0
      %1024 = vmatmul.mubr.f32.gmra.mrb[0].mxu0 %v690
      %v1025 = vpop.f32.mrb[0].mxu0
      %v1026 = vadd.f32 %v728, %v1025
      %v1027 = vpop.f32.mrb[0].mxu0
      %1028 = vmatprep.mubr.f32.mxu0 0.0
      %1029 = vmatmul.mubr.f32.gmra.mrb[0].mxu0 %v691
      %v1030 = vpop.f32.mrb[0].mxu0
      %v1031 = vadd.f32 %v728, %v1030
      %v1032 = vpop.f32.mrb[0].mxu0
      %1033 = vmatprep.mubr.f32.mxu0 0.0
      %1034 = vmatmul.mubr.f32.gmra.mrb[0].mxu0 %v692
      %v1035 = vpop.f32.mrb[0].mxu0
      %v1036 = vadd.f32 %v728, %v1035
      %v1037 = vpop.f32.mrb[0].mxu0
      %1038 = vmatprep.mubr.f32.mxu0 0.0
      %1039 = vmatmul.mubr.f32.gmra.mrb[0].mxu0 %v693
      %v1040 = vpop.f32.mrb[0].mxu0
      %v1041 = vadd.f32 %v728, %v1040
      %v1042 = vpop.f32.mrb[0].mxu0
      %1043 = vmatprep.mubr.f32.mxu0 0.0
      %1044 = vmatmul.mubr.f32.gmra.mrb[0].mxu0 %v694
      %v1045 = vpop.f32.mrb[0].mxu0
      %v1046 = vadd.f32 %v728, %v1045
      %v1047 = vpop.f32.mrb[0].mxu0
      %1048 = vmatprep.mubr.f32.mxu0 0.0
      %1049 = vmatmul.mubr.f32.gmra.mrb[0].mxu0 %v695
      %v1050 = vpop.f32.mrb[0].mxu0
      %v1051 = vadd.f32 %v728, %v1050
      %v1052 = vpop.f32.mrb[0].mxu0
      %1053 = vmatprep.mubr.f32.mxu0 0.0
      %1054 = vmatmul.mubr.f32.gmra.mrb[0].mxu0 %v696
      %v1055 = vpop.f32.mrb[0].mxu0
      %v1056 = vadd.f32 %v728, %v1055
      %v1057 = vpop.f32.mrb[0].mxu0
      %1058 = vmatprep.mubr.f32.mxu0 0.0
      %1059 = vmatmul.mubr.f32.gmra.mrb[0].mxu0 %v697
      %v1060 = vpop.f32.mrb[0].mxu0
      %v1061 = vadd.f32 %v728, %v1060
      %v1062 = vpop.f32.mrb[0].mxu0
      %1063 = vmatprep.mubr.f32.mxu0 0.0
      %1064 = vmatmul.mubr.f32.gmra.mrb[0].mxu0 %v698
      %v1065 = vpop.f32.mrb[0].mxu0
      %v1066 = vadd.f32 %v728, %v1065
      %v1067 = vpop.f32.mrb[0].mxu0
      %1068 = vmatprep.mubr.f32.mxu0 0.0
      %1069 = vmatmul.mubr.f32.gmra.mrb[0].mxu0 %v699
      %v1070 = vpop.f32.mrb[0].mxu0
      %v1071 = vadd.f32 %v728, %v1070
      %v1072 = vpop.f32.mrb[0].mxu0
      %1073 = vmatprep.mubr.f32.mxu0 0.0
      %1074 = vmatmul.mubr.f32.gmra.mrb[0].mxu0 %v700
      %v1075 = vpop.f32.mrb[0].mxu0
      %v1076 = vadd.f32 %v728, %v1075
      %v1077 = vpop.f32.mrb[0].mxu0
      %1078 = vmatprep.mubr.f32.mxu0 0.0
      %1079 = vmatmul.mubr.f32.gmra.mrb[0].mxu0 %v701
      %v1080 = vpop.f32.mrb[0].mxu0
      %v1081 = vadd.f32 %v728, %v1080
      %v1082 = vpop.f32.mrb[0].mxu0
      %1083 = vmatprep.mubr.f32.mxu0 0.0
      %1084 = vmatmul.mubr.f32.gmra.mrb[0].mxu0 %v702
      %v1085 = vpop.f32.mrb[0].mxu0
      %v1086 = vadd.f32 %v728, %v1085
      %v1087 = vpop.f32.mrb[0].mxu0
      %1088 = vmatprep.mubr.f32.mxu0 0.0
      %1089 = vmatmul.mubr.f32.gmra.mrb[0].mxu0 %v703
      %v1090 = vpop.f32.mrb[0].mxu0
      %v1091 = vadd.f32 %v728, %v1090
      %v1092 = vpop.f32.mrb[0].mxu0
      %1093 = vmatprep.mubr.f32.mxu0 0.0
      %1094 = vmatmul.mubr.f32.gmra.mrb[0].mxu0 %v704
      %v1095 = vpop.f32.mrb[0].mxu0
      %v1096 = vadd.f32 %v728, %v1095
      %v1097 = vpop.f32.mrb[0].mxu0
      %1098 = vmatprep.mubr.f32.mxu0 0.0
      %1099 = vmatmul.mubr.f32.gmra.mrb[0].mxu0 %v705
      %v1100 = vpop.f32.mrb[0].mxu0
      %v1101 = vadd.f32 %v728, %v1100
      %v1102 = vpop.f32.mrb[0].mxu0
      %1103 = vmatprep.mubr.f32.mxu0 0.0
      %1104 = vmatmul.mubr.f32.gmra.mrb[0].mxu0 %v706
      %v1105 = vpop.f32.mrb[0].mxu0
      %v1106 = vadd.f32 %v728, %v1105
      %v1107 = vpop.f32.mrb[0].mxu0
      %1108 = vmatprep.mubr.f32.mxu0 0.0
      %1109 = vmatmul.mubr.f32.gmra.mrb[0].mxu0 %v707
      %v1110 = vpop.f32.mrb[0].mxu0
      %v1111 = vadd.f32 %v728, %v1110
      %v1112 = vpop.f32.mrb[0].mxu0
      %1113 = vdwg.mxu0
      %v1114 = vmax.f32 %v796, 0.0
      %v1115 = vmax.f32 %v801, 0.0
      %v1116 = vmax.f32 %v806, 0.0
      %v1117 = vmax.f32 %v811, 0.0
      %v1118 = vmax.f32 %v816, 0.0
      %v1119 = vmax.f32 %v821, 0.0
      %v1120 = vmax.f32 %v826, 0.0
      %v1121 = vmax.f32 %v831, 0.0
      %v1122 = vmax.f32 %v836, 0.0
      %v1123 = vmax.f32 %v841, 0.0
      %v1124 = vmax.f32 %v846, 0.0
      %v1125 = vmax.f32 %v851, 0.0
      %v1126 = vmax.f32 %v856, 0.0
      %v1127 = vmax.f32 %v861, 0.0
      %v1128 = vmax.f32 %v866, 0.0
      %v1129 = vmax.f32 %v871, 0.0
      %v1130 = vmax.f32 %v876, 0.0
      %v1131 = vmax.f32 %v881, 0.0
      %v1132 = vmax.f32 %v886, 0.0
      %v1133 = vmax.f32 %v891, 0.0
      %v1134 = vmax.f32 %v896, 0.0
      %v1135 = vmax.f32 %v901, 0.0
      %v1136 = vmax.f32 %v906, 0.0
      %v1137 = vmax.f32 %v911, 0.0
      %v1138 = vmax.f32 %v916, 0.0
      %v1139 = vmax.f32 %v921, 0.0
      %v1140 = vmax.f32 %v926, 0.0
      %v1141 = vmax.f32 %v931, 0.0
      %v1142 = vmax.f32 %v936, 0.0
      %v1143 = vmax.f32 %v941, 0.0
      %v1144 = vmax.f32 %v946, 0.0
      %v1145 = vmax.f32 %v951, 0.0
      %v1146 = vmax.f32 %v956, 0.0
      %v1147 = vmax.f32 %v961, 0.0
      %v1148 = vmax.f32 %v966, 0.0
      %v1149 = vmax.f32 %v971, 0.0
      %v1150 = vmax.f32 %v976, 0.0
      %v1151 = vmax.f32 %v981, 0.0
      %v1152 = vmax.f32 %v986, 0.0
      %v1153 = vmax.f32 %v991, 0.0
      %v1154 = vmax.f32 %v996, 0.0
      %v1155 = vmax.f32 %v1001, 0.0
      %v1156 = vmax.f32 %v1006, 0.0
      %v1157 = vmax.f32 %v1011, 0.0
      %v1158 = vmax.f32 %v1016, 0.0
      %v1159 = vmax.f32 %v1021, 0.0
      %v1160 = vmax.f32 %v1026, 0.0
      %v1161 = vmax.f32 %v1031, 0.0
      %v1162 = vmax.f32 %v1036, 0.0
      %v1163 = vmax.f32 %v1041, 0.0
      %v1164 = vmax.f32 %v1046, 0.0
      %v1165 = vmax.f32 %v1051, 0.0
      %v1166 = vmax.f32 %v1056, 0.0
      %v1167 = vmax.f32 %v1061, 0.0
      %v1168 = vmax.f32 %v1066, 0.0
      %v1169 = vmax.f32 %v1071, 0.0
      %v1170 = vmax.f32 %v1076, 0.0
      %v1171 = vmax.f32 %v1081, 0.0
      %v1172 = vmax.f32 %v1086, 0.0
      %v1173 = vmax.f32 %v1091, 0.0
      %v1174 = vmax.f32 %v1096, 0.0
      %v1175 = vmax.f32 %v1101, 0.0
      %v1176 = vmax.f32 %v1106, 0.0
      %v1177 = vmax.f32 %v1111, 0.0
      %v1178 = vld [vmem:[%s1 + $0x100] sm:$0xff]
      %v1179 = vld [vmem:[%s1 + $0x108] sm:$0xff]
      %v1180 = vld [vmem:[%s1 + $0x110] sm:$0xff]
      %v1181 = vld [vmem:[%s1 + $0x118] sm:$0xff]
      %v1182 = vld [vmem:[%s1 + $0x120] sm:$0xff]
      %v1183 = vld [vmem:[%s1 + $0x128] sm:$0xff]
      %v1184 = vld [vmem:[%s1 + $0x130] sm:$0xff]
      %v1185 = vld [vmem:[%s1 + $0x138] sm:$0xff]
      %v1186 = vld [vmem:[%s1 + $0x140] sm:$0xff]
      %v1187 = vld [vmem:[%s1 + $0x148] sm:$0xff]
      %v1188 = vld [vmem:[%s1 + $0x150] sm:$0xff]
      %v1189 = vld [vmem:[%s1 + $0x158] sm:$0xff]
      %v1190 = vld [vmem:[%s1 + $0x160] sm:$0xff]
      %v1191 = vld [vmem:[%s1 + $0x168] sm:$0xff]
      %v1192 = vld [vmem:[%s1 + $0x170] sm:$0xff]
      %v1193 = vld [vmem:[%s1 + $0x178] sm:$0xff]
      %v1194 = vld [vmem:[%s2 + $0x2] sm:$0x1]
      %v1195 = vlaneseq
      %v1196 = vshrl.u32 %v1195, 7
      %v1197 = vsub.s32 0, %v1196
      %v1198 = vrot.slane %v1194, %v1197
      %1199 = vmatprep.subr.mxu0 0.0
      %1200 = vmatpush1.msra.mxu0 %v1178
      %1201 = vmatprep.subr.mxu0 0.0
      %1202 = vmatpush1.msra.mxu0 %v1179
      %1203 = vmatprep.subr.mxu0 0.0
      %1204 = vmatpush1.msra.mxu0 %v1180
      %1205 = vmatprep.subr.mxu0 0.0
      %1206 = vmatpush1.msra.mxu0 %v1181
      %1207 = vmatprep.subr.mxu0 0.0
      %1208 = vmatpush1.msra.mxu0 %v1182
      %1209 = vmatprep.subr.mxu0 0.0
      %1210 = vmatpush1.msra.mxu0 %v1183
      %1211 = vmatprep.subr.mxu0 0.0
      %1212 = vmatpush1.msra.mxu0 %v1184
      %1213 = vmatprep.subr.mxu0 0.0
      %1214 = vmatpush1.msra.mxu0 %v1185
      %1215 = vmatprep.subr.mxu0 0.0
      %1216 = vmatpush1.msra.mxu0 %v1186
      %1217 = vmatprep.subr.mxu0 0.0
      %1218 = vmatpush1.msra.mxu0 %v1187
      %1219 = vmatprep.subr.mxu0 0.0
      %1220 = vmatpush1.msra.mxu0 %v1188
      %1221 = vmatprep.subr.mxu0 0.0
      %1222 = vmatpush1.msra.mxu0 %v1189
      %1223 = vmatprep.subr.mxu0 0.0
      %1224 = vmatpush1.msra.mxu0 %v1190
      %1225 = vmatprep.subr.mxu0 0.0
      %1226 = vmatpush1.msra.mxu0 %v1191
      %1227 = vmatprep.subr.mxu0 0.0
      %1228 = vmatpush1.msra.mxu0 %v1192
      %1229 = vmatprep.subr.mxu0 0.0
      %1230 = vmatpush1.msra.mxu0 %v1193
      %1231 = vmatprep.subr.mxu0 0.0
      %1232 = vmatpush1.msra.mxu0 0.0
      %1233 = vmatprep.subr.mxu0 0.0
      %1234 = vmatpush1.msra.mxu0 0.0
      %1235 = vmatprep.subr.mxu0 0.0
      %1236 = vmatpush1.msra.mxu0 0.0
      %1237 = vmatprep.subr.mxu0 0.0
      %1238 = vmatpush1.msra.mxu0 0.0
      %1239 = vmatprep.subr.mxu0 0.0
      %1240 = vmatpush1.msra.mxu0 0.0
      %1241 = vmatprep.subr.mxu0 0.0
      %1242 = vmatpush1.msra.mxu0 0.0
      %1243 = vmatprep.subr.mxu0 0.0
      %1244 = vmatpush1.msra.mxu0 0.0
      %1245 = vmatprep.subr.mxu0 0.0
      %1246 = vmatpush1.msra.mxu0 0.0
      %1247 = vmatprep.subr.mxu0 0.0
      %1248 = vmatpush1.msra.mxu0 0.0
      %1249 = vmatprep.subr.mxu0 0.0
      %1250 = vmatpush1.msra.mxu0 0.0
      %1251 = vmatprep.subr.mxu0 0.0
      %1252 = vmatpush1.msra.mxu0 0.0
      %1253 = vmatprep.subr.mxu0 0.0
      %1254 = vmatpush1.msra.mxu0 0.0
      %1255 = vmatprep.subr.mxu0 0.0
      %1256 = vmatpush1.msra.mxu0 0.0
      %1257 = vmatprep.subr.mxu0 0.0
      %1258 = vmatpush1.msra.mxu0 0.0
      %1259 = vmatprep.subr.mxu0 0.0
      %1260 = vmatpush1.msra.mxu0 0.0
      %1261 = vmatprep.subr.mxu0 0.0
      %1262 = vmatpush1.msra.mxu0 0.0
      %1263 = vmatprep.mubr.f32.mxu0 0.0
      %1264 = vmatmul.mubr.f32.gmra.mrb[0].mxu0 %v1114
      %v1265 = vpop.f32.mrb[0].mxu0
      %v1266 = vadd.f32 %v1198, %v1265
      %v1267 = vpop.f32.mrb[0].mxu0
      %1268 = vmatprep.mubr.f32.mxu0 0.0
      %1269 = vmatmul.mubr.f32.gmra.mrb[0].mxu0 %v1115
      %v1270 = vpop.f32.mrb[0].mxu0
      %v1271 = vadd.f32 %v1198, %v1270
      %v1272 = vpop.f32.mrb[0].mxu0
      %1273 = vmatprep.mubr.f32.mxu0 0.0
      %1274 = vmatmul.mubr.f32.gmra.mrb[0].mxu0 %v1116
      %v1275 = vpop.f32.mrb[0].mxu0
      %v1276 = vadd.f32 %v1198, %v1275
      %v1277 = vpop.f32.mrb[0].mxu0
      %1278 = vmatprep.mubr.f32.mxu0 0.0
      %1279 = vmatmul.mubr.f32.gmra.mrb[0].mxu0 %v1117
      %v1280 = vpop.f32.mrb[0].mxu0
      %v1281 = vadd.f32 %v1198, %v1280
      %v1282 = vpop.f32.mrb[0].mxu0
      %1283 = vmatprep.mubr.f32.mxu0 0.0
      %1284 = vmatmul.mubr.f32.gmra.mrb[0].mxu0 %v1118
      %v1285 = vpop.f32.mrb[0].mxu0
      %v1286 = vadd.f32 %v1198, %v1285
      %v1287 = vpop.f32.mrb[0].mxu0
      %1288 = vmatprep.mubr.f32.mxu0 0.0
      %1289 = vmatmul.mubr.f32.gmra.mrb[0].mxu0 %v1119
      %v1290 = vpop.f32.mrb[0].mxu0
      %v1291 = vadd.f32 %v1198, %v1290
      %v1292 = vpop.f32.mrb[0].mxu0
      %1293 = vmatprep.mubr.f32.mxu0 0.0
      %1294 = vmatmul.mubr.f32.gmra.mrb[0].mxu0 %v1120
      %v1295 = vpop.f32.mrb[0].mxu0
      %v1296 = vadd.f32 %v1198, %v1295
      %v1297 = vpop.f32.mrb[0].mxu0
      %1298 = vmatprep.mubr.f32.mxu0 0.0
      %1299 = vmatmul.mubr.f32.gmra.mrb[0].mxu0 %v1121
      %v1300 = vpop.f32.mrb[0].mxu0
      %v1301 = vadd.f32 %v1198, %v1300
      %v1302 = vpop.f32.mrb[0].mxu0
      %1303 = vmatprep.mubr.f32.mxu0 0.0
      %1304 = vmatmul.mubr.f32.gmra.mrb[0].mxu0 %v1122
      %v1305 = vpop.f32.mrb[0].mxu0
      %v1306 = vadd.f32 %v1198, %v1305
      %v1307 = vpop.f32.mrb[0].mxu0
      %1308 = vmatprep.mubr.f32.mxu0 0.0
      %1309 = vmatmul.mubr.f32.gmra.mrb[0].mxu0 %v1123
      %v1310 = vpop.f32.mrb[0].mxu0
      %v1311 = vadd.f32 %v1198, %v1310
      %v1312 = vpop.f32.mrb[0].mxu0
      %1313 = vmatprep.mubr.f32.mxu0 0.0
      %1314 = vmatmul.mubr.f32.gmra.mrb[0].mxu0 %v1124
      %v1315 = vpop.f32.mrb[0].mxu0
      %v1316 = vadd.f32 %v1198, %v1315
      %v1317 = vpop.f32.mrb[0].mxu0
      %1318 = vmatprep.mubr.f32.mxu0 0.0
      %1319 = vmatmul.mubr.f32.gmra.mrb[0].mxu0 %v1125
      %v1320 = vpop.f32.mrb[0].mxu0
      %v1321 = vadd.f32 %v1198, %v1320
      %v1322 = vpop.f32.mrb[0].mxu0
      %1323 = vmatprep.mubr.f32.mxu0 0.0
      %1324 = vmatmul.mubr.f32.gmra.mrb[0].mxu0 %v1126
      %v1325 = vpop.f32.mrb[0].mxu0
      %v1326 = vadd.f32 %v1198, %v1325
      %v1327 = vpop.f32.mrb[0].mxu0
      %1328 = vmatprep.mubr.f32.mxu0 0.0
      %1329 = vmatmul.mubr.f32.gmra.mrb[0].mxu0 %v1127
      %v1330 = vpop.f32.mrb[0].mxu0
      %v1331 = vadd.f32 %v1198, %v1330
      %v1332 = vpop.f32.mrb[0].mxu0
      %1333 = vmatprep.mubr.f32.mxu0 0.0
      %1334 = vmatmul.mubr.f32.gmra.mrb[0].mxu0 %v1128
      %v1335 = vpop.f32.mrb[0].mxu0
      %v1336 = vadd.f32 %v1198, %v1335
      %v1337 = vpop.f32.mrb[0].mxu0
      %1338 = vmatprep.mubr.f32.mxu0 0.0
      %1339 = vmatmul.mubr.f32.gmra.mrb[0].mxu0 %v1129
      %v1340 = vpop.f32.mrb[0].mxu0
      %v1341 = vadd.f32 %v1198, %v1340
      %v1342 = vpop.f32.mrb[0].mxu0
      %1343 = vmatprep.mubr.f32.mxu0 0.0
      %1344 = vmatmul.mubr.f32.gmra.mrb[0].mxu0 %v1130
      %v1345 = vpop.f32.mrb[0].mxu0
      %v1346 = vadd.f32 %v1198, %v1345
      %v1347 = vpop.f32.mrb[0].mxu0
      %1348 = vmatprep.mubr.f32.mxu0 0.0
      %1349 = vmatmul.mubr.f32.gmra.mrb[0].mxu0 %v1131
      %v1350 = vpop.f32.mrb[0].mxu0
      %v1351 = vadd.f32 %v1198, %v1350
      %v1352 = vpop.f32.mrb[0].mxu0
      %1353 = vmatprep.mubr.f32.mxu0 0.0
      %1354 = vmatmul.mubr.f32.gmra.mrb[0].mxu0 %v1132
      %v1355 = vpop.f32.mrb[0].mxu0
      %v1356 = vadd.f32 %v1198, %v1355
      %v1357 = vpop.f32.mrb[0].mxu0
      %1358 = vmatprep.mubr.f32.mxu0 0.0
      %1359 = vmatmul.mubr.f32.gmra.mrb[0].mxu0 %v1133
      %v1360 = vpop.f32.mrb[0].mxu0
      %v1361 = vadd.f32 %v1198, %v1360
      %v1362 = vpop.f32.mrb[0].mxu0
      %1363 = vmatprep.mubr.f32.mxu0 0.0
      %1364 = vmatmul.mubr.f32.gmra.mrb[0].mxu0 %v1134
      %v1365 = vpop.f32.mrb[0].mxu0
      %v1366 = vadd.f32 %v1198, %v1365
      %v1367 = vpop.f32.mrb[0].mxu0
      %1368 = vmatprep.mubr.f32.mxu0 0.0
      %1369 = vmatmul.mubr.f32.gmra.mrb[0].mxu0 %v1135
      %v1370 = vpop.f32.mrb[0].mxu0
      %v1371 = vadd.f32 %v1198, %v1370
      %v1372 = vpop.f32.mrb[0].mxu0
      %1373 = vmatprep.mubr.f32.mxu0 0.0
      %1374 = vmatmul.mubr.f32.gmra.mrb[0].mxu0 %v1136
      %v1375 = vpop.f32.mrb[0].mxu0
      %v1376 = vadd.f32 %v1198, %v1375
      %v1377 = vpop.f32.mrb[0].mxu0
      %1378 = vmatprep.mubr.f32.mxu0 0.0
      %1379 = vmatmul.mubr.f32.gmra.mrb[0].mxu0 %v1137
      %v1380 = vpop.f32.mrb[0].mxu0
      %v1381 = vadd.f32 %v1198, %v1380
      %v1382 = vpop.f32.mrb[0].mxu0
      %1383 = vmatprep.mubr.f32.mxu0 0.0
      %1384 = vmatmul.mubr.f32.gmra.mrb[0].mxu0 %v1138
      %v1385 = vpop.f32.mrb[0].mxu0
      %v1386 = vadd.f32 %v1198, %v1385
      %v1387 = vpop.f32.mrb[0].mxu0
      %1388 = vmatprep.mubr.f32.mxu0 0.0
      %1389 = vmatmul.mubr.f32.gmra.mrb[0].mxu0 %v1139
      %v1390 = vpop.f32.mrb[0].mxu0
      %v1391 = vadd.f32 %v1198, %v1390
      %v1392 = vpop.f32.mrb[0].mxu0
      %1393 = vmatprep.mubr.f32.mxu0 0.0
      %1394 = vmatmul.mubr.f32.gmra.mrb[0].mxu0 %v1140
      %v1395 = vpop.f32.mrb[0].mxu0
      %v1396 = vadd.f32 %v1198, %v1395
      %v1397 = vpop.f32.mrb[0].mxu0
      %1398 = vmatprep.mubr.f32.mxu0 0.0
      %1399 = vmatmul.mubr.f32.gmra.mrb[0].mxu0 %v1141
      %v1400 = vpop.f32.mrb[0].mxu0
      %v1401 = vadd.f32 %v1198, %v1400
      %v1402 = vpop.f32.mrb[0].mxu0
      %1403 = vmatprep.mubr.f32.mxu0 0.0
      %1404 = vmatmul.mubr.f32.gmra.mrb[0].mxu0 %v1142
      %v1405 = vpop.f32.mrb[0].mxu0
      %v1406 = vadd.f32 %v1198, %v1405
      %v1407 = vpop.f32.mrb[0].mxu0
      %1408 = vmatprep.mubr.f32.mxu0 0.0
      %1409 = vmatmul.mubr.f32.gmra.mrb[0].mxu0 %v1143
      %v1410 = vpop.f32.mrb[0].mxu0
      %v1411 = vadd.f32 %v1198, %v1410
      %v1412 = vpop.f32.mrb[0].mxu0
      %1413 = vmatprep.mubr.f32.mxu0 0.0
      %1414 = vmatmul.mubr.f32.gmra.mrb[0].mxu0 %v1144
      %v1415 = vpop.f32.mrb[0].mxu0
      %v1416 = vadd.f32 %v1198, %v1415
      %v1417 = vpop.f32.mrb[0].mxu0
      %1418 = vmatprep.mubr.f32.mxu0 0.0
      %1419 = vmatmul.mubr.f32.gmra.mrb[0].mxu0 %v1145
      %v1420 = vpop.f32.mrb[0].mxu0
      %v1421 = vadd.f32 %v1198, %v1420
      %v1422 = vpop.f32.mrb[0].mxu0
      %1423 = vmatprep.mubr.f32.mxu0 0.0
      %1424 = vmatmul.mubr.f32.gmra.mrb[0].mxu0 %v1146
      %v1425 = vpop.f32.mrb[0].mxu0
      %v1426 = vadd.f32 %v1198, %v1425
      %v1427 = vpop.f32.mrb[0].mxu0
      %1428 = vmatprep.mubr.f32.mxu0 0.0
      %1429 = vmatmul.mubr.f32.gmra.mrb[0].mxu0 %v1147
      %v1430 = vpop.f32.mrb[0].mxu0
      %v1431 = vadd.f32 %v1198, %v1430
      %v1432 = vpop.f32.mrb[0].mxu0
      %1433 = vmatprep.mubr.f32.mxu0 0.0
      %1434 = vmatmul.mubr.f32.gmra.mrb[0].mxu0 %v1148
      %v1435 = vpop.f32.mrb[0].mxu0
      %v1436 = vadd.f32 %v1198, %v1435
      %v1437 = vpop.f32.mrb[0].mxu0
      %1438 = vmatprep.mubr.f32.mxu0 0.0
      %1439 = vmatmul.mubr.f32.gmra.mrb[0].mxu0 %v1149
      %v1440 = vpop.f32.mrb[0].mxu0
      %v1441 = vadd.f32 %v1198, %v1440
      %v1442 = vpop.f32.mrb[0].mxu0
      %1443 = vmatprep.mubr.f32.mxu0 0.0
      %1444 = vmatmul.mubr.f32.gmra.mrb[0].mxu0 %v1150
      %v1445 = vpop.f32.mrb[0].mxu0
      %v1446 = vadd.f32 %v1198, %v1445
      %v1447 = vpop.f32.mrb[0].mxu0
      %1448 = vmatprep.mubr.f32.mxu0 0.0
      %1449 = vmatmul.mubr.f32.gmra.mrb[0].mxu0 %v1151
      %v1450 = vpop.f32.mrb[0].mxu0
      %v1451 = vadd.f32 %v1198, %v1450
      %v1452 = vpop.f32.mrb[0].mxu0
      %1453 = vmatprep.mubr.f32.mxu0 0.0
      %1454 = vmatmul.mubr.f32.gmra.mrb[0].mxu0 %v1152
      %v1455 = vpop.f32.mrb[0].mxu0
      %v1456 = vadd.f32 %v1198, %v1455
      %v1457 = vpop.f32.mrb[0].mxu0
      %1458 = vmatprep.mubr.f32.mxu0 0.0
      %1459 = vmatmul.mubr.f32.gmra.mrb[0].mxu0 %v1153
      %v1460 = vpop.f32.mrb[0].mxu0
      %v1461 = vadd.f32 %v1198, %v1460
      %v1462 = vpop.f32.mrb[0].mxu0
      %1463 = vmatprep.mubr.f32.mxu0 0.0
      %1464 = vmatmul.mubr.f32.gmra.mrb[0].mxu0 %v1154
      %v1465 = vpop.f32.mrb[0].mxu0
      %v1466 = vadd.f32 %v1198, %v1465
      %v1467 = vpop.f32.mrb[0].mxu0
      %1468 = vmatprep.mubr.f32.mxu0 0.0
      %1469 = vmatmul.mubr.f32.gmra.mrb[0].mxu0 %v1155
      %v1470 = vpop.f32.mrb[0].mxu0
      %v1471 = vadd.f32 %v1198, %v1470
      %v1472 = vpop.f32.mrb[0].mxu0
      %1473 = vmatprep.mubr.f32.mxu0 0.0
      %1474 = vmatmul.mubr.f32.gmra.mrb[0].mxu0 %v1156
      %v1475 = vpop.f32.mrb[0].mxu0
      %v1476 = vadd.f32 %v1198, %v1475
      %v1477 = vpop.f32.mrb[0].mxu0
      %1478 = vmatprep.mubr.f32.mxu0 0.0
      %1479 = vmatmul.mubr.f32.gmra.mrb[0].mxu0 %v1157
      %v1480 = vpop.f32.mrb[0].mxu0
      %v1481 = vadd.f32 %v1198, %v1480
      %v1482 = vpop.f32.mrb[0].mxu0
      %1483 = vmatprep.mubr.f32.mxu0 0.0
      %1484 = vmatmul.mubr.f32.gmra.mrb[0].mxu0 %v1158
      %v1485 = vpop.f32.mrb[0].mxu0
      %v1486 = vadd.f32 %v1198, %v1485
      %v1487 = vpop.f32.mrb[0].mxu0
      %1488 = vmatprep.mubr.f32.mxu0 0.0
      %1489 = vmatmul.mubr.f32.gmra.mrb[0].mxu0 %v1159
      %v1490 = vpop.f32.mrb[0].mxu0
      %v1491 = vadd.f32 %v1198, %v1490
      %v1492 = vpop.f32.mrb[0].mxu0
      %1493 = vmatprep.mubr.f32.mxu0 0.0
      %1494 = vmatmul.mubr.f32.gmra.mrb[0].mxu0 %v1160
      %v1495 = vpop.f32.mrb[0].mxu0
      %v1496 = vadd.f32 %v1198, %v1495
      %v1497 = vpop.f32.mrb[0].mxu0
      %1498 = vmatprep.mubr.f32.mxu0 0.0
      %1499 = vmatmul.mubr.f32.gmra.mrb[0].mxu0 %v1161
      %v1500 = vpop.f32.mrb[0].mxu0
      %v1501 = vadd.f32 %v1198, %v1500
      %v1502 = vpop.f32.mrb[0].mxu0
      %1503 = vmatprep.mubr.f32.mxu0 0.0
      %1504 = vmatmul.mubr.f32.gmra.mrb[0].mxu0 %v1162
      %v1505 = vpop.f32.mrb[0].mxu0
      %v1506 = vadd.f32 %v1198, %v1505
      %v1507 = vpop.f32.mrb[0].mxu0
      %1508 = vmatprep.mubr.f32.mxu0 0.0
      %1509 = vmatmul.mubr.f32.gmra.mrb[0].mxu0 %v1163
      %v1510 = vpop.f32.mrb[0].mxu0
      %v1511 = vadd.f32 %v1198, %v1510
      %v1512 = vpop.f32.mrb[0].mxu0
      %1513 = vmatprep.mubr.f32.mxu0 0.0
      %1514 = vmatmul.mubr.f32.gmra.mrb[0].mxu0 %v1164
      %v1515 = vpop.f32.mrb[0].mxu0
      %v1516 = vadd.f32 %v1198, %v1515
      %v1517 = vpop.f32.mrb[0].mxu0
      %1518 = vmatprep.mubr.f32.mxu0 0.0
      %1519 = vmatmul.mubr.f32.gmra.mrb[0].mxu0 %v1165
      %v1520 = vpop.f32.mrb[0].mxu0
      %v1521 = vadd.f32 %v1198, %v1520
      %v1522 = vpop.f32.mrb[0].mxu0
      %1523 = vmatprep.mubr.f32.mxu0 0.0
      %1524 = vmatmul.mubr.f32.gmra.mrb[0].mxu0 %v1166
      %v1525 = vpop.f32.mrb[0].mxu0
      %v1526 = vadd.f32 %v1198, %v1525
      %v1527 = vpop.f32.mrb[0].mxu0
      %1528 = vmatprep.mubr.f32.mxu0 0.0
      %1529 = vmatmul.mubr.f32.gmra.mrb[0].mxu0 %v1167
      %v1530 = vpop.f32.mrb[0].mxu0
      %v1531 = vadd.f32 %v1198, %v1530
      %v1532 = vpop.f32.mrb[0].mxu0
      %1533 = vmatprep.mubr.f32.mxu0 0.0
      %1534 = vmatmul.mubr.f32.gmra.mrb[0].mxu0 %v1168
      %v1535 = vpop.f32.mrb[0].mxu0
      %v1536 = vadd.f32 %v1198, %v1535
      %v1537 = vpop.f32.mrb[0].mxu0
      %1538 = vmatprep.mubr.f32.mxu0 0.0
      %1539 = vmatmul.mubr.f32.gmra.mrb[0].mxu0 %v1169
      %v1540 = vpop.f32.mrb[0].mxu0
      %v1541 = vadd.f32 %v1198, %v1540
      %v1542 = vpop.f32.mrb[0].mxu0
      %1543 = vmatprep.mubr.f32.mxu0 0.0
      %1544 = vmatmul.mubr.f32.gmra.mrb[0].mxu0 %v1170
      %v1545 = vpop.f32.mrb[0].mxu0
      %v1546 = vadd.f32 %v1198, %v1545
      %v1547 = vpop.f32.mrb[0].mxu0
      %1548 = vmatprep.mubr.f32.mxu0 0.0
      %1549 = vmatmul.mubr.f32.gmra.mrb[0].mxu0 %v1171
      %v1550 = vpop.f32.mrb[0].mxu0
      %v1551 = vadd.f32 %v1198, %v1550
      %v1552 = vpop.f32.mrb[0].mxu0
      %1553 = vmatprep.mubr.f32.mxu0 0.0
      %1554 = vmatmul.mubr.f32.gmra.mrb[0].mxu0 %v1172
      %v1555 = vpop.f32.mrb[0].mxu0
      %v1556 = vadd.f32 %v1198, %v1555
      %v1557 = vpop.f32.mrb[0].mxu0
      %1558 = vmatprep.mubr.f32.mxu0 0.0
      %1559 = vmatmul.mubr.f32.gmra.mrb[0].mxu0 %v1173
      %v1560 = vpop.f32.mrb[0].mxu0
      %v1561 = vadd.f32 %v1198, %v1560
      %v1562 = vpop.f32.mrb[0].mxu0
      %1563 = vmatprep.mubr.f32.mxu0 0.0
      %1564 = vmatmul.mubr.f32.gmra.mrb[0].mxu0 %v1174
      %v1565 = vpop.f32.mrb[0].mxu0
      %v1566 = vadd.f32 %v1198, %v1565
      %v1567 = vpop.f32.mrb[0].mxu0
      %1568 = vmatprep.mubr.f32.mxu0 0.0
      %1569 = vmatmul.mubr.f32.gmra.mrb[0].mxu0 %v1175
      %v1570 = vpop.f32.mrb[0].mxu0
      %v1571 = vadd.f32 %v1198, %v1570
      %v1572 = vpop.f32.mrb[0].mxu0
      %1573 = vmatprep.mubr.f32.mxu0 0.0
      %1574 = vmatmul.mubr.f32.gmra.mrb[0].mxu0 %v1176
      %v1575 = vpop.f32.mrb[0].mxu0
      %v1576 = vadd.f32 %v1198, %v1575
      %v1577 = vpop.f32.mrb[0].mxu0
      %1578 = vmatprep.mubr.f32.mxu0 0.0
      %1579 = vmatmul.mubr.f32.gmra.mrb[0].mxu0 %v1177
      %v1580 = vpop.f32.mrb[0].mxu0
      %v1581 = vadd.f32 %v1198, %v1580
      %v1582 = vpop.f32.mrb[0].mxu0
      %1583 = vdwg.mxu0
      %v1584 = vmax.f32 %v1266, 0.0
      %v1585 = vmax.f32 %v1271, 0.0
      %v1586 = vmax.f32 %v1276, 0.0
      %v1587 = vmax.f32 %v1281, 0.0
      %v1588 = vmax.f32 %v1286, 0.0
      %v1589 = vmax.f32 %v1291, 0.0
      %v1590 = vmax.f32 %v1296, 0.0
      %v1591 = vmax.f32 %v1301, 0.0
      %v1592 = vmax.f32 %v1306, 0.0
      %v1593 = vmax.f32 %v1311, 0.0
      %v1594 = vmax.f32 %v1316, 0.0
      %v1595 = vmax.f32 %v1321, 0.0
      %v1596 = vmax.f32 %v1326, 0.0
      %v1597 = vmax.f32 %v1331, 0.0
      %v1598 = vmax.f32 %v1336, 0.0
      %v1599 = vmax.f32 %v1341, 0.0
      %v1600 = vmax.f32 %v1346, 0.0
      %v1601 = vmax.f32 %v1351, 0.0
      %v1602 = vmax.f32 %v1356, 0.0
      %v1603 = vmax.f32 %v1361, 0.0
      %v1604 = vmax.f32 %v1366, 0.0
      %v1605 = vmax.f32 %v1371, 0.0
      %v1606 = vmax.f32 %v1376, 0.0
      %v1607 = vmax.f32 %v1381, 0.0
      %v1608 = vmax.f32 %v1386, 0.0
      %v1609 = vmax.f32 %v1391, 0.0
      %v1610 = vmax.f32 %v1396, 0.0
      %v1611 = vmax.f32 %v1401, 0.0
      %v1612 = vmax.f32 %v1406, 0.0
      %v1613 = vmax.f32 %v1411, 0.0
      %v1614 = vmax.f32 %v1416, 0.0
      %v1615 = vmax.f32 %v1421, 0.0
      %v1616 = vmax.f32 %v1426, 0.0
      %v1617 = vmax.f32 %v1431, 0.0
      %v1618 = vmax.f32 %v1436, 0.0
      %v1619 = vmax.f32 %v1441, 0.0
      %v1620 = vmax.f32 %v1446, 0.0
      %v1621 = vmax.f32 %v1451, 0.0
      %v1622 = vmax.f32 %v1456, 0.0
      %v1623 = vmax.f32 %v1461, 0.0
      %v1624 = vmax.f32 %v1466, 0.0
      %v1625 = vmax.f32 %v1471, 0.0
      %v1626 = vmax.f32 %v1476, 0.0
      %v1627 = vmax.f32 %v1481, 0.0
      %v1628 = vmax.f32 %v1486, 0.0
      %v1629 = vmax.f32 %v1491, 0.0
      %v1630 = vmax.f32 %v1496, 0.0
      %v1631 = vmax.f32 %v1501, 0.0
      %v1632 = vmax.f32 %v1506, 0.0
      %v1633 = vmax.f32 %v1511, 0.0
      %v1634 = vmax.f32 %v1516, 0.0
      %v1635 = vmax.f32 %v1521, 0.0
      %v1636 = vmax.f32 %v1526, 0.0
      %v1637 = vmax.f32 %v1531, 0.0
      %v1638 = vmax.f32 %v1536, 0.0
      %v1639 = vmax.f32 %v1541, 0.0
      %v1640 = vmax.f32 %v1546, 0.0
      %v1641 = vmax.f32 %v1551, 0.0
      %v1642 = vmax.f32 %v1556, 0.0
      %v1643 = vmax.f32 %v1561, 0.0
      %v1644 = vmax.f32 %v1566, 0.0
      %v1645 = vmax.f32 %v1571, 0.0
      %v1646 = vmax.f32 %v1576, 0.0
      %v1647 = vmax.f32 %v1581, 0.0
      %v1648 = vld [vmem:[%s1 + $0x180] sm:$0xff]
      %v1649 = vld [vmem:[%s1 + $0x188] sm:$0xff]
      %v1650 = vld [vmem:[%s1 + $0x190] sm:$0xff]
      %v1651 = vld [vmem:[%s1 + $0x198] sm:$0xff]
      %v1652 = vld [vmem:[%s1 + $0x1a0] sm:$0xff]
      %v1653 = vld [vmem:[%s1 + $0x1a8] sm:$0xff]
      %v1654 = vld [vmem:[%s1 + $0x1b0] sm:$0xff]
      %v1655 = vld [vmem:[%s1 + $0x1b8] sm:$0xff]
      %v1656 = vld [vmem:[%s1 + $0x1c0] sm:$0xff]
      %v1657 = vld [vmem:[%s1 + $0x1c8] sm:$0xff]
      %v1658 = vld [vmem:[%s1 + $0x1d0] sm:$0xff]
      %v1659 = vld [vmem:[%s1 + $0x1d8] sm:$0xff]
      %v1660 = vld [vmem:[%s1 + $0x1e0] sm:$0xff]
      %v1661 = vld [vmem:[%s1 + $0x1e8] sm:$0xff]
      %v1662 = vld [vmem:[%s1 + $0x1f0] sm:$0xff]
      %v1663 = vld [vmem:[%s1 + $0x1f8] sm:$0xff]
      %v1664 = vld [vmem:[%s2 + $0x3] sm:$0x1]
      %v1665 = vlaneseq
      %v1666 = vshrl.u32 %v1665, 7
      %v1667 = vsub.s32 0, %v1666
      %v1668 = vrot.slane %v1664, %v1667
      %1669 = vmatprep.subr.mxu0 0.0
      %1670 = vmatpush1.msra.mxu0 %v1648
      %1671 = vmatprep.subr.mxu0 0.0
      %1672 = vmatpush1.msra.mxu0 %v1649
      %1673 = vmatprep.subr.mxu0 0.0
      %1674 = vmatpush1.msra.mxu0 %v1650
      %1675 = vmatprep.subr.mxu0 0.0
      %1676 = vmatpush1.msra.mxu0 %v1651
      %1677 = vmatprep.subr.mxu0 0.0
      %1678 = vmatpush1.msra.mxu0 %v1652
      %1679 = vmatprep.subr.mxu0 0.0
      %1680 = vmatpush1.msra.mxu0 %v1653
      %1681 = vmatprep.subr.mxu0 0.0
      %1682 = vmatpush1.msra.mxu0 %v1654
      %1683 = vmatprep.subr.mxu0 0.0
      %1684 = vmatpush1.msra.mxu0 %v1655
      %1685 = vmatprep.subr.mxu0 0.0
      %1686 = vmatpush1.msra.mxu0 %v1656
      %1687 = vmatprep.subr.mxu0 0.0
      %1688 = vmatpush1.msra.mxu0 %v1657
      %1689 = vmatprep.subr.mxu0 0.0
      %1690 = vmatpush1.msra.mxu0 %v1658
      %1691 = vmatprep.subr.mxu0 0.0
      %1692 = vmatpush1.msra.mxu0 %v1659
      %1693 = vmatprep.subr.mxu0 0.0
      %1694 = vmatpush1.msra.mxu0 %v1660
      %1695 = vmatprep.subr.mxu0 0.0
      %1696 = vmatpush1.msra.mxu0 %v1661
      %1697 = vmatprep.subr.mxu0 0.0
      %1698 = vmatpush1.msra.mxu0 %v1662
      %1699 = vmatprep.subr.mxu0 0.0
      %1700 = vmatpush1.msra.mxu0 %v1663
      %1701 = vmatprep.subr.mxu0 0.0
      %1702 = vmatpush1.msra.mxu0 0.0
      %1703 = vmatprep.subr.mxu0 0.0
      %1704 = vmatpush1.msra.mxu0 0.0
      %1705 = vmatprep.subr.mxu0 0.0
      %1706 = vmatpush1.msra.mxu0 0.0
      %1707 = vmatprep.subr.mxu0 0.0
      %1708 = vmatpush1.msra.mxu0 0.0
      %1709 = vmatprep.subr.mxu0 0.0
      %1710 = vmatpush1.msra.mxu0 0.0
      %1711 = vmatprep.subr.mxu0 0.0
      %1712 = vmatpush1.msra.mxu0 0.0
      %1713 = vmatprep.subr.mxu0 0.0
      %1714 = vmatpush1.msra.mxu0 0.0
      %1715 = vmatprep.subr.mxu0 0.0
      %1716 = vmatpush1.msra.mxu0 0.0
      %1717 = vmatprep.subr.mxu0 0.0
      %1718 = vmatpush1.msra.mxu0 0.0
      %1719 = vmatprep.subr.mxu0 0.0
      %1720 = vmatpush1.msra.mxu0 0.0
      %1721 = vmatprep.subr.mxu0 0.0
      %1722 = vmatpush1.msra.mxu0 0.0
      %1723 = vmatprep.subr.mxu0 0.0
      %1724 = vmatpush1.msra.mxu0 0.0
      %1725 = vmatprep.subr.mxu0 0.0
      %1726 = vmatpush1.msra.mxu0 0.0
      %1727 = vmatprep.subr.mxu0 0.0
      %1728 = vmatpush1.msra.mxu0 0.0
      %1729 = vmatprep.subr.mxu0 0.0
      %1730 = vmatpush1.msra.mxu0 0.0
      %1731 = vmatprep.subr.mxu0 0.0
      %1732 = vmatpush1.msra.mxu0 0.0
      %1733 = vmatprep.mubr.f32.mxu0 0.0
      %1734 = vmatmul.mubr.f32.gmra.mrb[0].mxu0 %v1584
      %v1735 = vpop.f32.mrb[0].mxu0
      %v1736 = vadd.f32 %v1668, %v1735
      %v1737 = vpop.f32.mrb[0].mxu0
      %1738 = vmatprep.mubr.f32.mxu0 0.0
      %1739 = vmatmul.mubr.f32.gmra.mrb[0].mxu0 %v1585
      %v1740 = vpop.f32.mrb[0].mxu0
      %v1741 = vadd.f32 %v1668, %v1740
      %v1742 = vpop.f32.mrb[0].mxu0
      %1743 = vmatprep.mubr.f32.mxu0 0.0
      %1744 = vmatmul.mubr.f32.gmra.mrb[0].mxu0 %v1586
      %v1745 = vpop.f32.mrb[0].mxu0
      %v1746 = vadd.f32 %v1668, %v1745
      %v1747 = vpop.f32.mrb[0].mxu0
      %1748 = vmatprep.mubr.f32.mxu0 0.0
      %1749 = vmatmul.mubr.f32.gmra.mrb[0].mxu0 %v1587
      %v1750 = vpop.f32.mrb[0].mxu0
      %v1751 = vadd.f32 %v1668, %v1750
      %v1752 = vpop.f32.mrb[0].mxu0
      %1753 = vmatprep.mubr.f32.mxu0 0.0
      %1754 = vmatmul.mubr.f32.gmra.mrb[0].mxu0 %v1588
      %v1755 = vpop.f32.mrb[0].mxu0
      %v1756 = vadd.f32 %v1668, %v1755
      %v1757 = vpop.f32.mrb[0].mxu0
      %1758 = vmatprep.mubr.f32.mxu0 0.0
      %1759 = vmatmul.mubr.f32.gmra.mrb[0].mxu0 %v1589
      %v1760 = vpop.f32.mrb[0].mxu0
      %v1761 = vadd.f32 %v1668, %v1760
      %v1762 = vpop.f32.mrb[0].mxu0
      %1763 = vmatprep.mubr.f32.mxu0 0.0
      %1764 = vmatmul.mubr.f32.gmra.mrb[0].mxu0 %v1590
      %v1765 = vpop.f32.mrb[0].mxu0
      %v1766 = vadd.f32 %v1668, %v1765
      %v1767 = vpop.f32.mrb[0].mxu0
      %1768 = vmatprep.mubr.f32.mxu0 0.0
      %1769 = vmatmul.mubr.f32.gmra.mrb[0].mxu0 %v1591
      %v1770 = vpop.f32.mrb[0].mxu0
      %v1771 = vadd.f32 %v1668, %v1770
      %v1772 = vpop.f32.mrb[0].mxu0
      %1773 = vmatprep.mubr.f32.mxu0 0.0
      %1774 = vmatmul.mubr.f32.gmra.mrb[0].mxu0 %v1592
      %v1775 = vpop.f32.mrb[0].mxu0
      %v1776 = vadd.f32 %v1668, %v1775
      %v1777 = vpop.f32.mrb[0].mxu0
      %1778 = vmatprep.mubr.f32.mxu0 0.0
      %1779 = vmatmul.mubr.f32.gmra.mrb[0].mxu0 %v1593
      %v1780 = vpop.f32.mrb[0].mxu0
      %v1781 = vadd.f32 %v1668, %v1780
      %v1782 = vpop.f32.mrb[0].mxu0
      %1783 = vmatprep.mubr.f32.mxu0 0.0
      %1784 = vmatmul.mubr.f32.gmra.mrb[0].mxu0 %v1594
      %v1785 = vpop.f32.mrb[0].mxu0
      %v1786 = vadd.f32 %v1668, %v1785
      %v1787 = vpop.f32.mrb[0].mxu0
      %1788 = vmatprep.mubr.f32.mxu0 0.0
      %1789 = vmatmul.mubr.f32.gmra.mrb[0].mxu0 %v1595
      %v1790 = vpop.f32.mrb[0].mxu0
      %v1791 = vadd.f32 %v1668, %v1790
      %v1792 = vpop.f32.mrb[0].mxu0
      %1793 = vmatprep.mubr.f32.mxu0 0.0
      %1794 = vmatmul.mubr.f32.gmra.mrb[0].mxu0 %v1596
      %v1795 = vpop.f32.mrb[0].mxu0
      %v1796 = vadd.f32 %v1668, %v1795
      %v1797 = vpop.f32.mrb[0].mxu0
      %1798 = vmatprep.mubr.f32.mxu0 0.0
      %1799 = vmatmul.mubr.f32.gmra.mrb[0].mxu0 %v1597
      %v1800 = vpop.f32.mrb[0].mxu0
      %v1801 = vadd.f32 %v1668, %v1800
      %v1802 = vpop.f32.mrb[0].mxu0
      %1803 = vmatprep.mubr.f32.mxu0 0.0
      %1804 = vmatmul.mubr.f32.gmra.mrb[0].mxu0 %v1598
      %v1805 = vpop.f32.mrb[0].mxu0
      %v1806 = vadd.f32 %v1668, %v1805
      %v1807 = vpop.f32.mrb[0].mxu0
      %1808 = vmatprep.mubr.f32.mxu0 0.0
      %1809 = vmatmul.mubr.f32.gmra.mrb[0].mxu0 %v1599
      %v1810 = vpop.f32.mrb[0].mxu0
      %v1811 = vadd.f32 %v1668, %v1810
      %v1812 = vpop.f32.mrb[0].mxu0
      %1813 = vmatprep.mubr.f32.mxu0 0.0
      %1814 = vmatmul.mubr.f32.gmra.mrb[0].mxu0 %v1600
      %v1815 = vpop.f32.mrb[0].mxu0
      %v1816 = vadd.f32 %v1668, %v1815
      %v1817 = vpop.f32.mrb[0].mxu0
      %1818 = vmatprep.mubr.f32.mxu0 0.0
      %1819 = vmatmul.mubr.f32.gmra.mrb[0].mxu0 %v1601
      %v1820 = vpop.f32.mrb[0].mxu0
      %v1821 = vadd.f32 %v1668, %v1820
      %v1822 = vpop.f32.mrb[0].mxu0
      %1823 = vmatprep.mubr.f32.mxu0 0.0
      %1824 = vmatmul.mubr.f32.gmra.mrb[0].mxu0 %v1602
      %v1825 = vpop.f32.mrb[0].mxu0
      %v1826 = vadd.f32 %v1668, %v1825
      %v1827 = vpop.f32.mrb[0].mxu0
      %1828 = vmatprep.mubr.f32.mxu0 0.0
      %1829 = vmatmul.mubr.f32.gmra.mrb[0].mxu0 %v1603
      %v1830 = vpop.f32.mrb[0].mxu0
      %v1831 = vadd.f32 %v1668, %v1830
      %v1832 = vpop.f32.mrb[0].mxu0
      %1833 = vmatprep.mubr.f32.mxu0 0.0
      %1834 = vmatmul.mubr.f32.gmra.mrb[0].mxu0 %v1604
      %v1835 = vpop.f32.mrb[0].mxu0
      %v1836 = vadd.f32 %v1668, %v1835
      %v1837 = vpop.f32.mrb[0].mxu0
      %1838 = vmatprep.mubr.f32.mxu0 0.0
      %1839 = vmatmul.mubr.f32.gmra.mrb[0].mxu0 %v1605
      %v1840 = vpop.f32.mrb[0].mxu0
      %v1841 = vadd.f32 %v1668, %v1840
      %v1842 = vpop.f32.mrb[0].mxu0
      %1843 = vmatprep.mubr.f32.mxu0 0.0
      %1844 = vmatmul.mubr.f32.gmra.mrb[0].mxu0 %v1606
      %v1845 = vpop.f32.mrb[0].mxu0
      %v1846 = vadd.f32 %v1668, %v1845
      %v1847 = vpop.f32.mrb[0].mxu0
      %1848 = vmatprep.mubr.f32.mxu0 0.0
      %1849 = vmatmul.mubr.f32.gmra.mrb[0].mxu0 %v1607
      %v1850 = vpop.f32.mrb[0].mxu0
      %v1851 = vadd.f32 %v1668, %v1850
      %v1852 = vpop.f32.mrb[0].mxu0
      %1853 = vmatprep.mubr.f32.mxu0 0.0
      %1854 = vmatmul.mubr.f32.gmra.mrb[0].mxu0 %v1608
      %v1855 = vpop.f32.mrb[0].mxu0
      %v1856 = vadd.f32 %v1668, %v1855
      %v1857 = vpop.f32.mrb[0].mxu0
      %1858 = vmatprep.mubr.f32.mxu0 0.0
      %1859 = vmatmul.mubr.f32.gmra.mrb[0].mxu0 %v1609
      %v1860 = vpop.f32.mrb[0].mxu0
      %v1861 = vadd.f32 %v1668, %v1860
      %v1862 = vpop.f32.mrb[0].mxu0
      %1863 = vmatprep.mubr.f32.mxu0 0.0
      %1864 = vmatmul.mubr.f32.gmra.mrb[0].mxu0 %v1610
      %v1865 = vpop.f32.mrb[0].mxu0
      %v1866 = vadd.f32 %v1668, %v1865
      %v1867 = vpop.f32.mrb[0].mxu0
      %1868 = vmatprep.mubr.f32.mxu0 0.0
      %1869 = vmatmul.mubr.f32.gmra.mrb[0].mxu0 %v1611
      %v1870 = vpop.f32.mrb[0].mxu0
      %v1871 = vadd.f32 %v1668, %v1870
      %v1872 = vpop.f32.mrb[0].mxu0
      %1873 = vmatprep.mubr.f32.mxu0 0.0
      %1874 = vmatmul.mubr.f32.gmra.mrb[0].mxu0 %v1612
      %v1875 = vpop.f32.mrb[0].mxu0
      %v1876 = vadd.f32 %v1668, %v1875
      %v1877 = vpop.f32.mrb[0].mxu0
      %1878 = vmatprep.mubr.f32.mxu0 0.0
      %1879 = vmatmul.mubr.f32.gmra.mrb[0].mxu0 %v1613
      %v1880 = vpop.f32.mrb[0].mxu0
      %v1881 = vadd.f32 %v1668, %v1880
      %v1882 = vpop.f32.mrb[0].mxu0
      %1883 = vmatprep.mubr.f32.mxu0 0.0
      %1884 = vmatmul.mubr.f32.gmra.mrb[0].mxu0 %v1614
      %v1885 = vpop.f32.mrb[0].mxu0
      %v1886 = vadd.f32 %v1668, %v1885
      %v1887 = vpop.f32.mrb[0].mxu0
      %1888 = vmatprep.mubr.f32.mxu0 0.0
      %1889 = vmatmul.mubr.f32.gmra.mrb[0].mxu0 %v1615
      %v1890 = vpop.f32.mrb[0].mxu0
      %v1891 = vadd.f32 %v1668, %v1890
      %v1892 = vpop.f32.mrb[0].mxu0
      %1893 = vmatprep.mubr.f32.mxu0 0.0
      %1894 = vmatmul.mubr.f32.gmra.mrb[0].mxu0 %v1616
      %v1895 = vpop.f32.mrb[0].mxu0
      %v1896 = vadd.f32 %v1668, %v1895
      %v1897 = vpop.f32.mrb[0].mxu0
      %1898 = vmatprep.mubr.f32.mxu0 0.0
      %1899 = vmatmul.mubr.f32.gmra.mrb[0].mxu0 %v1617
      %v1900 = vpop.f32.mrb[0].mxu0
      %v1901 = vadd.f32 %v1668, %v1900
      %v1902 = vpop.f32.mrb[0].mxu0
      %1903 = vmatprep.mubr.f32.mxu0 0.0
      %1904 = vmatmul.mubr.f32.gmra.mrb[0].mxu0 %v1618
      %v1905 = vpop.f32.mrb[0].mxu0
      %v1906 = vadd.f32 %v1668, %v1905
      %v1907 = vpop.f32.mrb[0].mxu0
      %1908 = vmatprep.mubr.f32.mxu0 0.0
      %1909 = vmatmul.mubr.f32.gmra.mrb[0].mxu0 %v1619
      %v1910 = vpop.f32.mrb[0].mxu0
      %v1911 = vadd.f32 %v1668, %v1910
      %v1912 = vpop.f32.mrb[0].mxu0
      %1913 = vmatprep.mubr.f32.mxu0 0.0
      %1914 = vmatmul.mubr.f32.gmra.mrb[0].mxu0 %v1620
      %v1915 = vpop.f32.mrb[0].mxu0
      %v1916 = vadd.f32 %v1668, %v1915
      %v1917 = vpop.f32.mrb[0].mxu0
      %1918 = vmatprep.mubr.f32.mxu0 0.0
      %1919 = vmatmul.mubr.f32.gmra.mrb[0].mxu0 %v1621
      %v1920 = vpop.f32.mrb[0].mxu0
      %v1921 = vadd.f32 %v1668, %v1920
      %v1922 = vpop.f32.mrb[0].mxu0
      %1923 = vmatprep.mubr.f32.mxu0 0.0
      %1924 = vmatmul.mubr.f32.gmra.mrb[0].mxu0 %v1622
      %v1925 = vpop.f32.mrb[0].mxu0
      %v1926 = vadd.f32 %v1668, %v1925
      %v1927 = vpop.f32.mrb[0].mxu0
      %1928 = vmatprep.mubr.f32.mxu0 0.0
      %1929 = vmatmul.mubr.f32.gmra.mrb[0].mxu0 %v1623
      %v1930 = vpop.f32.mrb[0].mxu0
      %v1931 = vadd.f32 %v1668, %v1930
      %v1932 = vpop.f32.mrb[0].mxu0
      %1933 = vmatprep.mubr.f32.mxu0 0.0
      %1934 = vmatmul.mubr.f32.gmra.mrb[0].mxu0 %v1624
      %v1935 = vpop.f32.mrb[0].mxu0
      %v1936 = vadd.f32 %v1668, %v1935
      %v1937 = vpop.f32.mrb[0].mxu0
      %1938 = vmatprep.mubr.f32.mxu0 0.0
      %1939 = vmatmul.mubr.f32.gmra.mrb[0].mxu0 %v1625
      %v1940 = vpop.f32.mrb[0].mxu0
      %v1941 = vadd.f32 %v1668, %v1940
      %v1942 = vpop.f32.mrb[0].mxu0
      %1943 = vmatprep.mubr.f32.mxu0 0.0
      %1944 = vmatmul.mubr.f32.gmra.mrb[0].mxu0 %v1626
      %v1945 = vpop.f32.mrb[0].mxu0
      %v1946 = vadd.f32 %v1668, %v1945
      %v1947 = vpop.f32.mrb[0].mxu0
      %1948 = vmatprep.mubr.f32.mxu0 0.0
      %1949 = vmatmul.mubr.f32.gmra.mrb[0].mxu0 %v1627
      %v1950 = vpop.f32.mrb[0].mxu0
      %v1951 = vadd.f32 %v1668, %v1950
      %v1952 = vpop.f32.mrb[0].mxu0
      %1953 = vmatprep.mubr.f32.mxu0 0.0
      %1954 = vmatmul.mubr.f32.gmra.mrb[0].mxu0 %v1628
      %v1955 = vpop.f32.mrb[0].mxu0
      %v1956 = vadd.f32 %v1668, %v1955
      %v1957 = vpop.f32.mrb[0].mxu0
      %1958 = vmatprep.mubr.f32.mxu0 0.0
      %1959 = vmatmul.mubr.f32.gmra.mrb[0].mxu0 %v1629
      %v1960 = vpop.f32.mrb[0].mxu0
      %v1961 = vadd.f32 %v1668, %v1960
      %v1962 = vpop.f32.mrb[0].mxu0
      %1963 = vmatprep.mubr.f32.mxu0 0.0
      %1964 = vmatmul.mubr.f32.gmra.mrb[0].mxu0 %v1630
      %v1965 = vpop.f32.mrb[0].mxu0
      %v1966 = vadd.f32 %v1668, %v1965
      %v1967 = vpop.f32.mrb[0].mxu0
      %1968 = vmatprep.mubr.f32.mxu0 0.0
      %1969 = vmatmul.mubr.f32.gmra.mrb[0].mxu0 %v1631
      %v1970 = vpop.f32.mrb[0].mxu0
      %v1971 = vadd.f32 %v1668, %v1970
      %v1972 = vpop.f32.mrb[0].mxu0
      %1973 = vmatprep.mubr.f32.mxu0 0.0
      %1974 = vmatmul.mubr.f32.gmra.mrb[0].mxu0 %v1632
      %v1975 = vpop.f32.mrb[0].mxu0
      %v1976 = vadd.f32 %v1668, %v1975
      %v1977 = vpop.f32.mrb[0].mxu0
      %1978 = vmatprep.mubr.f32.mxu0 0.0
      %1979 = vmatmul.mubr.f32.gmra.mrb[0].mxu0 %v1633
      %v1980 = vpop.f32.mrb[0].mxu0
      %v1981 = vadd.f32 %v1668, %v1980
      %v1982 = vpop.f32.mrb[0].mxu0
      %1983 = vmatprep.mubr.f32.mxu0 0.0
      %1984 = vmatmul.mubr.f32.gmra.mrb[0].mxu0 %v1634
      %v1985 = vpop.f32.mrb[0].mxu0
      %v1986 = vadd.f32 %v1668, %v1985
      %v1987 = vpop.f32.mrb[0].mxu0
      %1988 = vmatprep.mubr.f32.mxu0 0.0
      %1989 = vmatmul.mubr.f32.gmra.mrb[0].mxu0 %v1635
      %v1990 = vpop.f32.mrb[0].mxu0
      %v1991 = vadd.f32 %v1668, %v1990
      %v1992 = vpop.f32.mrb[0].mxu0
      %1993 = vmatprep.mubr.f32.mxu0 0.0
      %1994 = vmatmul.mubr.f32.gmra.mrb[0].mxu0 %v1636
      %v1995 = vpop.f32.mrb[0].mxu0
      %v1996 = vadd.f32 %v1668, %v1995
      %v1997 = vpop.f32.mrb[0].mxu0
      %1998 = vmatprep.mubr.f32.mxu0 0.0
      %1999 = vmatmul.mubr.f32.gmra.mrb[0].mxu0 %v1637
      %v2000 = vpop.f32.mrb[0].mxu0
      %v2001 = vadd.f32 %v1668, %v2000
      %v2002 = vpop.f32.mrb[0].mxu0
      %2003 = vmatprep.mubr.f32.mxu0 0.0
      %2004 = vmatmul.mubr.f32.gmra.mrb[0].mxu0 %v1638
      %v2005 = vpop.f32.mrb[0].mxu0
      %v2006 = vadd.f32 %v1668, %v2005
      %v2007 = vpop.f32.mrb[0].mxu0
      %2008 = vmatprep.mubr.f32.mxu0 0.0
      %2009 = vmatmul.mubr.f32.gmra.mrb[0].mxu0 %v1639
      %v2010 = vpop.f32.mrb[0].mxu0
      %v2011 = vadd.f32 %v1668, %v2010
      %v2012 = vpop.f32.mrb[0].mxu0
      %2013 = vmatprep.mubr.f32.mxu0 0.0
      %2014 = vmatmul.mubr.f32.gmra.mrb[0].mxu0 %v1640
      %v2015 = vpop.f32.mrb[0].mxu0
      %v2016 = vadd.f32 %v1668, %v2015
      %v2017 = vpop.f32.mrb[0].mxu0
      %2018 = vmatprep.mubr.f32.mxu0 0.0
      %2019 = vmatmul.mubr.f32.gmra.mrb[0].mxu0 %v1641
      %v2020 = vpop.f32.mrb[0].mxu0
      %v2021 = vadd.f32 %v1668, %v2020
      %v2022 = vpop.f32.mrb[0].mxu0
      %2023 = vmatprep.mubr.f32.mxu0 0.0
      %2024 = vmatmul.mubr.f32.gmra.mrb[0].mxu0 %v1642
      %v2025 = vpop.f32.mrb[0].mxu0
      %v2026 = vadd.f32 %v1668, %v2025
      %v2027 = vpop.f32.mrb[0].mxu0
      %2028 = vmatprep.mubr.f32.mxu0 0.0
      %2029 = vmatmul.mubr.f32.gmra.mrb[0].mxu0 %v1643
      %v2030 = vpop.f32.mrb[0].mxu0
      %v2031 = vadd.f32 %v1668, %v2030
      %v2032 = vpop.f32.mrb[0].mxu0
      %2033 = vmatprep.mubr.f32.mxu0 0.0
      %2034 = vmatmul.mubr.f32.gmra.mrb[0].mxu0 %v1644
      %v2035 = vpop.f32.mrb[0].mxu0
      %v2036 = vadd.f32 %v1668, %v2035
      %v2037 = vpop.f32.mrb[0].mxu0
      %2038 = vmatprep.mubr.f32.mxu0 0.0
      %2039 = vmatmul.mubr.f32.gmra.mrb[0].mxu0 %v1645
      %v2040 = vpop.f32.mrb[0].mxu0
      %v2041 = vadd.f32 %v1668, %v2040
      %v2042 = vpop.f32.mrb[0].mxu0
      %2043 = vmatprep.mubr.f32.mxu0 0.0
      %2044 = vmatmul.mubr.f32.gmra.mrb[0].mxu0 %v1646
      %v2045 = vpop.f32.mrb[0].mxu0
      %v2046 = vadd.f32 %v1668, %v2045
      %v2047 = vpop.f32.mrb[0].mxu0
      %2048 = vmatprep.mubr.f32.mxu0 0.0
      %2049 = vmatmul.mubr.f32.gmra.mrb[0].mxu0 %v1647
      %v2050 = vpop.f32.mrb[0].mxu0
      %v2051 = vadd.f32 %v1668, %v2050
      %v2052 = vpop.f32.mrb[0].mxu0
      %2053 = vdwg.mxu0
      %v2054 = vmax.f32 %v1736, 0.0
      %v2055 = vmax.f32 %v1741, 0.0
      %v2056 = vmax.f32 %v1746, 0.0
      %v2057 = vmax.f32 %v1751, 0.0
      %v2058 = vmax.f32 %v1756, 0.0
      %v2059 = vmax.f32 %v1761, 0.0
      %v2060 = vmax.f32 %v1766, 0.0
      %v2061 = vmax.f32 %v1771, 0.0
      %v2062 = vmax.f32 %v1776, 0.0
      %v2063 = vmax.f32 %v1781, 0.0
      %v2064 = vmax.f32 %v1786, 0.0
      %v2065 = vmax.f32 %v1791, 0.0
      %v2066 = vmax.f32 %v1796, 0.0
      %v2067 = vmax.f32 %v1801, 0.0
      %v2068 = vmax.f32 %v1806, 0.0
      %v2069 = vmax.f32 %v1811, 0.0
      %v2070 = vmax.f32 %v1816, 0.0
      %v2071 = vmax.f32 %v1821, 0.0
      %v2072 = vmax.f32 %v1826, 0.0
      %v2073 = vmax.f32 %v1831, 0.0
      %v2074 = vmax.f32 %v1836, 0.0
      %v2075 = vmax.f32 %v1841, 0.0
      %v2076 = vmax.f32 %v1846, 0.0
      %v2077 = vmax.f32 %v1851, 0.0
      %v2078 = vmax.f32 %v1856, 0.0
      %v2079 = vmax.f32 %v1861, 0.0
      %v2080 = vmax.f32 %v1866, 0.0
      %v2081 = vmax.f32 %v1871, 0.0
      %v2082 = vmax.f32 %v1876, 0.0
      %v2083 = vmax.f32 %v1881, 0.0
      %v2084 = vmax.f32 %v1886, 0.0
      %v2085 = vmax.f32 %v1891, 0.0
      %v2086 = vmax.f32 %v1896, 0.0
      %v2087 = vmax.f32 %v1901, 0.0
      %v2088 = vmax.f32 %v1906, 0.0
      %v2089 = vmax.f32 %v1911, 0.0
      %v2090 = vmax.f32 %v1916, 0.0
      %v2091 = vmax.f32 %v1921, 0.0
      %v2092 = vmax.f32 %v1926, 0.0
      %v2093 = vmax.f32 %v1931, 0.0
      %v2094 = vmax.f32 %v1936, 0.0
      %v2095 = vmax.f32 %v1941, 0.0
      %v2096 = vmax.f32 %v1946, 0.0
      %v2097 = vmax.f32 %v1951, 0.0
      %v2098 = vmax.f32 %v1956, 0.0
      %v2099 = vmax.f32 %v1961, 0.0
      %v2100 = vmax.f32 %v1966, 0.0
      %v2101 = vmax.f32 %v1971, 0.0
      %v2102 = vmax.f32 %v1976, 0.0
      %v2103 = vmax.f32 %v1981, 0.0
      %v2104 = vmax.f32 %v1986, 0.0
      %v2105 = vmax.f32 %v1991, 0.0
      %v2106 = vmax.f32 %v1996, 0.0
      %v2107 = vmax.f32 %v2001, 0.0
      %v2108 = vmax.f32 %v2006, 0.0
      %v2109 = vmax.f32 %v2011, 0.0
      %v2110 = vmax.f32 %v2016, 0.0
      %v2111 = vmax.f32 %v2021, 0.0
      %v2112 = vmax.f32 %v2026, 0.0
      %v2113 = vmax.f32 %v2031, 0.0
      %v2114 = vmax.f32 %v2036, 0.0
      %v2115 = vmax.f32 %v2041, 0.0
      %v2116 = vmax.f32 %v2046, 0.0
      %v2117 = vmax.f32 %v2051, 0.0
      %v2118 = vld [vmem:[%s1 + $0x200] sm:$0xff]
      %v2119 = vld [vmem:[%s1 + $0x208] sm:$0xff]
      %v2120 = vld [vmem:[%s1 + $0x210] sm:$0xff]
      %v2121 = vld [vmem:[%s1 + $0x218] sm:$0xff]
      %v2122 = vld [vmem:[%s1 + $0x220] sm:$0xff]
      %v2123 = vld [vmem:[%s1 + $0x228] sm:$0xff]
      %v2124 = vld [vmem:[%s1 + $0x230] sm:$0xff]
      %v2125 = vld [vmem:[%s1 + $0x238] sm:$0xff]
      %v2126 = vld [vmem:[%s1 + $0x240] sm:$0xff]
      %v2127 = vld [vmem:[%s1 + $0x248] sm:$0xff]
      %v2128 = vld [vmem:[%s1 + $0x250] sm:$0xff]
      %v2129 = vld [vmem:[%s1 + $0x258] sm:$0xff]
      %v2130 = vld [vmem:[%s1 + $0x260] sm:$0xff]
      %v2131 = vld [vmem:[%s1 + $0x268] sm:$0xff]
      %v2132 = vld [vmem:[%s1 + $0x270] sm:$0xff]
      %v2133 = vld [vmem:[%s1 + $0x278] sm:$0xff]
      %v2134 = vld [vmem:[%s2 + $0x4] sm:$0x1]
      %v2135 = vlaneseq
      %v2136 = vshrl.u32 %v2135, 7
      %v2137 = vsub.s32 0, %v2136
      %v2138 = vrot.slane %v2134, %v2137
      %2139 = vmatprep.subr.mxu0 0.0
      %2140 = vmatpush1.msra.mxu0 %v2118
      %2141 = vmatprep.subr.mxu0 0.0
      %2142 = vmatpush1.msra.mxu0 %v2119
      %2143 = vmatprep.subr.mxu0 0.0
      %2144 = vmatpush1.msra.mxu0 %v2120
      %2145 = vmatprep.subr.mxu0 0.0
      %2146 = vmatpush1.msra.mxu0 %v2121
      %2147 = vmatprep.subr.mxu0 0.0
      %2148 = vmatpush1.msra.mxu0 %v2122
      %2149 = vmatprep.subr.mxu0 0.0
      %2150 = vmatpush1.msra.mxu0 %v2123
      %2151 = vmatprep.subr.mxu0 0.0
      %2152 = vmatpush1.msra.mxu0 %v2124
      %2153 = vmatprep.subr.mxu0 0.0
      %2154 = vmatpush1.msra.mxu0 %v2125
      %2155 = vmatprep.subr.mxu0 0.0
      %2156 = vmatpush1.msra.mxu0 %v2126
      %2157 = vmatprep.subr.mxu0 0.0
      %2158 = vmatpush1.msra.mxu0 %v2127
      %2159 = vmatprep.subr.mxu0 0.0
      %2160 = vmatpush1.msra.mxu0 %v2128
      %2161 = vmatprep.subr.mxu0 0.0
      %2162 = vmatpush1.msra.mxu0 %v2129
      %2163 = vmatprep.subr.mxu0 0.0
      %2164 = vmatpush1.msra.mxu0 %v2130
      %2165 = vmatprep.subr.mxu0 0.0
      %2166 = vmatpush1.msra.mxu0 %v2131
      %2167 = vmatprep.subr.mxu0 0.0
      %2168 = vmatpush1.msra.mxu0 %v2132
      %2169 = vmatprep.subr.mxu0 0.0
      %2170 = vmatpush1.msra.mxu0 %v2133
      %2171 = vmatprep.subr.mxu0 0.0
      %2172 = vmatpush1.msra.mxu0 0.0
      %2173 = vmatprep.subr.mxu0 0.0
      %2174 = vmatpush1.msra.mxu0 0.0
      %2175 = vmatprep.subr.mxu0 0.0
      %2176 = vmatpush1.msra.mxu0 0.0
      %2177 = vmatprep.subr.mxu0 0.0
      %2178 = vmatpush1.msra.mxu0 0.0
      %2179 = vmatprep.subr.mxu0 0.0
      %2180 = vmatpush1.msra.mxu0 0.0
      %2181 = vmatprep.subr.mxu0 0.0
      %2182 = vmatpush1.msra.mxu0 0.0
      %2183 = vmatprep.subr.mxu0 0.0
      %2184 = vmatpush1.msra.mxu0 0.0
      %2185 = vmatprep.subr.mxu0 0.0
      %2186 = vmatpush1.msra.mxu0 0.0
      %2187 = vmatprep.subr.mxu0 0.0
      %2188 = vmatpush1.msra.mxu0 0.0
      %2189 = vmatprep.subr.mxu0 0.0
      %2190 = vmatpush1.msra.mxu0 0.0
      %2191 = vmatprep.subr.mxu0 0.0
      %2192 = vmatpush1.msra.mxu0 0.0
      %2193 = vmatprep.subr.mxu0 0.0
      %2194 = vmatpush1.msra.mxu0 0.0
      %2195 = vmatprep.subr.mxu0 0.0
      %2196 = vmatpush1.msra.mxu0 0.0
      %2197 = vmatprep.subr.mxu0 0.0
      %2198 = vmatpush1.msra.mxu0 0.0
      %2199 = vmatprep.subr.mxu0 0.0
      %2200 = vmatpush1.msra.mxu0 0.0
      %2201 = vmatprep.subr.mxu0 0.0
      %2202 = vmatpush1.msra.mxu0 0.0
      %2203 = vmatprep.mubr.f32.mxu0 0.0
      %2204 = vmatmul.mubr.f32.gmra.mrb[0].mxu0 %v2054
      %v2205 = vpop.f32.mrb[0].mxu0
      %v2206 = vadd.f32 %v2138, %v2205
      %v2207 = vpop.f32.mrb[0].mxu0
      %2208 = vmatprep.mubr.f32.mxu0 0.0
      %2209 = vmatmul.mubr.f32.gmra.mrb[0].mxu0 %v2055
      %v2210 = vpop.f32.mrb[0].mxu0
      %v2211 = vadd.f32 %v2138, %v2210
      %v2212 = vpop.f32.mrb[0].mxu0
      %2213 = vmatprep.mubr.f32.mxu0 0.0
      %2214 = vmatmul.mubr.f32.gmra.mrb[0].mxu0 %v2056
      %v2215 = vpop.f32.mrb[0].mxu0
      %v2216 = vadd.f32 %v2138, %v2215
      %v2217 = vpop.f32.mrb[0].mxu0
      %2218 = vmatprep.mubr.f32.mxu0 0.0
      %2219 = vmatmul.mubr.f32.gmra.mrb[0].mxu0 %v2057
      %v2220 = vpop.f32.mrb[0].mxu0
      %v2221 = vadd.f32 %v2138, %v2220
      %v2222 = vpop.f32.mrb[0].mxu0
      %2223 = vmatprep.mubr.f32.mxu0 0.0
      %2224 = vmatmul.mubr.f32.gmra.mrb[0].mxu0 %v2058
      %v2225 = vpop.f32.mrb[0].mxu0
      %v2226 = vadd.f32 %v2138, %v2225
      %v2227 = vpop.f32.mrb[0].mxu0
      %2228 = vmatprep.mubr.f32.mxu0 0.0
      %2229 = vmatmul.mubr.f32.gmra.mrb[0].mxu0 %v2059
      %v2230 = vpop.f32.mrb[0].mxu0
      %v2231 = vadd.f32 %v2138, %v2230
      %v2232 = vpop.f32.mrb[0].mxu0
      %2233 = vmatprep.mubr.f32.mxu0 0.0
      %2234 = vmatmul.mubr.f32.gmra.mrb[0].mxu0 %v2060
      %v2235 = vpop.f32.mrb[0].mxu0
      %v2236 = vadd.f32 %v2138, %v2235
      %v2237 = vpop.f32.mrb[0].mxu0
      %2238 = vmatprep.mubr.f32.mxu0 0.0
      %2239 = vmatmul.mubr.f32.gmra.mrb[0].mxu0 %v2061
      %v2240 = vpop.f32.mrb[0].mxu0
      %v2241 = vadd.f32 %v2138, %v2240
      %v2242 = vpop.f32.mrb[0].mxu0
      %2243 = vmatprep.mubr.f32.mxu0 0.0
      %2244 = vmatmul.mubr.f32.gmra.mrb[0].mxu0 %v2062
      %v2245 = vpop.f32.mrb[0].mxu0
      %v2246 = vadd.f32 %v2138, %v2245
      %v2247 = vpop.f32.mrb[0].mxu0
      %2248 = vmatprep.mubr.f32.mxu0 0.0
      %2249 = vmatmul.mubr.f32.gmra.mrb[0].mxu0 %v2063
      %v2250 = vpop.f32.mrb[0].mxu0
      %v2251 = vadd.f32 %v2138, %v2250
      %v2252 = vpop.f32.mrb[0].mxu0
      %2253 = vmatprep.mubr.f32.mxu0 0.0
      %2254 = vmatmul.mubr.f32.gmra.mrb[0].mxu0 %v2064
      %v2255 = vpop.f32.mrb[0].mxu0
      %v2256 = vadd.f32 %v2138, %v2255
      %v2257 = vpop.f32.mrb[0].mxu0
      %2258 = vmatprep.mubr.f32.mxu0 0.0
      %2259 = vmatmul.mubr.f32.gmra.mrb[0].mxu0 %v2065
      %v2260 = vpop.f32.mrb[0].mxu0
      %v2261 = vadd.f32 %v2138, %v2260
      %v2262 = vpop.f32.mrb[0].mxu0
      %2263 = vmatprep.mubr.f32.mxu0 0.0
      %2264 = vmatmul.mubr.f32.gmra.mrb[0].mxu0 %v2066
      %v2265 = vpop.f32.mrb[0].mxu0
      %v2266 = vadd.f32 %v2138, %v2265
      %v2267 = vpop.f32.mrb[0].mxu0
      %2268 = vmatprep.mubr.f32.mxu0 0.0
      %2269 = vmatmul.mubr.f32.gmra.mrb[0].mxu0 %v2067
      %v2270 = vpop.f32.mrb[0].mxu0
      %v2271 = vadd.f32 %v2138, %v2270
      %v2272 = vpop.f32.mrb[0].mxu0
      %2273 = vmatprep.mubr.f32.mxu0 0.0
      %2274 = vmatmul.mubr.f32.gmra.mrb[0].mxu0 %v2068
      %v2275 = vpop.f32.mrb[0].mxu0
      %v2276 = vadd.f32 %v2138, %v2275
      %v2277 = vpop.f32.mrb[0].mxu0
      %2278 = vmatprep.mubr.f32.mxu0 0.0
      %2279 = vmatmul.mubr.f32.gmra.mrb[0].mxu0 %v2069
      %v2280 = vpop.f32.mrb[0].mxu0
      %v2281 = vadd.f32 %v2138, %v2280
      %v2282 = vpop.f32.mrb[0].mxu0
      %2283 = vmatprep.mubr.f32.mxu0 0.0
      %2284 = vmatmul.mubr.f32.gmra.mrb[0].mxu0 %v2070
      %v2285 = vpop.f32.mrb[0].mxu0
      %v2286 = vadd.f32 %v2138, %v2285
      %v2287 = vpop.f32.mrb[0].mxu0
      %2288 = vmatprep.mubr.f32.mxu0 0.0
      %2289 = vmatmul.mubr.f32.gmra.mrb[0].mxu0 %v2071
      %v2290 = vpop.f32.mrb[0].mxu0
      %v2291 = vadd.f32 %v2138, %v2290
      %v2292 = vpop.f32.mrb[0].mxu0
      %2293 = vmatprep.mubr.f32.mxu0 0.0
      %2294 = vmatmul.mubr.f32.gmra.mrb[0].mxu0 %v2072
      %v2295 = vpop.f32.mrb[0].mxu0
      %v2296 = vadd.f32 %v2138, %v2295
      %v2297 = vpop.f32.mrb[0].mxu0
      %2298 = vmatprep.mubr.f32.mxu0 0.0
      %2299 = vmatmul.mubr.f32.gmra.mrb[0].mxu0 %v2073
      %v2300 = vpop.f32.mrb[0].mxu0
      %v2301 = vadd.f32 %v2138, %v2300
      %v2302 = vpop.f32.mrb[0].mxu0
      %2303 = vmatprep.mubr.f32.mxu0 0.0
      %2304 = vmatmul.mubr.f32.gmra.mrb[0].mxu0 %v2074
      %v2305 = vpop.f32.mrb[0].mxu0
      %v2306 = vadd.f32 %v2138, %v2305
      %v2307 = vpop.f32.mrb[0].mxu0
      %2308 = vmatprep.mubr.f32.mxu0 0.0
      %2309 = vmatmul.mubr.f32.gmra.mrb[0].mxu0 %v2075
      %v2310 = vpop.f32.mrb[0].mxu0
      %v2311 = vadd.f32 %v2138, %v2310
      %v2312 = vpop.f32.mrb[0].mxu0
      %2313 = vmatprep.mubr.f32.mxu0 0.0
      %2314 = vmatmul.mubr.f32.gmra.mrb[0].mxu0 %v2076
      %v2315 = vpop.f32.mrb[0].mxu0
      %v2316 = vadd.f32 %v2138, %v2315
      %v2317 = vpop.f32.mrb[0].mxu0
      %2318 = vmatprep.mubr.f32.mxu0 0.0
      %2319 = vmatmul.mubr.f32.gmra.mrb[0].mxu0 %v2077
      %v2320 = vpop.f32.mrb[0].mxu0
      %v2321 = vadd.f32 %v2138, %v2320
      %v2322 = vpop.f32.mrb[0].mxu0
      %2323 = vmatprep.mubr.f32.mxu0 0.0
      %2324 = vmatmul.mubr.f32.gmra.mrb[0].mxu0 %v2078
      %v2325 = vpop.f32.mrb[0].mxu0
      %v2326 = vadd.f32 %v2138, %v2325
      %v2327 = vpop.f32.mrb[0].mxu0
      %2328 = vmatprep.mubr.f32.mxu0 0.0
      %2329 = vmatmul.mubr.f32.gmra.mrb[0].mxu0 %v2079
      %v2330 = vpop.f32.mrb[0].mxu0
      %v2331 = vadd.f32 %v2138, %v2330
      %v2332 = vpop.f32.mrb[0].mxu0
      %2333 = vmatprep.mubr.f32.mxu0 0.0
      %2334 = vmatmul.mubr.f32.gmra.mrb[0].mxu0 %v2080
      %v2335 = vpop.f32.mrb[0].mxu0
      %v2336 = vadd.f32 %v2138, %v2335
      %v2337 = vpop.f32.mrb[0].mxu0
      %2338 = vmatprep.mubr.f32.mxu0 0.0
      %2339 = vmatmul.mubr.f32.gmra.mrb[0].mxu0 %v2081
      %v2340 = vpop.f32.mrb[0].mxu0
      %v2341 = vadd.f32 %v2138, %v2340
      %v2342 = vpop.f32.mrb[0].mxu0
      %2343 = vmatprep.mubr.f32.mxu0 0.0
      %2344 = vmatmul.mubr.f32.gmra.mrb[0].mxu0 %v2082
      %v2345 = vpop.f32.mrb[0].mxu0
      %v2346 = vadd.f32 %v2138, %v2345
      %v2347 = vpop.f32.mrb[0].mxu0
      %2348 = vmatprep.mubr.f32.mxu0 0.0
      %2349 = vmatmul.mubr.f32.gmra.mrb[0].mxu0 %v2083
      %v2350 = vpop.f32.mrb[0].mxu0
      %v2351 = vadd.f32 %v2138, %v2350
      %v2352 = vpop.f32.mrb[0].mxu0
      %2353 = vmatprep.mubr.f32.mxu0 0.0
      %2354 = vmatmul.mubr.f32.gmra.mrb[0].mxu0 %v2084
      %v2355 = vpop.f32.mrb[0].mxu0
      %v2356 = vadd.f32 %v2138, %v2355
      %v2357 = vpop.f32.mrb[0].mxu0
      %2358 = vmatprep.mubr.f32.mxu0 0.0
      %2359 = vmatmul.mubr.f32.gmra.mrb[0].mxu0 %v2085
      %v2360 = vpop.f32.mrb[0].mxu0
      %v2361 = vadd.f32 %v2138, %v2360
      %v2362 = vpop.f32.mrb[0].mxu0
      %2363 = vmatprep.mubr.f32.mxu0 0.0
      %2364 = vmatmul.mubr.f32.gmra.mrb[0].mxu0 %v2086
      %v2365 = vpop.f32.mrb[0].mxu0
      %v2366 = vadd.f32 %v2138, %v2365
      %v2367 = vpop.f32.mrb[0].mxu0
      %2368 = vmatprep.mubr.f32.mxu0 0.0
      %2369 = vmatmul.mubr.f32.gmra.mrb[0].mxu0 %v2087
      %v2370 = vpop.f32.mrb[0].mxu0
      %v2371 = vadd.f32 %v2138, %v2370
      %v2372 = vpop.f32.mrb[0].mxu0
      %2373 = vmatprep.mubr.f32.mxu0 0.0
      %2374 = vmatmul.mubr.f32.gmra.mrb[0].mxu0 %v2088
      %v2375 = vpop.f32.mrb[0].mxu0
      %v2376 = vadd.f32 %v2138, %v2375
      %v2377 = vpop.f32.mrb[0].mxu0
      %2378 = vmatprep.mubr.f32.mxu0 0.0
      %2379 = vmatmul.mubr.f32.gmra.mrb[0].mxu0 %v2089
      %v2380 = vpop.f32.mrb[0].mxu0
      %v2381 = vadd.f32 %v2138, %v2380
      %v2382 = vpop.f32.mrb[0].mxu0
      %2383 = vmatprep.mubr.f32.mxu0 0.0
      %2384 = vmatmul.mubr.f32.gmra.mrb[0].mxu0 %v2090
      %v2385 = vpop.f32.mrb[0].mxu0
      %v2386 = vadd.f32 %v2138, %v2385
      %v2387 = vpop.f32.mrb[0].mxu0
      %2388 = vmatprep.mubr.f32.mxu0 0.0
      %2389 = vmatmul.mubr.f32.gmra.mrb[0].mxu0 %v2091
      %v2390 = vpop.f32.mrb[0].mxu0
      %v2391 = vadd.f32 %v2138, %v2390
      %v2392 = vpop.f32.mrb[0].mxu0
      %2393 = vmatprep.mubr.f32.mxu0 0.0
      %2394 = vmatmul.mubr.f32.gmra.mrb[0].mxu0 %v2092
      %v2395 = vpop.f32.mrb[0].mxu0
      %v2396 = vadd.f32 %v2138, %v2395
      %v2397 = vpop.f32.mrb[0].mxu0
      %2398 = vmatprep.mubr.f32.mxu0 0.0
      %2399 = vmatmul.mubr.f32.gmra.mrb[0].mxu0 %v2093
      %v2400 = vpop.f32.mrb[0].mxu0
      %v2401 = vadd.f32 %v2138, %v2400
      %v2402 = vpop.f32.mrb[0].mxu0
      %2403 = vmatprep.mubr.f32.mxu0 0.0
      %2404 = vmatmul.mubr.f32.gmra.mrb[0].mxu0 %v2094
      %v2405 = vpop.f32.mrb[0].mxu0
      %v2406 = vadd.f32 %v2138, %v2405
      %v2407 = vpop.f32.mrb[0].mxu0
      %2408 = vmatprep.mubr.f32.mxu0 0.0
      %2409 = vmatmul.mubr.f32.gmra.mrb[0].mxu0 %v2095
      %v2410 = vpop.f32.mrb[0].mxu0
      %v2411 = vadd.f32 %v2138, %v2410
      %v2412 = vpop.f32.mrb[0].mxu0
      %2413 = vmatprep.mubr.f32.mxu0 0.0
      %2414 = vmatmul.mubr.f32.gmra.mrb[0].mxu0 %v2096
      %v2415 = vpop.f32.mrb[0].mxu0
      %v2416 = vadd.f32 %v2138, %v2415
      %v2417 = vpop.f32.mrb[0].mxu0
      %2418 = vmatprep.mubr.f32.mxu0 0.0
      %2419 = vmatmul.mubr.f32.gmra.mrb[0].mxu0 %v2097
      %v2420 = vpop.f32.mrb[0].mxu0
      %v2421 = vadd.f32 %v2138, %v2420
      %v2422 = vpop.f32.mrb[0].mxu0
      %2423 = vmatprep.mubr.f32.mxu0 0.0
      %2424 = vmatmul.mubr.f32.gmra.mrb[0].mxu0 %v2098
      %v2425 = vpop.f32.mrb[0].mxu0
      %v2426 = vadd.f32 %v2138, %v2425
      %v2427 = vpop.f32.mrb[0].mxu0
      %2428 = vmatprep.mubr.f32.mxu0 0.0
      %2429 = vmatmul.mubr.f32.gmra.mrb[0].mxu0 %v2099
      %v2430 = vpop.f32.mrb[0].mxu0
      %v2431 = vadd.f32 %v2138, %v2430
      %v2432 = vpop.f32.mrb[0].mxu0
      %2433 = vmatprep.mubr.f32.mxu0 0.0
      %2434 = vmatmul.mubr.f32.gmra.mrb[0].mxu0 %v2100
      %v2435 = vpop.f32.mrb[0].mxu0
      %v2436 = vadd.f32 %v2138, %v2435
      %v2437 = vpop.f32.mrb[0].mxu0
      %2438 = vmatprep.mubr.f32.mxu0 0.0
      %2439 = vmatmul.mubr.f32.gmra.mrb[0].mxu0 %v2101
      %v2440 = vpop.f32.mrb[0].mxu0
      %v2441 = vadd.f32 %v2138, %v2440
      %v2442 = vpop.f32.mrb[0].mxu0
      %2443 = vmatprep.mubr.f32.mxu0 0.0
      %2444 = vmatmul.mubr.f32.gmra.mrb[0].mxu0 %v2102
      %v2445 = vpop.f32.mrb[0].mxu0
      %v2446 = vadd.f32 %v2138, %v2445
      %v2447 = vpop.f32.mrb[0].mxu0
      %2448 = vmatprep.mubr.f32.mxu0 0.0
      %2449 = vmatmul.mubr.f32.gmra.mrb[0].mxu0 %v2103
      %v2450 = vpop.f32.mrb[0].mxu0
      %v2451 = vadd.f32 %v2138, %v2450
      %v2452 = vpop.f32.mrb[0].mxu0
      %2453 = vmatprep.mubr.f32.mxu0 0.0
      %2454 = vmatmul.mubr.f32.gmra.mrb[0].mxu0 %v2104
      %v2455 = vpop.f32.mrb[0].mxu0
      %v2456 = vadd.f32 %v2138, %v2455
      %v2457 = vpop.f32.mrb[0].mxu0
      %2458 = vmatprep.mubr.f32.mxu0 0.0
      %2459 = vmatmul.mubr.f32.gmra.mrb[0].mxu0 %v2105
      %v2460 = vpop.f32.mrb[0].mxu0
      %v2461 = vadd.f32 %v2138, %v2460
      %v2462 = vpop.f32.mrb[0].mxu0
      %2463 = vmatprep.mubr.f32.mxu0 0.0
      %2464 = vmatmul.mubr.f32.gmra.mrb[0].mxu0 %v2106
      %v2465 = vpop.f32.mrb[0].mxu0
      %v2466 = vadd.f32 %v2138, %v2465
      %v2467 = vpop.f32.mrb[0].mxu0
      %2468 = vmatprep.mubr.f32.mxu0 0.0
      %2469 = vmatmul.mubr.f32.gmra.mrb[0].mxu0 %v2107
      %v2470 = vpop.f32.mrb[0].mxu0
      %v2471 = vadd.f32 %v2138, %v2470
      %v2472 = vpop.f32.mrb[0].mxu0
      %2473 = vmatprep.mubr.f32.mxu0 0.0
      %2474 = vmatmul.mubr.f32.gmra.mrb[0].mxu0 %v2108
      %v2475 = vpop.f32.mrb[0].mxu0
      %v2476 = vadd.f32 %v2138, %v2475
      %v2477 = vpop.f32.mrb[0].mxu0
      %2478 = vmatprep.mubr.f32.mxu0 0.0
      %2479 = vmatmul.mubr.f32.gmra.mrb[0].mxu0 %v2109
      %v2480 = vpop.f32.mrb[0].mxu0
      %v2481 = vadd.f32 %v2138, %v2480
      %v2482 = vpop.f32.mrb[0].mxu0
      %2483 = vmatprep.mubr.f32.mxu0 0.0
      %2484 = vmatmul.mubr.f32.gmra.mrb[0].mxu0 %v2110
      %v2485 = vpop.f32.mrb[0].mxu0
      %v2486 = vadd.f32 %v2138, %v2485
      %v2487 = vpop.f32.mrb[0].mxu0
      %2488 = vmatprep.mubr.f32.mxu0 0.0
      %2489 = vmatmul.mubr.f32.gmra.mrb[0].mxu0 %v2111
      %v2490 = vpop.f32.mrb[0].mxu0
      %v2491 = vadd.f32 %v2138, %v2490
      %v2492 = vpop.f32.mrb[0].mxu0
      %2493 = vmatprep.mubr.f32.mxu0 0.0
      %2494 = vmatmul.mubr.f32.gmra.mrb[0].mxu0 %v2112
      %v2495 = vpop.f32.mrb[0].mxu0
      %v2496 = vadd.f32 %v2138, %v2495
      %v2497 = vpop.f32.mrb[0].mxu0
      %2498 = vmatprep.mubr.f32.mxu0 0.0
      %2499 = vmatmul.mubr.f32.gmra.mrb[0].mxu0 %v2113
      %v2500 = vpop.f32.mrb[0].mxu0
      %v2501 = vadd.f32 %v2138, %v2500
      %v2502 = vpop.f32.mrb[0].mxu0
      %2503 = vmatprep.mubr.f32.mxu0 0.0
      %2504 = vmatmul.mubr.f32.gmra.mrb[0].mxu0 %v2114
      %v2505 = vpop.f32.mrb[0].mxu0
      %v2506 = vadd.f32 %v2138, %v2505
      %v2507 = vpop.f32.mrb[0].mxu0
      %2508 = vmatprep.mubr.f32.mxu0 0.0
      %2509 = vmatmul.mubr.f32.gmra.mrb[0].mxu0 %v2115
      %v2510 = vpop.f32.mrb[0].mxu0
      %v2511 = vadd.f32 %v2138, %v2510
      %v2512 = vpop.f32.mrb[0].mxu0
      %2513 = vmatprep.mubr.f32.mxu0 0.0
      %2514 = vmatmul.mubr.f32.gmra.mrb[0].mxu0 %v2116
      %v2515 = vpop.f32.mrb[0].mxu0
      %v2516 = vadd.f32 %v2138, %v2515
      %v2517 = vpop.f32.mrb[0].mxu0
      %2518 = vmatprep.mubr.f32.mxu0 0.0
      %2519 = vmatmul.mubr.f32.gmra.mrb[0].mxu0 %v2117
      %v2520 = vpop.f32.mrb[0].mxu0
      %v2521 = vadd.f32 %v2138, %v2520
      %v2522 = vpop.f32.mrb[0].mxu0
      %2523 = vdwg.mxu0
      %v2524 = vmax.f32 %v2206, 0.0
      %v2525 = vmax.f32 %v2211, 0.0
      %v2526 = vmax.f32 %v2216, 0.0
      %v2527 = vmax.f32 %v2221, 0.0
      %v2528 = vmax.f32 %v2226, 0.0
      %v2529 = vmax.f32 %v2231, 0.0
      %v2530 = vmax.f32 %v2236, 0.0
      %v2531 = vmax.f32 %v2241, 0.0
      %v2532 = vmax.f32 %v2246, 0.0
      %v2533 = vmax.f32 %v2251, 0.0
      %v2534 = vmax.f32 %v2256, 0.0
      %v2535 = vmax.f32 %v2261, 0.0
      %v2536 = vmax.f32 %v2266, 0.0
      %v2537 = vmax.f32 %v2271, 0.0
      %v2538 = vmax.f32 %v2276, 0.0
      %v2539 = vmax.f32 %v2281, 0.0
      %v2540 = vmax.f32 %v2286, 0.0
      %v2541 = vmax.f32 %v2291, 0.0
      %v2542 = vmax.f32 %v2296, 0.0
      %v2543 = vmax.f32 %v2301, 0.0
      %v2544 = vmax.f32 %v2306, 0.0
      %v2545 = vmax.f32 %v2311, 0.0
      %v2546 = vmax.f32 %v2316, 0.0
      %v2547 = vmax.f32 %v2321, 0.0
      %v2548 = vmax.f32 %v2326, 0.0
      %v2549 = vmax.f32 %v2331, 0.0
      %v2550 = vmax.f32 %v2336, 0.0
      %v2551 = vmax.f32 %v2341, 0.0
      %v2552 = vmax.f32 %v2346, 0.0
      %v2553 = vmax.f32 %v2351, 0.0
      %v2554 = vmax.f32 %v2356, 0.0
      %v2555 = vmax.f32 %v2361, 0.0
      %v2556 = vmax.f32 %v2366, 0.0
      %v2557 = vmax.f32 %v2371, 0.0
      %v2558 = vmax.f32 %v2376, 0.0
      %v2559 = vmax.f32 %v2381, 0.0
      %v2560 = vmax.f32 %v2386, 0.0
      %v2561 = vmax.f32 %v2391, 0.0
      %v2562 = vmax.f32 %v2396, 0.0
      %v2563 = vmax.f32 %v2401, 0.0
      %v2564 = vmax.f32 %v2406, 0.0
      %v2565 = vmax.f32 %v2411, 0.0
      %v2566 = vmax.f32 %v2416, 0.0
      %v2567 = vmax.f32 %v2421, 0.0
      %v2568 = vmax.f32 %v2426, 0.0
      %v2569 = vmax.f32 %v2431, 0.0
      %v2570 = vmax.f32 %v2436, 0.0
      %v2571 = vmax.f32 %v2441, 0.0
      %v2572 = vmax.f32 %v2446, 0.0
      %v2573 = vmax.f32 %v2451, 0.0
      %v2574 = vmax.f32 %v2456, 0.0
      %v2575 = vmax.f32 %v2461, 0.0
      %v2576 = vmax.f32 %v2466, 0.0
      %v2577 = vmax.f32 %v2471, 0.0
      %v2578 = vmax.f32 %v2476, 0.0
      %v2579 = vmax.f32 %v2481, 0.0
      %v2580 = vmax.f32 %v2486, 0.0
      %v2581 = vmax.f32 %v2491, 0.0
      %v2582 = vmax.f32 %v2496, 0.0
      %v2583 = vmax.f32 %v2501, 0.0
      %v2584 = vmax.f32 %v2506, 0.0
      %v2585 = vmax.f32 %v2511, 0.0
      %v2586 = vmax.f32 %v2516, 0.0
      %v2587 = vmax.f32 %v2521, 0.0
      %v2588 = vld [vmem:[%s1 + $0x280] sm:$0xff]
      %v2589 = vld [vmem:[%s1 + $0x288] sm:$0xff]
      %v2590 = vld [vmem:[%s1 + $0x290] sm:$0xff]
      %v2591 = vld [vmem:[%s1 + $0x298] sm:$0xff]
      %v2592 = vld [vmem:[%s1 + $0x2a0] sm:$0xff]
      %v2593 = vld [vmem:[%s1 + $0x2a8] sm:$0xff]
      %v2594 = vld [vmem:[%s1 + $0x2b0] sm:$0xff]
      %v2595 = vld [vmem:[%s1 + $0x2b8] sm:$0xff]
      %v2596 = vld [vmem:[%s1 + $0x2c0] sm:$0xff]
      %v2597 = vld [vmem:[%s1 + $0x2c8] sm:$0xff]
      %v2598 = vld [vmem:[%s1 + $0x2d0] sm:$0xff]
      %v2599 = vld [vmem:[%s1 + $0x2d8] sm:$0xff]
      %v2600 = vld [vmem:[%s1 + $0x2e0] sm:$0xff]
      %v2601 = vld [vmem:[%s1 + $0x2e8] sm:$0xff]
      %v2602 = vld [vmem:[%s1 + $0x2f0] sm:$0xff]
      %v2603 = vld [vmem:[%s1 + $0x2f8] sm:$0xff]
      %v2604 = vld [vmem:[%s2 + $0x5] sm:$0x1]
      %v2605 = vlaneseq
      %v2606 = vshrl.u32 %v2605, 7
      %v2607 = vsub.s32 0, %v2606
      %v2608 = vrot.slane %v2604, %v2607
      %2609 = vmatprep.subr.mxu0 0.0
      %2610 = vmatpush1.msra.mxu0 %v2588
      %2611 = vmatprep.subr.mxu0 0.0
      %2612 = vmatpush1.msra.mxu0 %v2589
      %2613 = vmatprep.subr.mxu0 0.0
      %2614 = vmatpush1.msra.mxu0 %v2590
      %2615 = vmatprep.subr.mxu0 0.0
      %2616 = vmatpush1.msra.mxu0 %v2591
      %2617 = vmatprep.subr.mxu0 0.0
      %2618 = vmatpush1.msra.mxu0 %v2592
      %2619 = vmatprep.subr.mxu0 0.0
      %2620 = vmatpush1.msra.mxu0 %v2593
      %2621 = vmatprep.subr.mxu0 0.0
      %2622 = vmatpush1.msra.mxu0 %v2594
      %2623 = vmatprep.subr.mxu0 0.0
      %2624 = vmatpush1.msra.mxu0 %v2595
      %2625 = vmatprep.subr.mxu0 0.0
      %2626 = vmatpush1.msra.mxu0 %v2596
      %2627 = vmatprep.subr.mxu0 0.0
      %2628 = vmatpush1.msra.mxu0 %v2597
      %2629 = vmatprep.subr.mxu0 0.0
      %2630 = vmatpush1.msra.mxu0 %v2598
      %2631 = vmatprep.subr.mxu0 0.0
      %2632 = vmatpush1.msra.mxu0 %v2599
      %2633 = vmatprep.subr.mxu0 0.0
      %2634 = vmatpush1.msra.mxu0 %v2600
      %2635 = vmatprep.subr.mxu0 0.0
      %2636 = vmatpush1.msra.mxu0 %v2601
      %2637 = vmatprep.subr.mxu0 0.0
      %2638 = vmatpush1.msra.mxu0 %v2602
      %2639 = vmatprep.subr.mxu0 0.0
      %2640 = vmatpush1.msra.mxu0 %v2603
      %2641 = vmatprep.subr.mxu0 0.0
      %2642 = vmatpush1.msra.mxu0 0.0
      %2643 = vmatprep.subr.mxu0 0.0
      %2644 = vmatpush1.msra.mxu0 0.0
      %2645 = vmatprep.subr.mxu0 0.0
      %2646 = vmatpush1.msra.mxu0 0.0
      %2647 = vmatprep.subr.mxu0 0.0
      %2648 = vmatpush1.msra.mxu0 0.0
      %2649 = vmatprep.subr.mxu0 0.0
      %2650 = vmatpush1.msra.mxu0 0.0
      %2651 = vmatprep.subr.mxu0 0.0
      %2652 = vmatpush1.msra.mxu0 0.0
      %2653 = vmatprep.subr.mxu0 0.0
      %2654 = vmatpush1.msra.mxu0 0.0
      %2655 = vmatprep.subr.mxu0 0.0
      %2656 = vmatpush1.msra.mxu0 0.0
      %2657 = vmatprep.subr.mxu0 0.0
      %2658 = vmatpush1.msra.mxu0 0.0
      %2659 = vmatprep.subr.mxu0 0.0
      %2660 = vmatpush1.msra.mxu0 0.0
      %2661 = vmatprep.subr.mxu0 0.0
      %2662 = vmatpush1.msra.mxu0 0.0
      %2663 = vmatprep.subr.mxu0 0.0
      %2664 = vmatpush1.msra.mxu0 0.0
      %2665 = vmatprep.subr.mxu0 0.0
      %2666 = vmatpush1.msra.mxu0 0.0
      %2667 = vmatprep.subr.mxu0 0.0
      %2668 = vmatpush1.msra.mxu0 0.0
      %2669 = vmatprep.subr.mxu0 0.0
      %2670 = vmatpush1.msra.mxu0 0.0
      %2671 = vmatprep.subr.mxu0 0.0
      %2672 = vmatpush1.msra.mxu0 0.0
      %2673 = vmatprep.mubr.f32.mxu0 0.0
      %2674 = vmatmul.mubr.f32.gmra.mrb[0].mxu0 %v2524
      %v2675 = vpop.f32.mrb[0].mxu0
      %v2676 = vadd.f32 %v2608, %v2675
      %v2677 = vpop.f32.mrb[0].mxu0
      %2678 = vmatprep.mubr.f32.mxu0 0.0
      %2679 = vmatmul.mubr.f32.gmra.mrb[0].mxu0 %v2525
      %v2680 = vpop.f32.mrb[0].mxu0
      %v2681 = vadd.f32 %v2608, %v2680
      %v2682 = vpop.f32.mrb[0].mxu0
      %2683 = vmatprep.mubr.f32.mxu0 0.0
      %2684 = vmatmul.mubr.f32.gmra.mrb[0].mxu0 %v2526
      %v2685 = vpop.f32.mrb[0].mxu0
      %v2686 = vadd.f32 %v2608, %v2685
      %v2687 = vpop.f32.mrb[0].mxu0
      %2688 = vmatprep.mubr.f32.mxu0 0.0
      %2689 = vmatmul.mubr.f32.gmra.mrb[0].mxu0 %v2527
      %v2690 = vpop.f32.mrb[0].mxu0
      %v2691 = vadd.f32 %v2608, %v2690
      %v2692 = vpop.f32.mrb[0].mxu0
      %2693 = vmatprep.mubr.f32.mxu0 0.0
      %2694 = vmatmul.mubr.f32.gmra.mrb[0].mxu0 %v2528
      %v2695 = vpop.f32.mrb[0].mxu0
      %v2696 = vadd.f32 %v2608, %v2695
      %v2697 = vpop.f32.mrb[0].mxu0
      %2698 = vmatprep.mubr.f32.mxu0 0.0
      %2699 = vmatmul.mubr.f32.gmra.mrb[0].mxu0 %v2529
      %v2700 = vpop.f32.mrb[0].mxu0
      %v2701 = vadd.f32 %v2608, %v2700
      %v2702 = vpop.f32.mrb[0].mxu0
      %2703 = vmatprep.mubr.f32.mxu0 0.0
      %2704 = vmatmul.mubr.f32.gmra.mrb[0].mxu0 %v2530
      %v2705 = vpop.f32.mrb[0].mxu0
      %v2706 = vadd.f32 %v2608, %v2705
      %v2707 = vpop.f32.mrb[0].mxu0
      %2708 = vmatprep.mubr.f32.mxu0 0.0
      %2709 = vmatmul.mubr.f32.gmra.mrb[0].mxu0 %v2531
      %v2710 = vpop.f32.mrb[0].mxu0
      %v2711 = vadd.f32 %v2608, %v2710
      %v2712 = vpop.f32.mrb[0].mxu0
      %2713 = vmatprep.mubr.f32.mxu0 0.0
      %2714 = vmatmul.mubr.f32.gmra.mrb[0].mxu0 %v2532
      %v2715 = vpop.f32.mrb[0].mxu0
      %v2716 = vadd.f32 %v2608, %v2715
      %v2717 = vpop.f32.mrb[0].mxu0
      %2718 = vmatprep.mubr.f32.mxu0 0.0
      %2719 = vmatmul.mubr.f32.gmra.mrb[0].mxu0 %v2533
      %v2720 = vpop.f32.mrb[0].mxu0
      %v2721 = vadd.f32 %v2608, %v2720
      %v2722 = vpop.f32.mrb[0].mxu0
      %2723 = vmatprep.mubr.f32.mxu0 0.0
      %2724 = vmatmul.mubr.f32.gmra.mrb[0].mxu0 %v2534
      %v2725 = vpop.f32.mrb[0].mxu0
      %v2726 = vadd.f32 %v2608, %v2725
      %v2727 = vpop.f32.mrb[0].mxu0
      %2728 = vmatprep.mubr.f32.mxu0 0.0
      %2729 = vmatmul.mubr.f32.gmra.mrb[0].mxu0 %v2535
      %v2730 = vpop.f32.mrb[0].mxu0
      %v2731 = vadd.f32 %v2608, %v2730
      %v2732 = vpop.f32.mrb[0].mxu0
      %2733 = vmatprep.mubr.f32.mxu0 0.0
      %2734 = vmatmul.mubr.f32.gmra.mrb[0].mxu0 %v2536
      %v2735 = vpop.f32.mrb[0].mxu0
      %v2736 = vadd.f32 %v2608, %v2735
      %v2737 = vpop.f32.mrb[0].mxu0
      %2738 = vmatprep.mubr.f32.mxu0 0.0
      %2739 = vmatmul.mubr.f32.gmra.mrb[0].mxu0 %v2537
      %v2740 = vpop.f32.mrb[0].mxu0
      %v2741 = vadd.f32 %v2608, %v2740
      %v2742 = vpop.f32.mrb[0].mxu0
      %2743 = vmatprep.mubr.f32.mxu0 0.0
      %2744 = vmatmul.mubr.f32.gmra.mrb[0].mxu0 %v2538
      %v2745 = vpop.f32.mrb[0].mxu0
      %v2746 = vadd.f32 %v2608, %v2745
      %v2747 = vpop.f32.mrb[0].mxu0
      %2748 = vmatprep.mubr.f32.mxu0 0.0
      %2749 = vmatmul.mubr.f32.gmra.mrb[0].mxu0 %v2539
      %v2750 = vpop.f32.mrb[0].mxu0
      %v2751 = vadd.f32 %v2608, %v2750
      %v2752 = vpop.f32.mrb[0].mxu0
      %2753 = vmatprep.mubr.f32.mxu0 0.0
      %2754 = vmatmul.mubr.f32.gmra.mrb[0].mxu0 %v2540
      %v2755 = vpop.f32.mrb[0].mxu0
      %v2756 = vadd.f32 %v2608, %v2755
      %v2757 = vpop.f32.mrb[0].mxu0
      %2758 = vmatprep.mubr.f32.mxu0 0.0
      %2759 = vmatmul.mubr.f32.gmra.mrb[0].mxu0 %v2541
      %v2760 = vpop.f32.mrb[0].mxu0
      %v2761 = vadd.f32 %v2608, %v2760
      %v2762 = vpop.f32.mrb[0].mxu0
      %2763 = vmatprep.mubr.f32.mxu0 0.0
      %2764 = vmatmul.mubr.f32.gmra.mrb[0].mxu0 %v2542
      %v2765 = vpop.f32.mrb[0].mxu0
      %v2766 = vadd.f32 %v2608, %v2765
      %v2767 = vpop.f32.mrb[0].mxu0
      %2768 = vmatprep.mubr.f32.mxu0 0.0
      %2769 = vmatmul.mubr.f32.gmra.mrb[0].mxu0 %v2543
      %v2770 = vpop.f32.mrb[0].mxu0
      %v2771 = vadd.f32 %v2608, %v2770
      %v2772 = vpop.f32.mrb[0].mxu0
      %2773 = vmatprep.mubr.f32.mxu0 0.0
      %2774 = vmatmul.mubr.f32.gmra.mrb[0].mxu0 %v2544
      %v2775 = vpop.f32.mrb[0].mxu0
      %v2776 = vadd.f32 %v2608, %v2775
      %v2777 = vpop.f32.mrb[0].mxu0
      %2778 = vmatprep.mubr.f32.mxu0 0.0
      %2779 = vmatmul.mubr.f32.gmra.mrb[0].mxu0 %v2545
      %v2780 = vpop.f32.mrb[0].mxu0
      %v2781 = vadd.f32 %v2608, %v2780
      %v2782 = vpop.f32.mrb[0].mxu0
      %2783 = vmatprep.mubr.f32.mxu0 0.0
      %2784 = vmatmul.mubr.f32.gmra.mrb[0].mxu0 %v2546
      %v2785 = vpop.f32.mrb[0].mxu0
      %v2786 = vadd.f32 %v2608, %v2785
      %v2787 = vpop.f32.mrb[0].mxu0
      %2788 = vmatprep.mubr.f32.mxu0 0.0
      %2789 = vmatmul.mubr.f32.gmra.mrb[0].mxu0 %v2547
      %v2790 = vpop.f32.mrb[0].mxu0
      %v2791 = vadd.f32 %v2608, %v2790
      %v2792 = vpop.f32.mrb[0].mxu0
      %2793 = vmatprep.mubr.f32.mxu0 0.0
      %2794 = vmatmul.mubr.f32.gmra.mrb[0].mxu0 %v2548
      %v2795 = vpop.f32.mrb[0].mxu0
      %v2796 = vadd.f32 %v2608, %v2795
      %v2797 = vpop.f32.mrb[0].mxu0
      %2798 = vmatprep.mubr.f32.mxu0 0.0
      %2799 = vmatmul.mubr.f32.gmra.mrb[0].mxu0 %v2549
      %v2800 = vpop.f32.mrb[0].mxu0
      %v2801 = vadd.f32 %v2608, %v2800
      %v2802 = vpop.f32.mrb[0].mxu0
      %2803 = vmatprep.mubr.f32.mxu0 0.0
      %2804 = vmatmul.mubr.f32.gmra.mrb[0].mxu0 %v2550
      %v2805 = vpop.f32.mrb[0].mxu0
      %v2806 = vadd.f32 %v2608, %v2805
      %v2807 = vpop.f32.mrb[0].mxu0
      %2808 = vmatprep.mubr.f32.mxu0 0.0
      %2809 = vmatmul.mubr.f32.gmra.mrb[0].mxu0 %v2551
      %v2810 = vpop.f32.mrb[0].mxu0
      %v2811 = vadd.f32 %v2608, %v2810
      %v2812 = vpop.f32.mrb[0].mxu0
      %2813 = vmatprep.mubr.f32.mxu0 0.0
      %2814 = vmatmul.mubr.f32.gmra.mrb[0].mxu0 %v2552
      %v2815 = vpop.f32.mrb[0].mxu0
      %v2816 = vadd.f32 %v2608, %v2815
      %v2817 = vpop.f32.mrb[0].mxu0
      %2818 = vmatprep.mubr.f32.mxu0 0.0
      %2819 = vmatmul.mubr.f32.gmra.mrb[0].mxu0 %v2553
      %v2820 = vpop.f32.mrb[0].mxu0
      %v2821 = vadd.f32 %v2608, %v2820
      %v2822 = vpop.f32.mrb[0].mxu0
      %2823 = vmatprep.mubr.f32.mxu0 0.0
      %2824 = vmatmul.mubr.f32.gmra.mrb[0].mxu0 %v2554
      %v2825 = vpop.f32.mrb[0].mxu0
      %v2826 = vadd.f32 %v2608, %v2825
      %v2827 = vpop.f32.mrb[0].mxu0
      %2828 = vmatprep.mubr.f32.mxu0 0.0
      %2829 = vmatmul.mubr.f32.gmra.mrb[0].mxu0 %v2555
      %v2830 = vpop.f32.mrb[0].mxu0
      %v2831 = vadd.f32 %v2608, %v2830
      %v2832 = vpop.f32.mrb[0].mxu0
      %2833 = vmatprep.mubr.f32.mxu0 0.0
      %2834 = vmatmul.mubr.f32.gmra.mrb[0].mxu0 %v2556
      %v2835 = vpop.f32.mrb[0].mxu0
      %v2836 = vadd.f32 %v2608, %v2835
      %v2837 = vpop.f32.mrb[0].mxu0
      %2838 = vmatprep.mubr.f32.mxu0 0.0
      %2839 = vmatmul.mubr.f32.gmra.mrb[0].mxu0 %v2557
      %v2840 = vpop.f32.mrb[0].mxu0
      %v2841 = vadd.f32 %v2608, %v2840
      %v2842 = vpop.f32.mrb[0].mxu0
      %2843 = vmatprep.mubr.f32.mxu0 0.0
      %2844 = vmatmul.mubr.f32.gmra.mrb[0].mxu0 %v2558
      %v2845 = vpop.f32.mrb[0].mxu0
      %v2846 = vadd.f32 %v2608, %v2845
      %v2847 = vpop.f32.mrb[0].mxu0
      %2848 = vmatprep.mubr.f32.mxu0 0.0
      %2849 = vmatmul.mubr.f32.gmra.mrb[0].mxu0 %v2559
      %v2850 = vpop.f32.mrb[0].mxu0
      %v2851 = vadd.f32 %v2608, %v2850
      %v2852 = vpop.f32.mrb[0].mxu0
      %2853 = vmatprep.mubr.f32.mxu0 0.0
      %2854 = vmatmul.mubr.f32.gmra.mrb[0].mxu0 %v2560
      %v2855 = vpop.f32.mrb[0].mxu0
      %v2856 = vadd.f32 %v2608, %v2855
      %v2857 = vpop.f32.mrb[0].mxu0
      %2858 = vmatprep.mubr.f32.mxu0 0.0
      %2859 = vmatmul.mubr.f32.gmra.mrb[0].mxu0 %v2561
      %v2860 = vpop.f32.mrb[0].mxu0
      %v2861 = vadd.f32 %v2608, %v2860
      %v2862 = vpop.f32.mrb[0].mxu0
      %2863 = vmatprep.mubr.f32.mxu0 0.0
      %2864 = vmatmul.mubr.f32.gmra.mrb[0].mxu0 %v2562
      %v2865 = vpop.f32.mrb[0].mxu0
      %v2866 = vadd.f32 %v2608, %v2865
      %v2867 = vpop.f32.mrb[0].mxu0
      %2868 = vmatprep.mubr.f32.mxu0 0.0
      %2869 = vmatmul.mubr.f32.gmra.mrb[0].mxu0 %v2563
      %v2870 = vpop.f32.mrb[0].mxu0
      %v2871 = vadd.f32 %v2608, %v2870
      %v2872 = vpop.f32.mrb[0].mxu0
      %2873 = vmatprep.mubr.f32.mxu0 0.0
      %2874 = vmatmul.mubr.f32.gmra.mrb[0].mxu0 %v2564
      %v2875 = vpop.f32.mrb[0].mxu0
      %v2876 = vadd.f32 %v2608, %v2875
      %v2877 = vpop.f32.mrb[0].mxu0
      %2878 = vmatprep.mubr.f32.mxu0 0.0
      %2879 = vmatmul.mubr.f32.gmra.mrb[0].mxu0 %v2565
      %v2880 = vpop.f32.mrb[0].mxu0
      %v2881 = vadd.f32 %v2608, %v2880
      %v2882 = vpop.f32.mrb[0].mxu0
      %2883 = vmatprep.mubr.f32.mxu0 0.0
      %2884 = vmatmul.mubr.f32.gmra.mrb[0].mxu0 %v2566
      %v2885 = vpop.f32.mrb[0].mxu0
      %v2886 = vadd.f32 %v2608, %v2885
      %v2887 = vpop.f32.mrb[0].mxu0
      %2888 = vmatprep.mubr.f32.mxu0 0.0
      %2889 = vmatmul.mubr.f32.gmra.mrb[0].mxu0 %v2567
      %v2890 = vpop.f32.mrb[0].mxu0
      %v2891 = vadd.f32 %v2608, %v2890
      %v2892 = vpop.f32.mrb[0].mxu0
      %2893 = vmatprep.mubr.f32.mxu0 0.0
      %2894 = vmatmul.mubr.f32.gmra.mrb[0].mxu0 %v2568
      %v2895 = vpop.f32.mrb[0].mxu0
      %v2896 = vadd.f32 %v2608, %v2895
      %v2897 = vpop.f32.mrb[0].mxu0
      %2898 = vmatprep.mubr.f32.mxu0 0.0
      %2899 = vmatmul.mubr.f32.gmra.mrb[0].mxu0 %v2569
      %v2900 = vpop.f32.mrb[0].mxu0
      %v2901 = vadd.f32 %v2608, %v2900
      %v2902 = vpop.f32.mrb[0].mxu0
      %2903 = vmatprep.mubr.f32.mxu0 0.0
      %2904 = vmatmul.mubr.f32.gmra.mrb[0].mxu0 %v2570
      %v2905 = vpop.f32.mrb[0].mxu0
      %v2906 = vadd.f32 %v2608, %v2905
      %v2907 = vpop.f32.mrb[0].mxu0
      %2908 = vmatprep.mubr.f32.mxu0 0.0
      %2909 = vmatmul.mubr.f32.gmra.mrb[0].mxu0 %v2571
      %v2910 = vpop.f32.mrb[0].mxu0
      %v2911 = vadd.f32 %v2608, %v2910
      %v2912 = vpop.f32.mrb[0].mxu0
      %2913 = vmatprep.mubr.f32.mxu0 0.0
      %2914 = vmatmul.mubr.f32.gmra.mrb[0].mxu0 %v2572
      %v2915 = vpop.f32.mrb[0].mxu0
      %v2916 = vadd.f32 %v2608, %v2915
      %v2917 = vpop.f32.mrb[0].mxu0
      %2918 = vmatprep.mubr.f32.mxu0 0.0
      %2919 = vmatmul.mubr.f32.gmra.mrb[0].mxu0 %v2573
      %v2920 = vpop.f32.mrb[0].mxu0
      %v2921 = vadd.f32 %v2608, %v2920
      %v2922 = vpop.f32.mrb[0].mxu0
      %2923 = vmatprep.mubr.f32.mxu0 0.0
      %2924 = vmatmul.mubr.f32.gmra.mrb[0].mxu0 %v2574
      %v2925 = vpop.f32.mrb[0].mxu0
      %v2926 = vadd.f32 %v2608, %v2925
      %v2927 = vpop.f32.mrb[0].mxu0
      %2928 = vmatprep.mubr.f32.mxu0 0.0
      %2929 = vmatmul.mubr.f32.gmra.mrb[0].mxu0 %v2575
      %v2930 = vpop.f32.mrb[0].mxu0
      %v2931 = vadd.f32 %v2608, %v2930
      %v2932 = vpop.f32.mrb[0].mxu0
      %2933 = vmatprep.mubr.f32.mxu0 0.0
      %2934 = vmatmul.mubr.f32.gmra.mrb[0].mxu0 %v2576
      %v2935 = vpop.f32.mrb[0].mxu0
      %v2936 = vadd.f32 %v2608, %v2935
      %v2937 = vpop.f32.mrb[0].mxu0
      %2938 = vmatprep.mubr.f32.mxu0 0.0
      %2939 = vmatmul.mubr.f32.gmra.mrb[0].mxu0 %v2577
      %v2940 = vpop.f32.mrb[0].mxu0
      %v2941 = vadd.f32 %v2608, %v2940
      %v2942 = vpop.f32.mrb[0].mxu0
      %2943 = vmatprep.mubr.f32.mxu0 0.0
      %2944 = vmatmul.mubr.f32.gmra.mrb[0].mxu0 %v2578
      %v2945 = vpop.f32.mrb[0].mxu0
      %v2946 = vadd.f32 %v2608, %v2945
      %v2947 = vpop.f32.mrb[0].mxu0
      %2948 = vmatprep.mubr.f32.mxu0 0.0
      %2949 = vmatmul.mubr.f32.gmra.mrb[0].mxu0 %v2579
      %v2950 = vpop.f32.mrb[0].mxu0
      %v2951 = vadd.f32 %v2608, %v2950
      %v2952 = vpop.f32.mrb[0].mxu0
      %2953 = vmatprep.mubr.f32.mxu0 0.0
      %2954 = vmatmul.mubr.f32.gmra.mrb[0].mxu0 %v2580
      %v2955 = vpop.f32.mrb[0].mxu0
      %v2956 = vadd.f32 %v2608, %v2955
      %v2957 = vpop.f32.mrb[0].mxu0
      %2958 = vmatprep.mubr.f32.mxu0 0.0
      %2959 = vmatmul.mubr.f32.gmra.mrb[0].mxu0 %v2581
      %v2960 = vpop.f32.mrb[0].mxu0
      %v2961 = vadd.f32 %v2608, %v2960
      %v2962 = vpop.f32.mrb[0].mxu0
      %2963 = vmatprep.mubr.f32.mxu0 0.0
      %2964 = vmatmul.mubr.f32.gmra.mrb[0].mxu0 %v2582
      %v2965 = vpop.f32.mrb[0].mxu0
      %v2966 = vadd.f32 %v2608, %v2965
      %v2967 = vpop.f32.mrb[0].mxu0
      %2968 = vmatprep.mubr.f32.mxu0 0.0
      %2969 = vmatmul.mubr.f32.gmra.mrb[0].mxu0 %v2583
      %v2970 = vpop.f32.mrb[0].mxu0
      %v2971 = vadd.f32 %v2608, %v2970
      %v2972 = vpop.f32.mrb[0].mxu0
      %2973 = vmatprep.mubr.f32.mxu0 0.0
      %2974 = vmatmul.mubr.f32.gmra.mrb[0].mxu0 %v2584
      %v2975 = vpop.f32.mrb[0].mxu0
      %v2976 = vadd.f32 %v2608, %v2975
      %v2977 = vpop.f32.mrb[0].mxu0
      %2978 = vmatprep.mubr.f32.mxu0 0.0
      %2979 = vmatmul.mubr.f32.gmra.mrb[0].mxu0 %v2585
      %v2980 = vpop.f32.mrb[0].mxu0
      %v2981 = vadd.f32 %v2608, %v2980
      %v2982 = vpop.f32.mrb[0].mxu0
      %2983 = vmatprep.mubr.f32.mxu0 0.0
      %2984 = vmatmul.mubr.f32.gmra.mrb[0].mxu0 %v2586
      %v2985 = vpop.f32.mrb[0].mxu0
      %v2986 = vadd.f32 %v2608, %v2985
      %v2987 = vpop.f32.mrb[0].mxu0
      %2988 = vmatprep.mubr.f32.mxu0 0.0
      %2989 = vmatmul.mubr.f32.gmra.mrb[0].mxu0 %v2587
      %v2990 = vpop.f32.mrb[0].mxu0
      %v2991 = vadd.f32 %v2608, %v2990
      %v2992 = vpop.f32.mrb[0].mxu0
      %2993 = vdwg.mxu0
      %v2994 = vsub.f32 0.0, %v2676
      %v2995 = vsub.f32 0.0, %v2681
      %v2996 = vsub.f32 0.0, %v2686
      %v2997 = vsub.f32 0.0, %v2691
      %v2998 = vsub.f32 0.0, %v2696
      %v2999 = vsub.f32 0.0, %v2701
      %v3000 = vsub.f32 0.0, %v2706
      %v3001 = vsub.f32 0.0, %v2711
      %v3002 = vsub.f32 0.0, %v2716
      %v3003 = vsub.f32 0.0, %v2721
      %v3004 = vsub.f32 0.0, %v2726
      %v3005 = vsub.f32 0.0, %v2731
      %v3006 = vsub.f32 0.0, %v2736
      %v3007 = vsub.f32 0.0, %v2741
      %v3008 = vsub.f32 0.0, %v2746
      %v3009 = vsub.f32 0.0, %v2751
      %v3010 = vsub.f32 0.0, %v2756
      %v3011 = vsub.f32 0.0, %v2761
      %v3012 = vsub.f32 0.0, %v2766
      %v3013 = vsub.f32 0.0, %v2771
      %v3014 = vsub.f32 0.0, %v2776
      %v3015 = vsub.f32 0.0, %v2781
      %v3016 = vsub.f32 0.0, %v2786
      %v3017 = vsub.f32 0.0, %v2791
      %v3018 = vsub.f32 0.0, %v2796
      %v3019 = vsub.f32 0.0, %v2801
      %v3020 = vsub.f32 0.0, %v2806
      %v3021 = vsub.f32 0.0, %v2811
      %v3022 = vsub.f32 0.0, %v2816
      %v3023 = vsub.f32 0.0, %v2821
      %v3024 = vsub.f32 0.0, %v2826
      %v3025 = vsub.f32 0.0, %v2831
      %v3026 = vsub.f32 0.0, %v2836
      %v3027 = vsub.f32 0.0, %v2841
      %v3028 = vsub.f32 0.0, %v2846
      %v3029 = vsub.f32 0.0, %v2851
      %v3030 = vsub.f32 0.0, %v2856
      %v3031 = vsub.f32 0.0, %v2861
      %v3032 = vsub.f32 0.0, %v2866
      %v3033 = vsub.f32 0.0, %v2871
      %v3034 = vsub.f32 0.0, %v2876
      %v3035 = vsub.f32 0.0, %v2881
      %v3036 = vsub.f32 0.0, %v2886
      %v3037 = vsub.f32 0.0, %v2891
      %v3038 = vsub.f32 0.0, %v2896
      %v3039 = vsub.f32 0.0, %v2901
      %v3040 = vsub.f32 0.0, %v2906
      %v3041 = vsub.f32 0.0, %v2911
      %v3042 = vsub.f32 0.0, %v2916
      %v3043 = vsub.f32 0.0, %v2921
      %v3044 = vsub.f32 0.0, %v2926
      %v3045 = vsub.f32 0.0, %v2931
      %v3046 = vsub.f32 0.0, %v2936
      %v3047 = vsub.f32 0.0, %v2941
      %v3048 = vsub.f32 0.0, %v2946
      %v3049 = vsub.f32 0.0, %v2951
      %v3050 = vsub.f32 0.0, %v2956
      %v3051 = vsub.f32 0.0, %v2961
      %v3052 = vsub.f32 0.0, %v2966
      %v3053 = vsub.f32 0.0, %v2971
      %v3054 = vsub.f32 0.0, %v2976
      %v3055 = vsub.f32 0.0, %v2981
      %v3056 = vsub.f32 0.0, %v2986
      %v3057 = vsub.f32 0.0, %v2991
      %v3058 = vmul.f32 %v2994, 1.442695
      %v3059 = vpow.pop %v3058
      %v3060 = vmul.f32 %v2995, 1.442695
      %v3061 = vpow.pop %v3060
      %v3062 = vmul.f32 %v2996, 1.442695
      %v3063 = vpow.pop %v3062
      %v3064 = vmul.f32 %v2997, 1.442695
      %v3065 = vpow.pop %v3064
      %v3066 = vmul.f32 %v2998, 1.442695
      %v3067 = vpow.pop %v3066
      %v3068 = vmul.f32 %v2999, 1.442695
      %v3069 = vpow.pop %v3068
      %v3070 = vmul.f32 %v3000, 1.442695
      %v3071 = vpow.pop %v3070
      %v3072 = vmul.f32 %v3001, 1.442695
      %v3073 = vpow.pop %v3072
      %v3074 = vmul.f32 %v3002, 1.442695
      %v3075 = vpow.pop %v3074
      %v3076 = vmul.f32 %v3003, 1.442695
      %v3077 = vpow.pop %v3076
      %v3078 = vmul.f32 %v3004, 1.442695
      %v3079 = vpow.pop %v3078
      %v3080 = vmul.f32 %v3005, 1.442695
      %v3081 = vpow.pop %v3080
      %v3082 = vmul.f32 %v3006, 1.442695
      %v3083 = vpow.pop %v3082
      %v3084 = vmul.f32 %v3007, 1.442695
      %v3085 = vpow.pop %v3084
      %v3086 = vmul.f32 %v3008, 1.442695
      %v3087 = vpow.pop %v3086
      %v3088 = vmul.f32 %v3009, 1.442695
      %v3089 = vpow.pop %v3088
      %v3090 = vmul.f32 %v3010, 1.442695
      %v3091 = vpow.pop %v3090
      %v3092 = vmul.f32 %v3011, 1.442695
      %v3093 = vpow.pop %v3092
      %v3094 = vmul.f32 %v3012, 1.442695
      %v3095 = vpow.pop %v3094
      %v3096 = vmul.f32 %v3013, 1.442695
      %v3097 = vpow.pop %v3096
      %v3098 = vmul.f32 %v3014, 1.442695
      %v3099 = vpow.pop %v3098
      %v3100 = vmul.f32 %v3015, 1.442695
      %v3101 = vpow.pop %v3100
      %v3102 = vmul.f32 %v3016, 1.442695
      %v3103 = vpow.pop %v3102
      %v3104 = vmul.f32 %v3017, 1.442695
      %v3105 = vpow.pop %v3104
      %v3106 = vmul.f32 %v3018, 1.442695
      %v3107 = vpow.pop %v3106
      %v3108 = vmul.f32 %v3019, 1.442695
      %v3109 = vpow.pop %v3108
      %v3110 = vmul.f32 %v3020, 1.442695
      %v3111 = vpow.pop %v3110
      %v3112 = vmul.f32 %v3021, 1.442695
      %v3113 = vpow.pop %v3112
      %v3114 = vmul.f32 %v3022, 1.442695
      %v3115 = vpow.pop %v3114
      %v3116 = vmul.f32 %v3023, 1.442695
      %v3117 = vpow.pop %v3116
      %v3118 = vmul.f32 %v3024, 1.442695
      %v3119 = vpow.pop %v3118
      %v3120 = vmul.f32 %v3025, 1.442695
      %v3121 = vpow.pop %v3120
      %v3122 = vmul.f32 %v3026, 1.442695
      %v3123 = vpow.pop %v3122
      %v3124 = vmul.f32 %v3027, 1.442695
      %v3125 = vpow.pop %v3124
      %v3126 = vmul.f32 %v3028, 1.442695
      %v3127 = vpow.pop %v3126
      %v3128 = vmul.f32 %v3029, 1.442695
      %v3129 = vpow.pop %v3128
      %v3130 = vmul.f32 %v3030, 1.442695
      %v3131 = vpow.pop %v3130
      %v3132 = vmul.f32 %v3031, 1.442695
      %v3133 = vpow.pop %v3132
      %v3134 = vmul.f32 %v3032, 1.442695
      %v3135 = vpow.pop %v3134
      %v3136 = vmul.f32 %v3033, 1.442695
      %v3137 = vpow.pop %v3136
      %v3138 = vmul.f32 %v3034, 1.442695
      %v3139 = vpow.pop %v3138
      %v3140 = vmul.f32 %v3035, 1.442695
      %v3141 = vpow.pop %v3140
      %v3142 = vmul.f32 %v3036, 1.442695
      %v3143 = vpow.pop %v3142
      %v3144 = vmul.f32 %v3037, 1.442695
      %v3145 = vpow.pop %v3144
      %v3146 = vmul.f32 %v3038, 1.442695
      %v3147 = vpow.pop %v3146
      %v3148 = vmul.f32 %v3039, 1.442695
      %v3149 = vpow.pop %v3148
      %v3150 = vmul.f32 %v3040, 1.442695
      %v3151 = vpow.pop %v3150
      %v3152 = vmul.f32 %v3041, 1.442695
      %v3153 = vpow.pop %v3152
      %v3154 = vmul.f32 %v3042, 1.442695
      %v3155 = vpow.pop %v3154
      %v3156 = vmul.f32 %v3043, 1.442695
      %v3157 = vpow.pop %v3156
      %v3158 = vmul.f32 %v3044, 1.442695
      %v3159 = vpow.pop %v3158
      %v3160 = vmul.f32 %v3045, 1.442695
      %v3161 = vpow.pop %v3160
      %v3162 = vmul.f32 %v3046, 1.442695
      %v3163 = vpow.pop %v3162
      %v3164 = vmul.f32 %v3047, 1.442695
      %v3165 = vpow.pop %v3164
      %v3166 = vmul.f32 %v3048, 1.442695
      %v3167 = vpow.pop %v3166
      %v3168 = vmul.f32 %v3049, 1.442695
      %v3169 = vpow.pop %v3168
      %v3170 = vmul.f32 %v3050, 1.442695
      %v3171 = vpow.pop %v3170
      %v3172 = vmul.f32 %v3051, 1.442695
      %v3173 = vpow.pop %v3172
      %v3174 = vmul.f32 %v3052, 1.442695
      %v3175 = vpow.pop %v3174
      %v3176 = vmul.f32 %v3053, 1.442695
      %v3177 = vpow.pop %v3176
      %v3178 = vmul.f32 %v3054, 1.442695
      %v3179 = vpow.pop %v3178
      %v3180 = vmul.f32 %v3055, 1.442695
      %v3181 = vpow.pop %v3180
      %v3182 = vmul.f32 %v3056, 1.442695
      %v3183 = vpow.pop %v3182
      %v3184 = vmul.f32 %v3057, 1.442695
      %v3185 = vpow.pop %v3184
      %v3186 = vadd.f32 %v3059, 1.0
      %v3187 = vadd.f32 %v3061, 1.0
      %v3188 = vadd.f32 %v3063, 1.0
      %v3189 = vadd.f32 %v3065, 1.0
      %v3190 = vadd.f32 %v3067, 1.0
      %v3191 = vadd.f32 %v3069, 1.0
      %v3192 = vadd.f32 %v3071, 1.0
      %v3193 = vadd.f32 %v3073, 1.0
      %v3194 = vadd.f32 %v3075, 1.0
      %v3195 = vadd.f32 %v3077, 1.0
      %v3196 = vadd.f32 %v3079, 1.0
      %v3197 = vadd.f32 %v3081, 1.0
      %v3198 = vadd.f32 %v3083, 1.0
      %v3199 = vadd.f32 %v3085, 1.0
      %v3200 = vadd.f32 %v3087, 1.0
      %v3201 = vadd.f32 %v3089, 1.0
      %v3202 = vadd.f32 %v3091, 1.0
      %v3203 = vadd.f32 %v3093, 1.0
      %v3204 = vadd.f32 %v3095, 1.0
      %v3205 = vadd.f32 %v3097, 1.0
      %v3206 = vadd.f32 %v3099, 1.0
      %v3207 = vadd.f32 %v3101, 1.0
      %v3208 = vadd.f32 %v3103, 1.0
      %v3209 = vadd.f32 %v3105, 1.0
      %v3210 = vadd.f32 %v3107, 1.0
      %v3211 = vadd.f32 %v3109, 1.0
      %v3212 = vadd.f32 %v3111, 1.0
      %v3213 = vadd.f32 %v3113, 1.0
      %v3214 = vadd.f32 %v3115, 1.0
      %v3215 = vadd.f32 %v3117, 1.0
      %v3216 = vadd.f32 %v3119, 1.0
      %v3217 = vadd.f32 %v3121, 1.0
      %v3218 = vadd.f32 %v3123, 1.0
      %v3219 = vadd.f32 %v3125, 1.0
      %v3220 = vadd.f32 %v3127, 1.0
      %v3221 = vadd.f32 %v3129, 1.0
      %v3222 = vadd.f32 %v3131, 1.0
      %v3223 = vadd.f32 %v3133, 1.0
      %v3224 = vadd.f32 %v3135, 1.0
      %v3225 = vadd.f32 %v3137, 1.0
      %v3226 = vadd.f32 %v3139, 1.0
      %v3227 = vadd.f32 %v3141, 1.0
      %v3228 = vadd.f32 %v3143, 1.0
      %v3229 = vadd.f32 %v3145, 1.0
      %v3230 = vadd.f32 %v3147, 1.0
      %v3231 = vadd.f32 %v3149, 1.0
      %v3232 = vadd.f32 %v3151, 1.0
      %v3233 = vadd.f32 %v3153, 1.0
      %v3234 = vadd.f32 %v3155, 1.0
      %v3235 = vadd.f32 %v3157, 1.0
      %v3236 = vadd.f32 %v3159, 1.0
      %v3237 = vadd.f32 %v3161, 1.0
      %v3238 = vadd.f32 %v3163, 1.0
      %v3239 = vadd.f32 %v3165, 1.0
      %v3240 = vadd.f32 %v3167, 1.0
      %v3241 = vadd.f32 %v3169, 1.0
      %v3242 = vadd.f32 %v3171, 1.0
      %v3243 = vadd.f32 %v3173, 1.0
      %v3244 = vadd.f32 %v3175, 1.0
      %v3245 = vadd.f32 %v3177, 1.0
      %v3246 = vadd.f32 %v3179, 1.0
      %v3247 = vadd.f32 %v3181, 1.0
      %v3248 = vadd.f32 %v3183, 1.0
      %v3249 = vadd.f32 %v3185, 1.0
      %v3250 = vrcp.pop %v3186
      %v3251 = vmul.f32 1.0, %v3250
      %v3252 = vrcp.pop %v3187
      %v3253 = vmul.f32 1.0, %v3252
      %v3254 = vrcp.pop %v3188
      %v3255 = vmul.f32 1.0, %v3254
      %v3256 = vrcp.pop %v3189
      %v3257 = vmul.f32 1.0, %v3256
      %v3258 = vrcp.pop %v3190
      %v3259 = vmul.f32 1.0, %v3258
      %v3260 = vrcp.pop %v3191
      %v3261 = vmul.f32 1.0, %v3260
      %v3262 = vrcp.pop %v3192
      %v3263 = vmul.f32 1.0, %v3262
      %v3264 = vrcp.pop %v3193
      %v3265 = vmul.f32 1.0, %v3264
      %v3266 = vrcp.pop %v3194
      %v3267 = vmul.f32 1.0, %v3266
      %v3268 = vrcp.pop %v3195
      %v3269 = vmul.f32 1.0, %v3268
      %v3270 = vrcp.pop %v3196
      %v3271 = vmul.f32 1.0, %v3270
      %v3272 = vrcp.pop %v3197
      %v3273 = vmul.f32 1.0, %v3272
      %v3274 = vrcp.pop %v3198
      %v3275 = vmul.f32 1.0, %v3274
      %v3276 = vrcp.pop %v3199
      %v3277 = vmul.f32 1.0, %v3276
      %v3278 = vrcp.pop %v3200
      %v3279 = vmul.f32 1.0, %v3278
      %v3280 = vrcp.pop %v3201
      %v3281 = vmul.f32 1.0, %v3280
      %v3282 = vrcp.pop %v3202
      %v3283 = vmul.f32 1.0, %v3282
      %v3284 = vrcp.pop %v3203
      %v3285 = vmul.f32 1.0, %v3284
      %v3286 = vrcp.pop %v3204
      %v3287 = vmul.f32 1.0, %v3286
      %v3288 = vrcp.pop %v3205
      %v3289 = vmul.f32 1.0, %v3288
      %v3290 = vrcp.pop %v3206
      %v3291 = vmul.f32 1.0, %v3290
      %v3292 = vrcp.pop %v3207
      %v3293 = vmul.f32 1.0, %v3292
      %v3294 = vrcp.pop %v3208
      %v3295 = vmul.f32 1.0, %v3294
      %v3296 = vrcp.pop %v3209
      %v3297 = vmul.f32 1.0, %v3296
      %v3298 = vrcp.pop %v3210
      %v3299 = vmul.f32 1.0, %v3298
      %v3300 = vrcp.pop %v3211
      %v3301 = vmul.f32 1.0, %v3300
      %v3302 = vrcp.pop %v3212
      %v3303 = vmul.f32 1.0, %v3302
      %v3304 = vrcp.pop %v3213
      %v3305 = vmul.f32 1.0, %v3304
      %v3306 = vrcp.pop %v3214
      %v3307 = vmul.f32 1.0, %v3306
      %v3308 = vrcp.pop %v3215
      %v3309 = vmul.f32 1.0, %v3308
      %v3310 = vrcp.pop %v3216
      %v3311 = vmul.f32 1.0, %v3310
      %v3312 = vrcp.pop %v3217
      %v3313 = vmul.f32 1.0, %v3312
      %v3314 = vrcp.pop %v3218
      %v3315 = vmul.f32 1.0, %v3314
      %v3316 = vrcp.pop %v3219
      %v3317 = vmul.f32 1.0, %v3316
      %v3318 = vrcp.pop %v3220
      %v3319 = vmul.f32 1.0, %v3318
      %v3320 = vrcp.pop %v3221
      %v3321 = vmul.f32 1.0, %v3320
      %v3322 = vrcp.pop %v3222
      %v3323 = vmul.f32 1.0, %v3322
      %v3324 = vrcp.pop %v3223
      %v3325 = vmul.f32 1.0, %v3324
      %v3326 = vrcp.pop %v3224
      %v3327 = vmul.f32 1.0, %v3326
      %v3328 = vrcp.pop %v3225
      %v3329 = vmul.f32 1.0, %v3328
      %v3330 = vrcp.pop %v3226
      %v3331 = vmul.f32 1.0, %v3330
      %v3332 = vrcp.pop %v3227
      %v3333 = vmul.f32 1.0, %v3332
      %v3334 = vrcp.pop %v3228
      %v3335 = vmul.f32 1.0, %v3334
      %v3336 = vrcp.pop %v3229
      %v3337 = vmul.f32 1.0, %v3336
      %v3338 = vrcp.pop %v3230
      %v3339 = vmul.f32 1.0, %v3338
      %v3340 = vrcp.pop %v3231
      %v3341 = vmul.f32 1.0, %v3340
      %v3342 = vrcp.pop %v3232
      %v3343 = vmul.f32 1.0, %v3342
      %v3344 = vrcp.pop %v3233
      %v3345 = vmul.f32 1.0, %v3344
      %v3346 = vrcp.pop %v3234
      %v3347 = vmul.f32 1.0, %v3346
      %v3348 = vrcp.pop %v3235
      %v3349 = vmul.f32 1.0, %v3348
      %v3350 = vrcp.pop %v3236
      %v3351 = vmul.f32 1.0, %v3350
      %v3352 = vrcp.pop %v3237
      %v3353 = vmul.f32 1.0, %v3352
      %v3354 = vrcp.pop %v3238
      %v3355 = vmul.f32 1.0, %v3354
      %v3356 = vrcp.pop %v3239
      %v3357 = vmul.f32 1.0, %v3356
      %v3358 = vrcp.pop %v3240
      %v3359 = vmul.f32 1.0, %v3358
      %v3360 = vrcp.pop %v3241
      %v3361 = vmul.f32 1.0, %v3360
      %v3362 = vrcp.pop %v3242
      %v3363 = vmul.f32 1.0, %v3362
      %v3364 = vrcp.pop %v3243
      %v3365 = vmul.f32 1.0, %v3364
      %v3366 = vrcp.pop %v3244
      %v3367 = vmul.f32 1.0, %v3366
      %v3368 = vrcp.pop %v3245
      %v3369 = vmul.f32 1.0, %v3368
      %v3370 = vrcp.pop %v3246
      %v3371 = vmul.f32 1.0, %v3370
      %v3372 = vrcp.pop %v3247
      %v3373 = vmul.f32 1.0, %v3372
      %v3374 = vrcp.pop %v3248
      %v3375 = vmul.f32 1.0, %v3374
      %v3376 = vrcp.pop %v3249
      %v3377 = vmul.f32 1.0, %v3376
      %3378 = vst [vmem:[%s172] sm:$0xff] %v3251
      %3379 = vst [vmem:[%s172 + $0x8] sm:$0xff] %v3253
      %3380 = vst [vmem:[%s172 + $0x10] sm:$0xff] %v3255
      %3381 = vst [vmem:[%s172 + $0x18] sm:$0xff] %v3257
      %3382 = vst [vmem:[%s172 + $0x20] sm:$0xff] %v3259
      %3383 = vst [vmem:[%s172 + $0x28] sm:$0xff] %v3261
      %3384 = vst [vmem:[%s172 + $0x30] sm:$0xff] %v3263
      %3385 = vst [vmem:[%s172 + $0x38] sm:$0xff] %v3265
      %3386 = vst [vmem:[%s172 + $0x40] sm:$0xff] %v3267
      %3387 = vst [vmem:[%s172 + $0x48] sm:$0xff] %v3269
      %3388 = vst [vmem:[%s172 + $0x50] sm:$0xff] %v3271
      %3389 = vst [vmem:[%s172 + $0x58] sm:$0xff] %v3273
      %3390 = vst [vmem:[%s172 + $0x60] sm:$0xff] %v3275
      %3391 = vst [vmem:[%s172 + $0x68] sm:$0xff] %v3277
      %3392 = vst [vmem:[%s172 + $0x70] sm:$0xff] %v3279
      %3393 = vst [vmem:[%s172 + $0x78] sm:$0xff] %v3281
      %3394 = vst [vmem:[%s172 + $0x80] sm:$0xff] %v3283
      %3395 = vst [vmem:[%s172 + $0x88] sm:$0xff] %v3285
      %3396 = vst [vmem:[%s172 + $0x90] sm:$0xff] %v3287
      %3397 = vst [vmem:[%s172 + $0x98] sm:$0xff] %v3289
      %3398 = vst [vmem:[%s172 + $0xa0] sm:$0xff] %v3291
      %3399 = vst [vmem:[%s172 + $0xa8] sm:$0xff] %v3293
      %3400 = vst [vmem:[%s172 + $0xb0] sm:$0xff] %v3295
      %3401 = vst [vmem:[%s172 + $0xb8] sm:$0xff] %v3297
      %3402 = vst [vmem:[%s172 + $0xc0] sm:$0xff] %v3299
      %3403 = vst [vmem:[%s172 + $0xc8] sm:$0xff] %v3301
      %3404 = vst [vmem:[%s172 + $0xd0] sm:$0xff] %v3303
      %3405 = vst [vmem:[%s172 + $0xd8] sm:$0xff] %v3305
      %3406 = vst [vmem:[%s172 + $0xe0] sm:$0xff] %v3307
      %3407 = vst [vmem:[%s172 + $0xe8] sm:$0xff] %v3309
      %3408 = vst [vmem:[%s172 + $0xf0] sm:$0xff] %v3311
      %3409 = vst [vmem:[%s172 + $0xf8] sm:$0xff] %v3313
      %3410 = vst [vmem:[%s172 + $0x100] sm:$0xff] %v3315
      %3411 = vst [vmem:[%s172 + $0x108] sm:$0xff] %v3317
      %3412 = vst [vmem:[%s172 + $0x110] sm:$0xff] %v3319
      %3413 = vst [vmem:[%s172 + $0x118] sm:$0xff] %v3321
      %3414 = vst [vmem:[%s172 + $0x120] sm:$0xff] %v3323
      %3415 = vst [vmem:[%s172 + $0x128] sm:$0xff] %v3325
      %3416 = vst [vmem:[%s172 + $0x130] sm:$0xff] %v3327
      %3417 = vst [vmem:[%s172 + $0x138] sm:$0xff] %v3329
      %3418 = vst [vmem:[%s172 + $0x140] sm:$0xff] %v3331
      %3419 = vst [vmem:[%s172 + $0x148] sm:$0xff] %v3333
      %3420 = vst [vmem:[%s172 + $0x150] sm:$0xff] %v3335
      %3421 = vst [vmem:[%s172 + $0x158] sm:$0xff] %v3337
      %3422 = vst [vmem:[%s172 + $0x160] sm:$0xff] %v3339
      %3423 = vst [vmem:[%s172 + $0x168] sm:$0xff] %v3341
      %3424 = vst [vmem:[%s172 + $0x170] sm:$0xff] %v3343
      %3425 = vst [vmem:[%s172 + $0x178] sm:$0xff] %v3345
      %3426 = vst [vmem:[%s172 + $0x180] sm:$0xff] %v3347
      %3427 = vst [vmem:[%s172 + $0x188] sm:$0xff] %v3349
      %3428 = vst [vmem:[%s172 + $0x190] sm:$0xff] %v3351
      %3429 = vst [vmem:[%s172 + $0x198] sm:$0xff] %v3353
      %3430 = vst [vmem:[%s172 + $0x1a0] sm:$0xff] %v3355
      %3431 = vst [vmem:[%s172 + $0x1a8] sm:$0xff] %v3357
      %3432 = vst [vmem:[%s172 + $0x1b0] sm:$0xff] %v3359
      %3433 = vst [vmem:[%s172 + $0x1b8] sm:$0xff] %v3361
      %3434 = vst [vmem:[%s172 + $0x1c0] sm:$0xff] %v3363
      %3435 = vst [vmem:[%s172 + $0x1c8] sm:$0xff] %v3365
      %3436 = vst [vmem:[%s172 + $0x1d0] sm:$0xff] %v3367
      %3437 = vst [vmem:[%s172 + $0x1d8] sm:$0xff] %v3369
      %3438 = vst [vmem:[%s172 + $0x1e0] sm:$0xff] %v3371
      %3439 = vst [vmem:[%s172 + $0x1e8] sm:$0xff] %v3373
      %3440 = vst [vmem:[%s172 + $0x1f0] sm:$0xff] %v3375
      %3441 = vst [vmem:[%s172 + $0x1f8] sm:$0xff] %v3377
      %s3442 = smul.u32 64, %s14
      %p3443 = scmp.lt.s32.totalorder %s3442, 127
      %s3444 = scalar_select %p3443, %s3442, 127
      %s3445 = smul.addr %s3444, 8
      %s3446 = scalar_lea.vmem %s3, %s3445
      // Predicated region
      $region33: #{bank_marketing_forward.1} parent=31 // pred_check
        %p3447 = pneg %p100
      $region34: #{bank_marketing_forward.1} parent=31 // pred_check_branch
        %3449 = sbr.rel (%p3447) target = $region36
      $region35: #{bank_marketing_forward.1} parent=31 // pred_region
        %s3450 = smul.u32 64, %s14
      $region36: #{bank_marketing_forward.1} parent=31 // pred_fallthru
        _
    $region32: #{bank_marketing_forward.1} parent=5 // pred_fallthru
      _
    %p3451 = scmp.le.s32.totalorder 2, %s9
    // Predicated region
    $region37: #{bank_marketing_forward.1} parent=5 // pred_check
      %p3452 = pneg %p3451
    $region38: #{bank_marketing_forward.1} parent=5 // pred_check_branch
      %3454 = sbr.rel (%p3452) target = $region40
    $region39: #{bank_marketing_forward.1} parent=5 // pred_region
      %s3455 = ssub.s32 %s9, 2
      // Predicated region
      $region41: #{bank_marketing_forward.1} parent=39 // pred_check
        %p3456 = pneg %p106
      $region42: #{bank_marketing_forward.1} parent=39 // pred_check_branch
        %3458 = sbr.rel (%p3456) target = $region44
      $region43: #{bank_marketing_forward.1} parent=39 // pred_region
        %s3459 = smul.u32 64, %s15
        %p3460 = scmp.lt.s32.totalorder %s3459, 127
        %s3461 = scalar_select %p3460, %s3459, 127
        %s3462 = smul.addr %s3461, 8
        %s3463 = scalar_lea.vmem %s3, %s3462
      $region44: #{bank_marketing_forward.1} parent=39 // pred_fallthru
        _
    $region40: #{bank_marketing_forward.1} parent=5 // pred_fallthru
      _
  $region6: #{bank_marketing_forward.1} parent=0 // loop_footer
    %s13 = sadd.s32 1, %s9
  $region7: #{bank_marketing_forward.1} parent=0 // loop_footer_branch
    %8 = sbr.rel target = $region3
  $region8: #{bank_marketing_forward.1} parent=0 // loop_exit
    _

</llo_original>
